<compile_context>
chip_gen: v7x
topology: tpu7x:2x2x1
jax: 0.10.0
libtpu: 0.0.40
codegen_flags: <defaults>
</compile_context>

<pallas_src>
import jax
import jax.numpy as jnp
from jax import lax
from jax.experimental import pallas as pl
from jax.experimental.pallas import tpu as pltpu


_SLAB_ROWS = 128          # in-kernel streaming granularity (rows per slab)
_MIN_PALLAS_ELEMS = 64 * 1024


def _make_pcc_kernel(tile_rows, W, valid_rows, tiles_per_core):
    """Build the per-tile statistics kernel (all sizes static)."""
    slab_sizes = []
    s0 = 0
    while s0 < tile_rows:
        slab_sizes.append(min(_SLAB_ROWS, tile_rows - s0))
        s0 += slab_sizes[-1]
    # tile_rows % 8 == 0 and full slabs are 128 rows, so every slab is % 8.

    def kernel(p_ref, l_ref, out_ref, acc_ref):
        # p_ref, l_ref : (tile_rows, W) input blocks, native dtype
        # out_ref      : (5, W) f32 per-core partial sums (written on last step)
        # acc_ref      : (5, 8, W) f32 VMEM scratch accumulator
        c = pl.program_id(0)
        j = pl.program_id(1)

        @pl.when(j == 0)
        def _init():
            acc_ref[...] = jnp.zeros_like(acc_ref)

        row0 = (c * tiles_per_core + j) * tile_rows

        s_p = jnp.zeros((8, W), jnp.float32)
        s_l = jnp.zeros((8, W), jnp.float32)
        s_pp = jnp.zeros((8, W), jnp.float32)
        s_ll = jnp.zeros((8, W), jnp.float32)
        s_pl = jnp.zeros((8, W), jnp.float32)

        start = 0
        for sr in slab_sizes:                      # static, unrolled at trace
            p = p_ref[start:start + sr, :].astype(jnp.float32)
            l = l_ref[start:start + sr, :].astype(jnp.float32)
            # Mask rows past the true extent (ragged last tile / extra
            # per-core tiles).  Zeros contribute nothing to any raw sum.
            gidx = lax.broadcasted_iota(jnp.int32, (sr, 1), 0) + (row0 + start)
            valid = gidx < valid_rows
            p = jnp.where(valid, p, 0.0)
            l = jnp.where(valid, l, 0.0)
            # (sr, W) -> (sr//8, 8, W): axis-0 sums are vreg-aligned VALU adds,
            # no per-tile cross-lane XLU work.
            p3 = p.reshape(sr // 8, 8, W)
            l3 = l.reshape(sr // 8, 8, W)
            s_p = s_p + jnp.sum(p3, axis=0)
            s_l = s_l + jnp.sum(l3, axis=0)
            s_pp = s_pp + jnp.sum(p3 * p3, axis=0)
            s_ll = s_ll + jnp.sum(l3 * l3, axis=0)
            s_pl = s_pl + jnp.sum(p3 * l3, axis=0)
            start += sr

        acc_ref[0] += s_p
        acc_ref[1] += s_l
        acc_ref[2] += s_pp
        acc_ref[3] += s_ll
        acc_ref[4] += s_pl

        @pl.when(j == pl.num_programs(1) - 1)
        def _finalize():
            # Fold the cross-sublane reduce into the kernel (XLU slot has
            # slack); output stays lane-dense (last dim = W).
            out_ref[...] = jnp.sum(acc_ref[...], axis=1)

    return kernel


def _tpu_device_kind():
    try:
        return jax.devices()[0].device_kind.lower()
    except Exception:
        return ""


def _pcc_from_raw_sums(sp, sl, spp, sll, spl, n_elems, len_t):
    n = jnp.float32(n_elems)
    # unbiased variance over ALL elements (torch.var(x, unbiased=True))
    var_p = (spp - sp * sp / n) / (n - 1.0)
    var_l = (sll - sl * sl / n) / (n - 1.0)
    # covariance divided by (len(pred.t()) - 1), as in the reference
    # (no guard for len_t == 1 / n == 1: matches torch's inf/nan behavior)
    cov = (spl - sp * sl / n) / (jnp.float32(len_t) - 1.0)
    pcc = cov / (jnp.sqrt(var_p) * jnp.sqrt(var_l))
    return jnp.float32(1.0) - pcc


def pcc_loss(pred, label, *, max_tile_rows=None, num_cores=None):
    """Pallas implementation of PCCLoss.forward(pred, label)."""
    pred = jnp.squeeze(pred)
    label = jnp.squeeze(label)

    if pred.ndim == 1:
        len_t = pred.shape[0]          # torch .t() is a no-op on 1-D
    elif pred.ndim == 2:
        len_t = pred.shape[1]          # after .t(), len(pred) = original dim 1
    else:
        raise ValueError("PCCLoss expects 1 or 2 non-singleton dims after squeeze")

    n_elems = pred.size

    # Largest lane width in {512, 256, 128} giving an exact, metadata-only
    # (rows, W) reshape with rows % 8 == 0 (no pad, no slice, no HBM copy).
    W = None
    for cand in (512, 256, 128):
        if n_elems % (cand * 8) == 0:
            W = cand
            break

    if W is None or n_elems < _MIN_PALLAS_ELEMS:
        # Small-input fast path / unaligned fallback: a single fused XLA
        # reduction is faster than launching the kernel (and avoids any
        # relayout copy for non-(8*128)-aligned sizes).
        p = pred.astype(jnp.float32)
        l = label.astype(jnp.float32)
        pm, lm = jnp.mean(p), jnp.mean(l)
        dp, dl = p - pm, l - lm
        n = jnp.float32(n_elems)
        var_p = jnp.sum(dp * dp) / (n - 1.0)
        var_l = jnp.sum(dl * dl) / (n - 1.0)
        cov = jnp.sum(dp * dl) / (jnp.float32(len_t) - 1.0)
        pcc = cov / (jnp.sqrt(var_p) * jnp.sqrt(var_l))
        return jnp.float32(1.0) - pcc

    kind = _tpu_device_kind()
    is_v7 = "7" in kind                       # v7x: 2 TensorCores per chip
    if max_tile_rows is None:
        max_tile_rows = 2048 if is_v7 else 1024

    rows = n_elems // W                       # exact; rows % 8 == 0
    if rows <= max_tile_rows:
        tile_rows = rows                      # single block == full extent
        n_tiles = 1
    else:
        tile_rows = max_tile_rows
        n_tiles = pl.cdiv(rows, tile_rows)    # last tile ragged -> masked

    if num_cores is None:
        num_cores = 2 if is_v7 else 1         # only split on 2-TC hardware
    if n_tiles < 2:
        num_cores = 1
    tiles_per_core = pl.cdiv(n_tiles, num_cores)

    # Metadata-only reshapes (exact sizes, no pad / slice).
    p2 = pred.reshape(rows, W)
    l2 = label.reshape(rows, W)

    def in_map(c, j):
        # Clamp so extra per-core / duplicated tiles stay in bounds; their
        # rows are masked to zero inside the kernel via the global row index.
        return (jnp.minimum(c * tiles_per_core + j, n_tiles - 1), 0)

    in_spec = pl.BlockSpec((tile_rows, W), in_map)
    out_spec = pl.BlockSpec((None, 5, W), lambda c, j: (c, 0, 0))

    itemsize = pred.dtype.itemsize
    cost = pl.CostEstimate(
        flops=12 * n_elems,
        transcendentals=0,
        bytes_accessed=2 * n_elems * itemsize + num_cores * 5 * W * 4,
    )

    kernel = _make_pcc_kernel(tile_rows, W, rows, tiles_per_core)
    partials = pl.pallas_call(
        kernel,
        out_shape=jax.ShapeDtypeStruct((num_cores, 5, W), jnp.float32),
        grid=(num_cores, tiles_per_core),
        in_specs=[in_spec, in_spec],
        out_specs=out_spec,
        scratch_shapes=[pltpu.VMEM((5, 8, W), jnp.float32)],
        compiler_params=pltpu.CompilerParams(
            dimension_semantics=("parallel", "arbitrary")),
        cost_estimate=cost,
    )(p2, l2)

    # Tiny epilogue: combine per-core lane partials + scalar finalize.
    s = jnp.sum(partials, axis=(0, 2))        # (5,)
    return _pcc_from_raw_sums(s[0], s[1], s[2], s[3], s[4], n_elems, len_t)


def _pcc_loss_ref(pred, label):
    """Plain-JAX reference mirroring the PyTorch code (in f32)."""
    pred = jnp.squeeze(pred).T.astype(jnp.float32)
    label = jnp.squeeze(label).T.astype(jnp.float32)
    pm, lm = jnp.mean(pred), jnp.mean(label)
    pv = jnp.sum((pred - pm) ** 2) / (pred.size - 1)
    lv = jnp.sum((label - lm) ** 2) / (label.size - 1)
    cov = jnp.sum((pred - pm) * (label - lm)) / (pred.shape[0] - 1)
    pcc = cov / (jnp.sqrt(pv) * jnp.sqrt(lv))
    return 1.0 - pcc


if __name__ == "__main__":
    key = jax.random.PRNGKey(0)

    def make(shape, k):
        k1, k2 = jax.random.split(k)
        pred = jax.random.normal(k1, shape, dtype=jnp.float32)
        label = 0.5 * pred + 0.1 * jax.random.normal(k2, shape, dtype=jnp.float32)
        return pred, label

    k0, k1, k2, k3 = jax.random.split(key, 4)
    checks = []

    # 1) tiny input -> fused-XLA fast path
    pred, label = make((16, 8), k0)
    checks.append((pcc_loss(pred, label), _pcc_loss_ref(pred, label)))

    # 2) Pallas path, default tiling, single tile
    pred, label = make((512, 512), k1)
    checks.append((pcc_loss(pred, label), _pcc_loss_ref(pred, label)))

    # 3) Pallas path, multiple tiles + ragged (masked) last tile
    pred, label = make((328, 512), k2)
    checks.append((pcc_loss(pred, label, max_tile_rows=128),
                   _pcc_loss_ref(pred, label)))

    # 4) Pallas path, forced 2-slot "core" grid (exercises the v7x layout on
    #    any generation; serial on single-TC chips)
    pred, label = make((328, 512), k3)
    checks.append((pcc_loss(pred, label, max_tile_rows=128, num_cores=2),
                   _pcc_loss_ref(pred, label)))

    for got, want in checks:
        got = jax.block_until_ready(got)
        assert jnp.allclose(got, want, rtol=2e-3, atol=2e-4), (got, want)

    print("KERNEL_OK")
</pallas_src>

<mosaic_0001>
module attributes {stable_mosaic.version = 11 : i64} {
  func.func @kernel(%arg0: i32, %arg1: i32, %arg2: memref<512x512xf32, #tpu.memory_space<vmem>>, %arg3: memref<512x512xf32, #tpu.memory_space<vmem>>, %arg4: memref<1x5x512xf32, #tpu.memory_space<vmem>>, %arg5: memref<5x8x512xf32, #tpu.memory_space<vmem>>) attributes {dimension_semantics = [#tpu.dimension_semantics<parallel>, #tpu.dimension_semantics<arbitrary>], iteration_bounds = array<i64: 1, 1>, scalar_prefetch = 0 : i64, scratch_operands = 1 : i64, tpu.core_type = #tpu.core_type<tc>, window_params = [{transform_indices = @transform_0, window_bounds = array<i64: 512, 512>}, {transform_indices = @transform_1, window_bounds = array<i64: 512, 512>}, {transform_indices = @transform_2, window_bounds = array<i64: 1, 5, 512>}]} {
    %c0_i32 = arith.constant 0 : i32
    %0 = arith.cmpi eq, %arg1, %c0_i32 : i32
    %1 = arith.extui %0 : i1 to i32
    %c0_i32_0 = arith.constant 0 : i32
    %2 = arith.cmpi ne, %1, %c0_i32_0 : i32
    scf.if %2 {
      %cst_78 = arith.constant 0.000000e+00 : f32
      %168 = vector.broadcast %cst_78 : f32 to vector<5x8x512xf32>
      %c0_79 = arith.constant 0 : index
      %c0_80 = arith.constant 0 : index
      %c0_81 = arith.constant 0 : index
      %169 = vector.load %arg5[%c0_79, %c0_80, %c0_81] : memref<5x8x512xf32, #tpu.memory_space<vmem>>, vector<5x8x512xf32>
      tpu.vector_store %arg5[%c0_79, %c0_80, %c0_81], %168 {strides = array<i32>} : memref<5x8x512xf32, #tpu.memory_space<vmem>>, vector<5x8x512xf32>,
    } else {
    }
    %c1_i32 = arith.constant 1 : i32
    %3 = arith.muli %arg0, %c1_i32 : i32
    %4 = arith.addi %3, %arg1 : i32
    %c512_i32 = arith.constant 512 : i32
    %5 = arith.muli %4, %c512_i32 : i32
    %cst = arith.constant 0.000000e+00 : f32
    %6 = vector.broadcast %cst : f32 to vector<8x512xf32>
    %cst_1 = arith.constant 0.000000e+00 : f32
    %7 = vector.broadcast %cst_1 : f32 to vector<8x512xf32>
    %cst_2 = arith.constant 0.000000e+00 : f32
    %8 = vector.broadcast %cst_2 : f32 to vector<8x512xf32>
    %cst_3 = arith.constant 0.000000e+00 : f32
    %9 = vector.broadcast %cst_3 : f32 to vector<8x512xf32>
    %cst_4 = arith.constant 0.000000e+00 : f32
    %10 = vector.broadcast %cst_4 : f32 to vector<8x512xf32>
    %c0 = arith.constant 0 : index
    %c0_5 = arith.constant 0 : index
    %11 = vector.load %arg2[%c0, %c0_5] : memref<512x512xf32, #tpu.memory_space<vmem>>, vector<128x512xf32>
    %c0_6 = arith.constant 0 : index
    %c0_7 = arith.constant 0 : index
    %12 = vector.load %arg3[%c0_6, %c0_7] : memref<512x512xf32, #tpu.memory_space<vmem>>, vector<128x512xf32>
    %13 = tpu.iota {dimensions = array<i32: 0>} : vector<128x1xi32>
    %c0_i32_8 = arith.constant 0 : i32
    %14 = arith.addi %5, %c0_i32_8 : i32
    %15 = vector.broadcast %14 : i32 to vector<128x1xi32>
    %16 = arith.addi %13, %15 : vector<128x1xi32>
    %c512_i32_9 = arith.constant 512 : i32
    %17 = vector.broadcast %c512_i32_9 : i32 to vector<128x1xi32>
    %18 = arith.cmpi slt, %16, %17 : vector<128x1xi32>
    %cst_10 = arith.constant 0.000000e+00 : f32
    %19 = vector.shape_cast %18 : vector<128x1xi1> to vector<128x1xi1>
    %20 = vector.broadcast %19 : vector<128x1xi1> to vector<128x512xi1>
    %21 = vector.broadcast %cst_10 : f32 to vector<128x512xf32>
    %22 = arith.select %20, %11, %21 : vector<128x512xi1>, vector<128x512xf32>
    %cst_11 = arith.constant 0.000000e+00 : f32
    %23 = vector.shape_cast %18 : vector<128x1xi1> to vector<128x1xi1>
    %24 = vector.broadcast %23 : vector<128x1xi1> to vector<128x512xi1>
    %25 = vector.broadcast %cst_11 : f32 to vector<128x512xf32>
    %26 = arith.select %24, %12, %25 : vector<128x512xi1>, vector<128x512xf32>
    %27 = vector.shape_cast %22 : vector<128x512xf32> to vector<16x8x512xf32>
    %28 = vector.shape_cast %26 : vector<128x512xf32> to vector<16x8x512xf32>
    %cst_12 = arith.constant dense<0.000000e+00> : vector<8x512xf32>
    %29 = vector.multi_reduction <add>, %27, %cst_12 [0] : vector<16x8x512xf32> to vector<8x512xf32>
    %30 = arith.addf %6, %29 : vector<8x512xf32>
    %cst_13 = arith.constant dense<0.000000e+00> : vector<8x512xf32>
    %31 = vector.multi_reduction <add>, %28, %cst_13 [0] : vector<16x8x512xf32> to vector<8x512xf32>
    %32 = arith.addf %7, %31 : vector<8x512xf32>
    %33 = arith.mulf %27, %27 : vector<16x8x512xf32>
    %cst_14 = arith.constant dense<0.000000e+00> : vector<8x512xf32>
    %34 = vector.multi_reduction <add>, %33, %cst_14 [0] : vector<16x8x512xf32> to vector<8x512xf32>
    %35 = arith.addf %8, %34 : vector<8x512xf32>
    %36 = arith.mulf %28, %28 : vector<16x8x512xf32>
    %cst_15 = arith.constant dense<0.000000e+00> : vector<8x512xf32>
    %37 = vector.multi_reduction <add>, %36, %cst_15 [0] : vector<16x8x512xf32> to vector<8x512xf32>
    %38 = arith.addf %9, %37 : vector<8x512xf32>
    %39 = arith.mulf %27, %28 : vector<16x8x512xf32>
    %cst_16 = arith.constant dense<0.000000e+00> : vector<8x512xf32>
    %40 = vector.multi_reduction <add>, %39, %cst_16 [0] : vector<16x8x512xf32> to vector<8x512xf32>
    %41 = arith.addf %10, %40 : vector<8x512xf32>
    %c128 = arith.constant 128 : index
    %c0_17 = arith.constant 0 : index
    %42 = vector.load %arg2[%c128, %c0_17] : memref<512x512xf32, #tpu.memory_space<vmem>>, vector<128x512xf32>
    %c128_18 = arith.constant 128 : index
    %c0_19 = arith.constant 0 : index
    %43 = vector.load %arg3[%c128_18, %c0_19] : memref<512x512xf32, #tpu.memory_space<vmem>>, vector<128x512xf32>
    %44 = tpu.iota {dimensions = array<i32: 0>} : vector<128x1xi32>
    %c128_i32 = arith.constant 128 : i32
    %45 = arith.addi %5, %c128_i32 : i32
    %46 = vector.broadcast %45 : i32 to vector<128x1xi32>
    %47 = arith.addi %44, %46 : vector<128x1xi32>
    %c512_i32_20 = arith.constant 512 : i32
    %48 = vector.broadcast %c512_i32_20 : i32 to vector<128x1xi32>
    %49 = arith.cmpi slt, %47, %48 : vector<128x1xi32>
    %cst_21 = arith.constant 0.000000e+00 : f32
    %50 = vector.shape_cast %49 : vector<128x1xi1> to vector<128x1xi1>
    %51 = vector.broadcast %50 : vector<128x1xi1> to vector<128x512xi1>
    %52 = vector.broadcast %cst_21 : f32 to vector<128x512xf32>
    %53 = arith.select %51, %42, %52 : vector<128x512xi1>, vector<128x512xf32>
    %cst_22 = arith.constant 0.000000e+00 : f32
    %54 = vector.shape_cast %49 : vector<128x1xi1> to vector<128x1xi1>
    %55 = vector.broadcast %54 : vector<128x1xi1> to vector<128x512xi1>
    %56 = vector.broadcast %cst_22 : f32 to vector<128x512xf32>
    %57 = arith.select %55, %43, %56 : vector<128x512xi1>, vector<128x512xf32>
    %58 = vector.shape_cast %53 : vector<128x512xf32> to vector<16x8x512xf32>
    %59 = vector.shape_cast %57 : vector<128x512xf32> to vector<16x8x512xf32>
    %cst_23 = arith.constant dense<0.000000e+00> : vector<8x512xf32>
    %60 = vector.multi_reduction <add>, %58, %cst_23 [0] : vector<16x8x512xf32> to vector<8x512xf32>
    %61 = arith.addf %30, %60 : vector<8x512xf32>
    %cst_24 = arith.constant dense<0.000000e+00> : vector<8x512xf32>
    %62 = vector.multi_reduction <add>, %59, %cst_24 [0] : vector<16x8x512xf32> to vector<8x512xf32>
    %63 = arith.addf %32, %62 : vector<8x512xf32>
    %64 = arith.mulf %58, %58 : vector<16x8x512xf32>
    %cst_25 = arith.constant dense<0.000000e+00> : vector<8x512xf32>
    %65 = vector.multi_reduction <add>, %64, %cst_25 [0] : vector<16x8x512xf32> to vector<8x512xf32>
    %66 = arith.addf %35, %65 : vector<8x512xf32>
    %67 = arith.mulf %59, %59 : vector<16x8x512xf32>
    %cst_26 = arith.constant dense<0.000000e+00> : vector<8x512xf32>
    %68 = vector.multi_reduction <add>, %67, %cst_26 [0] : vector<16x8x512xf32> to vector<8x512xf32>
    %69 = arith.addf %38, %68 : vector<8x512xf32>
    %70 = arith.mulf %58, %59 : vector<16x8x512xf32>
    %cst_27 = arith.constant dense<0.000000e+00> : vector<8x512xf32>
    %71 = vector.multi_reduction <add>, %70, %cst_27 [0] : vector<16x8x512xf32> to vector<8x512xf32>
    %72 = arith.addf %41, %71 : vector<8x512xf32>
    %c256 = arith.constant 256 : index
    %c0_28 = arith.constant 0 : index
    %73 = vector.load %arg2[%c256, %c0_28] : memref<512x512xf32, #tpu.memory_space<vmem>>, vector<128x512xf32>
    %c256_29 = arith.constant 256 : index
    %c0_30 = arith.constant 0 : index
    %74 = vector.load %arg3[%c256_29, %c0_30] : memref<512x512xf32, #tpu.memory_space<vmem>>, vector<128x512xf32>
    %75 = tpu.iota {dimensions = array<i32: 0>} : vector<128x1xi32>
    %c256_i32 = arith.constant 256 : i32
    %76 = arith.addi %5, %c256_i32 : i32
    %77 = vector.broadcast %76 : i32 to vector<128x1xi32>
    %78 = arith.addi %75, %77 : vector<128x1xi32>
    %c512_i32_31 = arith.constant 512 : i32
    %79 = vector.broadcast %c512_i32_31 : i32 to vector<128x1xi32>
    %80 = arith.cmpi slt, %78, %79 : vector<128x1xi32>
    %cst_32 = arith.constant 0.000000e+00 : f32
    %81 = vector.shape_cast %80 : vector<128x1xi1> to vector<128x1xi1>
    %82 = vector.broadcast %81 : vector<128x1xi1> to vector<128x512xi1>
    %83 = vector.broadcast %cst_32 : f32 to vector<128x512xf32>
    %84 = arith.select %82, %73, %83 : vector<128x512xi1>, vector<128x512xf32>
    %cst_33 = arith.constant 0.000000e+00 : f32
    %85 = vector.shape_cast %80 : vector<128x1xi1> to vector<128x1xi1>
    %86 = vector.broadcast %85 : vector<128x1xi1> to vector<128x512xi1>
    %87 = vector.broadcast %cst_33 : f32 to vector<128x512xf32>
    %88 = arith.select %86, %74, %87 : vector<128x512xi1>, vector<128x512xf32>
    %89 = vector.shape_cast %84 : vector<128x512xf32> to vector<16x8x512xf32>
    %90 = vector.shape_cast %88 : vector<128x512xf32> to vector<16x8x512xf32>
    %cst_34 = arith.constant dense<0.000000e+00> : vector<8x512xf32>
    %91 = vector.multi_reduction <add>, %89, %cst_34 [0] : vector<16x8x512xf32> to vector<8x512xf32>
    %92 = arith.addf %61, %91 : vector<8x512xf32>
    %cst_35 = arith.constant dense<0.000000e+00> : vector<8x512xf32>
    %93 = vector.multi_reduction <add>, %90, %cst_35 [0] : vector<16x8x512xf32> to vector<8x512xf32>
    %94 = arith.addf %63, %93 : vector<8x512xf32>
    %95 = arith.mulf %89, %89 : vector<16x8x512xf32>
    %cst_36 = arith.constant dense<0.000000e+00> : vector<8x512xf32>
    %96 = vector.multi_reduction <add>, %95, %cst_36 [0] : vector<16x8x512xf32> to vector<8x512xf32>
    %97 = arith.addf %66, %96 : vector<8x512xf32>
    %98 = arith.mulf %90, %90 : vector<16x8x512xf32>
    %cst_37 = arith.constant dense<0.000000e+00> : vector<8x512xf32>
    %99 = vector.multi_reduction <add>, %98, %cst_37 [0] : vector<16x8x512xf32> to vector<8x512xf32>
    %100 = arith.addf %69, %99 : vector<8x512xf32>
    %101 = arith.mulf %89, %90 : vector<16x8x512xf32>
    %cst_38 = arith.constant dense<0.000000e+00> : vector<8x512xf32>
    %102 = vector.multi_reduction <add>, %101, %cst_38 [0] : vector<16x8x512xf32> to vector<8x512xf32>
    %103 = arith.addf %72, %102 : vector<8x512xf32>
    %c384 = arith.constant 384 : index
    %c0_39 = arith.constant 0 : index
    %104 = vector.load %arg2[%c384, %c0_39] : memref<512x512xf32, #tpu.memory_space<vmem>>, vector<128x512xf32>
    %c384_40 = arith.constant 384 : index
    %c0_41 = arith.constant 0 : index
    %105 = vector.load %arg3[%c384_40, %c0_41] : memref<512x512xf32, #tpu.memory_space<vmem>>, vector<128x512xf32>
    %106 = tpu.iota {dimensions = array<i32: 0>} : vector<128x1xi32>
    %c384_i32 = arith.constant 384 : i32
    %107 = arith.addi %5, %c384_i32 : i32
    %108 = vector.broadcast %107 : i32 to vector<128x1xi32>
    %109 = arith.addi %106, %108 : vector<128x1xi32>
    %c512_i32_42 = arith.constant 512 : i32
    %110 = vector.broadcast %c512_i32_42 : i32 to vector<128x1xi32>
    %111 = arith.cmpi slt, %109, %110 : vector<128x1xi32>
    %cst_43 = arith.constant 0.000000e+00 : f32
    %112 = vector.shape_cast %111 : vector<128x1xi1> to vector<128x1xi1>
    %113 = vector.broadcast %112 : vector<128x1xi1> to vector<128x512xi1>
    %114 = vector.broadcast %cst_43 : f32 to vector<128x512xf32>
    %115 = arith.select %113, %104, %114 : vector<128x512xi1>, vector<128x512xf32>
    %cst_44 = arith.constant 0.000000e+00 : f32
    %116 = vector.shape_cast %111 : vector<128x1xi1> to vector<128x1xi1>
    %117 = vector.broadcast %116 : vector<128x1xi1> to vector<128x512xi1>
    %118 = vector.broadcast %cst_44 : f32 to vector<128x512xf32>
    %119 = arith.select %117, %105, %118 : vector<128x512xi1>, vector<128x512xf32>
    %120 = vector.shape_cast %115 : vector<128x512xf32> to vector<16x8x512xf32>
    %121 = vector.shape_cast %119 : vector<128x512xf32> to vector<16x8x512xf32>
    %cst_45 = arith.constant dense<0.000000e+00> : vector<8x512xf32>
    %122 = vector.multi_reduction <add>, %120, %cst_45 [0] : vector<16x8x512xf32> to vector<8x512xf32>
    %123 = arith.addf %92, %122 : vector<8x512xf32>
    %cst_46 = arith.constant dense<0.000000e+00> : vector<8x512xf32>
    %124 = vector.multi_reduction <add>, %121, %cst_46 [0] : vector<16x8x512xf32> to vector<8x512xf32>
    %125 = arith.addf %94, %124 : vector<8x512xf32>
    %126 = arith.mulf %120, %120 : vector<16x8x512xf32>
    %cst_47 = arith.constant dense<0.000000e+00> : vector<8x512xf32>
    %127 = vector.multi_reduction <add>, %126, %cst_47 [0] : vector<16x8x512xf32> to vector<8x512xf32>
    %128 = arith.addf %97, %127 : vector<8x512xf32>
    %129 = arith.mulf %121, %121 : vector<16x8x512xf32>
    %cst_48 = arith.constant dense<0.000000e+00> : vector<8x512xf32>
    %130 = vector.multi_reduction <add>, %129, %cst_48 [0] : vector<16x8x512xf32> to vector<8x512xf32>
    %131 = arith.addf %100, %130 : vector<8x512xf32>
    %132 = arith.mulf %120, %121 : vector<16x8x512xf32>
    %cst_49 = arith.constant dense<0.000000e+00> : vector<8x512xf32>
    %133 = vector.multi_reduction <add>, %132, %cst_49 [0] : vector<16x8x512xf32> to vector<8x512xf32>
    %134 = arith.addf %103, %133 : vector<8x512xf32>
    %c0_50 = arith.constant 0 : index
    %c0_51 = arith.constant 0 : index
    %c0_52 = arith.constant 0 : index
    %135 = vector.load %arg5[%c0_50, %c0_51, %c0_52] : memref<5x8x512xf32, #tpu.memory_space<vmem>>, vector<1x8x512xf32>
    %136 = vector.shape_cast %135 : vector<1x8x512xf32> to vector<8x512xf32>
    %137 = arith.addf %136, %123 : vector<8x512xf32>
    %c0_53 = arith.constant 0 : index
    %c0_54 = arith.constant 0 : index
    %c0_55 = arith.constant 0 : index
    %138 = vector.load %arg5[%c0_53, %c0_54, %c0_55] : memref<5x8x512xf32, #tpu.memory_space<vmem>>, vector<1x8x512xf32>
    %139 = vector.shape_cast %138 : vector<1x8x512xf32> to vector<8x512xf32>
    %140 = vector.shape_cast %137 : vector<8x512xf32> to vector<1x8x512xf32>
    tpu.vector_store %arg5[%c0_53, %c0_54, %c0_55], %140 {strides = array<i32>} : memref<5x8x512xf32, #tpu.memory_space<vmem>>, vector<1x8x512xf32>,
    %c1 = arith.constant 1 : index
    %c0_56 = arith.constant 0 : index
    %c0_57 = arith.constant 0 : index
    %141 = vector.load %arg5[%c1, %c0_56, %c0_57] : memref<5x8x512xf32, #tpu.memory_space<vmem>>, vector<1x8x512xf32>
    %142 = vector.shape_cast %141 : vector<1x8x512xf32> to vector<8x512xf32>
    %143 = arith.addf %142, %125 : vector<8x512xf32>
    %c1_58 = arith.constant 1 : index
    %c0_59 = arith.constant 0 : index
    %c0_60 = arith.constant 0 : index
    %144 = vector.load %arg5[%c1_58, %c0_59, %c0_60] : memref<5x8x512xf32, #tpu.memory_space<vmem>>, vector<1x8x512xf32>
    %145 = vector.shape_cast %144 : vector<1x8x512xf32> to vector<8x512xf32>
    %146 = vector.shape_cast %143 : vector<8x512xf32> to vector<1x8x512xf32>
    tpu.vector_store %arg5[%c1_58, %c0_59, %c0_60], %146 {strides = array<i32>} : memref<5x8x512xf32, #tpu.memory_space<vmem>>, vector<1x8x512xf32>,
    %c2 = arith.constant 2 : index
    %c0_61 = arith.constant 0 : index
    %c0_62 = arith.constant 0 : index
    %147 = vector.load %arg5[%c2, %c0_61, %c0_62] : memref<5x8x512xf32, #tpu.memory_space<vmem>>, vector<1x8x512xf32>
    %148 = vector.shape_cast %147 : vector<1x8x512xf32> to vector<8x512xf32>
    %149 = arith.addf %148, %128 : vector<8x512xf32>
    %c2_63 = arith.constant 2 : index
    %c0_64 = arith.constant 0 : index
    %c0_65 = arith.constant 0 : index
    %150 = vector.load %arg5[%c2_63, %c0_64, %c0_65] : memref<5x8x512xf32, #tpu.memory_space<vmem>>, vector<1x8x512xf32>
    %151 = vector.shape_cast %150 : vector<1x8x512xf32> to vector<8x512xf32>
    %152 = vector.shape_cast %149 : vector<8x512xf32> to vector<1x8x512xf32>
    tpu.vector_store %arg5[%c2_63, %c0_64, %c0_65], %152 {strides = array<i32>} : memref<5x8x512xf32, #tpu.memory_space<vmem>>, vector<1x8x512xf32>,
    %c3 = arith.constant 3 : index
    %c0_66 = arith.constant 0 : index
    %c0_67 = arith.constant 0 : index
    %153 = vector.load %arg5[%c3, %c0_66, %c0_67] : memref<5x8x512xf32, #tpu.memory_space<vmem>>, vector<1x8x512xf32>
    %154 = vector.shape_cast %153 : vector<1x8x512xf32> to vector<8x512xf32>
    %155 = arith.addf %154, %131 : vector<8x512xf32>
    %c3_68 = arith.constant 3 : index
    %c0_69 = arith.constant 0 : index
    %c0_70 = arith.constant 0 : index
    %156 = vector.load %arg5[%c3_68, %c0_69, %c0_70] : memref<5x8x512xf32, #tpu.memory_space<vmem>>, vector<1x8x512xf32>
    %157 = vector.shape_cast %156 : vector<1x8x512xf32> to vector<8x512xf32>
    %158 = vector.shape_cast %155 : vector<8x512xf32> to vector<1x8x512xf32>
    tpu.vector_store %arg5[%c3_68, %c0_69, %c0_70], %158 {strides = array<i32>} : memref<5x8x512xf32, #tpu.memory_space<vmem>>, vector<1x8x512xf32>,
    %c4 = arith.constant 4 : index
    %c0_71 = arith.constant 0 : index
    %c0_72 = arith.constant 0 : index
    %159 = vector.load %arg5[%c4, %c0_71, %c0_72] : memref<5x8x512xf32, #tpu.memory_space<vmem>>, vector<1x8x512xf32>
    %160 = vector.shape_cast %159 : vector<1x8x512xf32> to vector<8x512xf32>
    %161 = arith.addf %160, %134 : vector<8x512xf32>
    %c4_73 = arith.constant 4 : index
    %c0_74 = arith.constant 0 : index
    %c0_75 = arith.constant 0 : index
    %162 = vector.load %arg5[%c4_73, %c0_74, %c0_75] : memref<5x8x512xf32, #tpu.memory_space<vmem>>, vector<1x8x512xf32>
    %163 = vector.shape_cast %162 : vector<1x8x512xf32> to vector<8x512xf32>
    %164 = vector.shape_cast %161 : vector<8x512xf32> to vector<1x8x512xf32>
    tpu.vector_store %arg5[%c4_73, %c0_74, %c0_75], %164 {strides = array<i32>} : memref<5x8x512xf32, #tpu.memory_space<vmem>>, vector<1x8x512xf32>,
    %c0_i32_76 = arith.constant 0 : i32
    %165 = arith.cmpi eq, %arg1, %c0_i32_76 : i32
    %166 = arith.extui %165 : i1 to i32
    %c0_i32_77 = arith.constant 0 : i32
    %167 = arith.cmpi ne, %166, %c0_i32_77 : i32
    scf.if %167 {
      %c0_78 = arith.constant 0 : index
      %c0_79 = arith.constant 0 : index
      %c0_80 = arith.constant 0 : index
      %168 = vector.load %arg5[%c0_78, %c0_79, %c0_80] : memref<5x8x512xf32, #tpu.memory_space<vmem>>, vector<5x8x512xf32>
      %cst_81 = arith.constant dense<0.000000e+00> : vector<5x512xf32>
      %169 = vector.multi_reduction <add>, %168, %cst_81 [1] : vector<5x8x512xf32> to vector<5x512xf32>
      %c0_82 = arith.constant 0 : index
      %c0_83 = arith.constant 0 : index
      %c0_84 = arith.constant 0 : index
      %170 = vector.load %arg4[%c0_82, %c0_83, %c0_84] : memref<1x5x512xf32, #tpu.memory_space<vmem>>, vector<1x5x512xf32>
      %171 = vector.shape_cast %170 : vector<1x5x512xf32> to vector<5x512xf32>
      %172 = vector.shape_cast %169 : vector<5x512xf32> to vector<1x5x512xf32>
      tpu.vector_store %arg4[%c0_82, %c0_83, %c0_84], %172 {strides = array<i32>} : memref<1x5x512xf32, #tpu.memory_space<vmem>>, vector<1x5x512xf32>,
    } else {
    }
    return
  }
  func.func @transform_0(%arg0: i32, %arg1: i32) -> (i32, i32) {
    %c1_i32 = arith.constant 1 : i32
    %0 = arith.muli %arg0, %c1_i32 : i32
    %1 = arith.addi %0, %arg1 : i32
    %c0_i32 = arith.constant 0 : i32
    %2 = arith.minsi %1, %c0_i32 : i32
    %c0_i32_0 = arith.constant 0 : i32
    %c0_i32_1 = arith.constant 0 : i32
    return %2, %c0_i32_0 : i32, i32
  }
  func.func @transform_1(%arg0: i32, %arg1: i32) -> (i32, i32) {
    %c1_i32 = arith.constant 1 : i32
    %0 = arith.muli %arg0, %c1_i32 : i32
    %1 = arith.addi %0, %arg1 : i32
    %c0_i32 = arith.constant 0 : i32
    %2 = arith.minsi %1, %c0_i32 : i32
    %c0_i32_0 = arith.constant 0 : i32
    %c0_i32_1 = arith.constant 0 : i32
    return %2, %c0_i32_0 : i32, i32
  }
  func.func @transform_2(%arg0: i32, %arg1: i32) -> (i32, i32, i32) {
    %c0_i32 = arith.constant 0 : i32
    %c0_i32_0 = arith.constant 0 : i32
    %c0_i32_1 = arith.constant 0 : i32
    return %arg0, %c0_i32, %c0_i32_0 : i32, i32, i32
  }
}

</mosaic_0001>

<llo_original>
// kernel: tpu_custom_call.1
$region0: #{tpu_custom_call.1}
  #allocation0 [shape = 'u32[]', space=smem, size = 0x4, offset = 0x4, fixed_abs, tag = 'smem constant byte address 0x4 - core index']
  #allocation1 [shape = 'u32[144,128]{1,0:T(1,128)}', space=vmem, size = 0x12000, scoped, tag = 'internal scratch']
  #allocation2 [shape = 'f32[5,8,512]{2,1,0:T(8,128)}', space=vmem, size = 0x14000, scoped, tag = 'scratch operand']
  %s0 = inlined_call_operand.hbm [shape: f32[512,512], index: 0, kind: input, shape index: {}]
  %s1 = inlined_call_operand.hbm [shape: f32[512,512], index: 1, kind: input, shape index: {}]
  %s2 = inlined_call_operand.vmem [shape: f32[1,5,512], index: 2, kind: output, shape index: {}]
  %s3 = sld [smem:[#allocation0]]
  $region34: #{tpu_custom_call.1} parent=0
    _
  %s5 = ssub.s32 1, %s3
  %s6 = scalar_select 0, %s5, %s3
  $region1: #{tpu_custom_call.1} parent=0
    #allocation3 [shape = 'u8[1048576]{0}', space=vmem, size = 0x100000, scoped, tag = 'input window, operand 0, single buffered']
    #allocation4 [shape = 's32[1]{0}', space=sflag, size = 0x4, scoped, tag = 'scoped memory for tpu_custom_call.1']
    #allocation5 [shape = 'u8[1048576]{0}', space=vmem, size = 0x100000, scoped, tag = 'input window, operand 1, single buffered']
    #allocation6 [shape = 's32[1]{0}', space=sflag, size = 0x4, scoped, tag = 'scoped memory for tpu_custom_call.1']
    %7 = vsyncpa [#allocation4], 0
    %8 = vsyncpa [#allocation6], 0
    // Predicated region
    $region2: #{tpu_custom_call.1} parent=1 // pred_check
      _
    $region3: #{tpu_custom_call.1} parent=1 // pred_check_branch
      %10 = sbr.rel (0) target = $region5
    $region4: #{tpu_custom_call.1} parent=1 // pred_region
      %s11 = sadd.s32 0, 0
      %p12 = scmp.lt.s32.totalorder %s11, 0
      %s13 = scalar_select %p12, %s11, 0
      %s14 = smul.u32 64, %s13
      %s16 = ssub.s32 32768, 32768
      %17 = vsyncadd [#allocation4], %s16
      %s18 = smul.addr %s14, 4
      %s19 = smul.addr %s18, 128
      %s20 = scalar_lea.hbm %s0, %s19
      %s21 = sshll.u32 [#allocation3], 4
      %s22 = int_to_ptr.vmem [resolvable:$true] %s21
      %27 = dma.hbm_to_vmem [thread:$0]  %s20, 32768, %s22, [#allocation4], 512, 512, 32
    $region5: #{tpu_custom_call.1} parent=1 // pred_fallthru
      _
    // Predicated region
    $region6: #{tpu_custom_call.1} parent=1 // pred_check
      _
    $region7: #{tpu_custom_call.1} parent=1 // pred_check_branch
      %29 = sbr.rel (0) target = $region9
    $region8: #{tpu_custom_call.1} parent=1 // pred_region
      %s30 = sadd.s32 0, 0
      %p31 = scmp.lt.s32.totalorder %s30, 0
      %s32 = scalar_select %p31, %s30, 0
      %s33 = smul.u32 64, %s32
      %s35 = ssub.s32 32768, 32768
      %36 = vsyncadd [#allocation6], %s35
      %s37 = smul.addr %s33, 4
      %s38 = smul.addr %s37, 128
      %s39 = scalar_lea.hbm %s1, %s38
      %s40 = sshll.u32 [#allocation5], 4
      %s41 = int_to_ptr.vmem [resolvable:$true] %s40
      %46 = dma.hbm_to_vmem [thread:$0]  %s39, 32768, %s41, [#allocation6], 512, 512, 32
    $region9: #{tpu_custom_call.1} parent=1 // pred_fallthru
      _
    // Predicated region
    $region10: #{tpu_custom_call.1} parent=1 // pred_check
      _
    $region11: #{tpu_custom_call.1} parent=1 // pred_check_branch
      %48 = sbr.rel (0) target = $region13
    $region12: #{tpu_custom_call.1} parent=1 // pred_region
      %49 = dma.done [#allocation4], 32768
    $region13: #{tpu_custom_call.1} parent=1 // pred_fallthru
      _
    // Predicated region
    $region14: #{tpu_custom_call.1} parent=1 // pred_check
      _
    $region15: #{tpu_custom_call.1} parent=1 // pred_check_branch
      %51 = sbr.rel (0) target = $region17
    $region16: #{tpu_custom_call.1} parent=1 // pred_region
      %52 = dma.done [#allocation6], 32768
    $region17: #{tpu_custom_call.1} parent=1 // pred_fallthru
      _
    %s53 = sadd.s32 0, 0
    %p54 = scmp.lt.s32.totalorder %s53, 0
    %s55 = scalar_select %p54, %s53, 0
    %s56 = smul.u32 64, %s55
    %s57 = sadd.s32 0, 0
    %p58 = scmp.lt.s32.totalorder %s57, 0
    %s59 = scalar_select %p58, %s57, 0
    %s60 = smul.u32 64, %s59
    %p61 = scmp.eq.s32.totalorder 0, 0
    // Predicated region
    $region18: #{tpu_custom_call.1} parent=1 // pred_check
      %p62 = pneg %p61
    $region19: #{tpu_custom_call.1} parent=1 // pred_check_branch
      %64 = sbr.rel (%p62) target = $region21
    $region20: #{tpu_custom_call.1} parent=1 // pred_region
      %65 = vst [vmem:[#allocation2] sm:$0xff] 0.0
      %66 = vst [vmem:[#allocation2 + $0x8] sm:$0xff] 0.0
      %67 = vst [vmem:[#allocation2 + $0x10] sm:$0xff] 0.0
      %68 = vst [vmem:[#allocation2 + $0x18] sm:$0xff] 0.0
      %69 = vst [vmem:[#allocation2 + $0x20] sm:$0xff] 0.0
      %70 = vst [vmem:[#allocation2 + $0x28] sm:$0xff] 0.0
      %71 = vst [vmem:[#allocation2 + $0x30] sm:$0xff] 0.0
      %72 = vst [vmem:[#allocation2 + $0x38] sm:$0xff] 0.0
      %73 = vst [vmem:[#allocation2 + $0x40] sm:$0xff] 0.0
      %74 = vst [vmem:[#allocation2 + $0x48] sm:$0xff] 0.0
      %75 = vst [vmem:[#allocation2 + $0x50] sm:$0xff] 0.0
      %76 = vst [vmem:[#allocation2 + $0x58] sm:$0xff] 0.0
      %77 = vst [vmem:[#allocation2 + $0x60] sm:$0xff] 0.0
      %78 = vst [vmem:[#allocation2 + $0x68] sm:$0xff] 0.0
      %79 = vst [vmem:[#allocation2 + $0x70] sm:$0xff] 0.0
      %80 = vst [vmem:[#allocation2 + $0x78] sm:$0xff] 0.0
      %81 = vst [vmem:[#allocation2 + $0x80] sm:$0xff] 0.0
      %82 = vst [vmem:[#allocation2 + $0x88] sm:$0xff] 0.0
      %83 = vst [vmem:[#allocation2 + $0x90] sm:$0xff] 0.0
      %84 = vst [vmem:[#allocation2 + $0x98] sm:$0xff] 0.0
    $region21: #{tpu_custom_call.1} parent=1 // pred_fallthru
      _
    %s85 = sadd.s32 0, 0
    %s86 = smul.u32 %s85, 512
    %v87 = vld [vmem:[#allocation3] sm:$0xff]
    %v88 = vld [vmem:[#allocation3 + $0x8] sm:$0xff]
    %v89 = vld [vmem:[#allocation3 + $0x10] sm:$0xff]
    %v90 = vld [vmem:[#allocation3 + $0x18] sm:$0xff]
    %v91 = vld [vmem:[#allocation3 + $0x20] sm:$0xff]
    %v92 = vld [vmem:[#allocation3 + $0x28] sm:$0xff]
    %v93 = vld [vmem:[#allocation3 + $0x30] sm:$0xff]
    %v94 = vld [vmem:[#allocation3 + $0x38] sm:$0xff]
    %v95 = vld [vmem:[#allocation3 + $0x40] sm:$0xff]
    %v96 = vld [vmem:[#allocation3 + $0x48] sm:$0xff]
    %v97 = vld [vmem:[#allocation3 + $0x50] sm:$0xff]
    %v98 = vld [vmem:[#allocation3 + $0x58] sm:$0xff]
    %v99 = vld [vmem:[#allocation3 + $0x60] sm:$0xff]
    %v100 = vld [vmem:[#allocation3 + $0x68] sm:$0xff]
    %v101 = vld [vmem:[#allocation3 + $0x70] sm:$0xff]
    %v102 = vld [vmem:[#allocation3 + $0x78] sm:$0xff]
    %v103 = vld [vmem:[#allocation3 + $0x80] sm:$0xff]
    %v104 = vld [vmem:[#allocation3 + $0x88] sm:$0xff]
    %v105 = vld [vmem:[#allocation3 + $0x90] sm:$0xff]
    %v106 = vld [vmem:[#allocation3 + $0x98] sm:$0xff]
    %v107 = vld [vmem:[#allocation3 + $0xa0] sm:$0xff]
    %v108 = vld [vmem:[#allocation3 + $0xa8] sm:$0xff]
    %v109 = vld [vmem:[#allocation3 + $0xb0] sm:$0xff]
    %v110 = vld [vmem:[#allocation3 + $0xb8] sm:$0xff]
    %v111 = vld [vmem:[#allocation3 + $0xc0] sm:$0xff]
    %v112 = vld [vmem:[#allocation3 + $0xc8] sm:$0xff]
    %v113 = vld [vmem:[#allocation3 + $0xd0] sm:$0xff]
    %v114 = vld [vmem:[#allocation3 + $0xd8] sm:$0xff]
    %v115 = vld [vmem:[#allocation3 + $0xe0] sm:$0xff]
    %v116 = vld [vmem:[#allocation3 + $0xe8] sm:$0xff]
    %v117 = vld [vmem:[#allocation3 + $0xf0] sm:$0xff]
    %v118 = vld [vmem:[#allocation3 + $0xf8] sm:$0xff]
    %v119 = vld [vmem:[#allocation3 + $0x100] sm:$0xff]
    %v120 = vld [vmem:[#allocation3 + $0x108] sm:$0xff]
    %v121 = vld [vmem:[#allocation3 + $0x110] sm:$0xff]
    %v122 = vld [vmem:[#allocation3 + $0x118] sm:$0xff]
    %v123 = vld [vmem:[#allocation3 + $0x120] sm:$0xff]
    %v124 = vld [vmem:[#allocation3 + $0x128] sm:$0xff]
    %v125 = vld [vmem:[#allocation3 + $0x130] sm:$0xff]
    %v126 = vld [vmem:[#allocation3 + $0x138] sm:$0xff]
    %v127 = vld [vmem:[#allocation3 + $0x140] sm:$0xff]
    %v128 = vld [vmem:[#allocation3 + $0x148] sm:$0xff]
    %v129 = vld [vmem:[#allocation3 + $0x150] sm:$0xff]
    %v130 = vld [vmem:[#allocation3 + $0x158] sm:$0xff]
    %v131 = vld [vmem:[#allocation3 + $0x160] sm:$0xff]
    %v132 = vld [vmem:[#allocation3 + $0x168] sm:$0xff]
    %v133 = vld [vmem:[#allocation3 + $0x170] sm:$0xff]
    %v134 = vld [vmem:[#allocation3 + $0x178] sm:$0xff]
    %v135 = vld [vmem:[#allocation3 + $0x180] sm:$0xff]
    %v136 = vld [vmem:[#allocation3 + $0x188] sm:$0xff]
    %v137 = vld [vmem:[#allocation3 + $0x190] sm:$0xff]
    %v138 = vld [vmem:[#allocation3 + $0x198] sm:$0xff]
    %v139 = vld [vmem:[#allocation3 + $0x1a0] sm:$0xff]
    %v140 = vld [vmem:[#allocation3 + $0x1a8] sm:$0xff]
    %v141 = vld [vmem:[#allocation3 + $0x1b0] sm:$0xff]
    %v142 = vld [vmem:[#allocation3 + $0x1b8] sm:$0xff]
    %v143 = vld [vmem:[#allocation3 + $0x1c0] sm:$0xff]
    %v144 = vld [vmem:[#allocation3 + $0x1c8] sm:$0xff]
    %v145 = vld [vmem:[#allocation3 + $0x1d0] sm:$0xff]
    %v146 = vld [vmem:[#allocation3 + $0x1d8] sm:$0xff]
    %v147 = vld [vmem:[#allocation3 + $0x1e0] sm:$0xff]
    %v148 = vld [vmem:[#allocation3 + $0x1e8] sm:$0xff]
    %v149 = vld [vmem:[#allocation3 + $0x1f0] sm:$0xff]
    %v150 = vld [vmem:[#allocation3 + $0x1f8] sm:$0xff]
    %v151 = vld [vmem:[#allocation5] sm:$0xff]
    %v152 = vld [vmem:[#allocation5 + $0x8] sm:$0xff]
    %v153 = vld [vmem:[#allocation5 + $0x10] sm:$0xff]
    %v154 = vld [vmem:[#allocation5 + $0x18] sm:$0xff]
    %v155 = vld [vmem:[#allocation5 + $0x20] sm:$0xff]
    %v156 = vld [vmem:[#allocation5 + $0x28] sm:$0xff]
    %v157 = vld [vmem:[#allocation5 + $0x30] sm:$0xff]
    %v158 = vld [vmem:[#allocation5 + $0x38] sm:$0xff]
    %v159 = vld [vmem:[#allocation5 + $0x40] sm:$0xff]
    %v160 = vld [vmem:[#allocation5 + $0x48] sm:$0xff]
    %v161 = vld [vmem:[#allocation5 + $0x50] sm:$0xff]
    %v162 = vld [vmem:[#allocation5 + $0x58] sm:$0xff]
    %v163 = vld [vmem:[#allocation5 + $0x60] sm:$0xff]
    %v164 = vld [vmem:[#allocation5 + $0x68] sm:$0xff]
    %v165 = vld [vmem:[#allocation5 + $0x70] sm:$0xff]
    %v166 = vld [vmem:[#allocation5 + $0x78] sm:$0xff]
    %v167 = vld [vmem:[#allocation5 + $0x80] sm:$0xff]
    %v168 = vld [vmem:[#allocation5 + $0x88] sm:$0xff]
    %v169 = vld [vmem:[#allocation5 + $0x90] sm:$0xff]
    %v170 = vld [vmem:[#allocation5 + $0x98] sm:$0xff]
    %v171 = vld [vmem:[#allocation5 + $0xa0] sm:$0xff]
    %v172 = vld [vmem:[#allocation5 + $0xa8] sm:$0xff]
    %v173 = vld [vmem:[#allocation5 + $0xb0] sm:$0xff]
    %v174 = vld [vmem:[#allocation5 + $0xb8] sm:$0xff]
    %v175 = vld [vmem:[#allocation5 + $0xc0] sm:$0xff]
    %v176 = vld [vmem:[#allocation5 + $0xc8] sm:$0xff]
    %v177 = vld [vmem:[#allocation5 + $0xd0] sm:$0xff]
    %v178 = vld [vmem:[#allocation5 + $0xd8] sm:$0xff]
    %v179 = vld [vmem:[#allocation5 + $0xe0] sm:$0xff]
    %v180 = vld [vmem:[#allocation5 + $0xe8] sm:$0xff]
    %v181 = vld [vmem:[#allocation5 + $0xf0] sm:$0xff]
    %v182 = vld [vmem:[#allocation5 + $0xf8] sm:$0xff]
    %v183 = vld [vmem:[#allocation5 + $0x100] sm:$0xff]
    %v184 = vld [vmem:[#allocation5 + $0x108] sm:$0xff]
    %v185 = vld [vmem:[#allocation5 + $0x110] sm:$0xff]
    %v186 = vld [vmem:[#allocation5 + $0x118] sm:$0xff]
    %v187 = vld [vmem:[#allocation5 + $0x120] sm:$0xff]
    %v188 = vld [vmem:[#allocation5 + $0x128] sm:$0xff]
    %v189 = vld [vmem:[#allocation5 + $0x130] sm:$0xff]
    %v190 = vld [vmem:[#allocation5 + $0x138] sm:$0xff]
    %v191 = vld [vmem:[#allocation5 + $0x140] sm:$0xff]
    %v192 = vld [vmem:[#allocation5 + $0x148] sm:$0xff]
    %v193 = vld [vmem:[#allocation5 + $0x150] sm:$0xff]
    %v194 = vld [vmem:[#allocation5 + $0x158] sm:$0xff]
    %v195 = vld [vmem:[#allocation5 + $0x160] sm:$0xff]
    %v196 = vld [vmem:[#allocation5 + $0x168] sm:$0xff]
    %v197 = vld [vmem:[#allocation5 + $0x170] sm:$0xff]
    %v198 = vld [vmem:[#allocation5 + $0x178] sm:$0xff]
    %v199 = vld [vmem:[#allocation5 + $0x180] sm:$0xff]
    %v200 = vld [vmem:[#allocation5 + $0x188] sm:$0xff]
    %v201 = vld [vmem:[#allocation5 + $0x190] sm:$0xff]
    %v202 = vld [vmem:[#allocation5 + $0x198] sm:$0xff]
    %v203 = vld [vmem:[#allocation5 + $0x1a0] sm:$0xff]
    %v204 = vld [vmem:[#allocation5 + $0x1a8] sm:$0xff]
    %v205 = vld [vmem:[#allocation5 + $0x1b0] sm:$0xff]
    %v206 = vld [vmem:[#allocation5 + $0x1b8] sm:$0xff]
    %v207 = vld [vmem:[#allocation5 + $0x1c0] sm:$0xff]
    %v208 = vld [vmem:[#allocation5 + $0x1c8] sm:$0xff]
    %v209 = vld [vmem:[#allocation5 + $0x1d0] sm:$0xff]
    %v210 = vld [vmem:[#allocation5 + $0x1d8] sm:$0xff]
    %v211 = vld [vmem:[#allocation5 + $0x1e0] sm:$0xff]
    %v212 = vld [vmem:[#allocation5 + $0x1e8] sm:$0xff]
    %v213 = vld [vmem:[#allocation5 + $0x1f0] sm:$0xff]
    %v214 = vld [vmem:[#allocation5 + $0x1f8] sm:$0xff]
    %v215 = vlaneseq
    %v216 = vshrl.u32 %v215, 7
    %v217 = vadd.s32 %v216, 8
    %v218 = vadd.s32 %v216, 16
    %v219 = vadd.s32 %v216, 24
    %v220 = vadd.s32 %v216, 32
    %v221 = vadd.s32 %v216, 40
    %v222 = vadd.s32 %v216, 48
    %v223 = vadd.s32 %v216, 56
    %v224 = vadd.s32 %v216, 64
    %v225 = vadd.s32 %v216, 72
    %v226 = vadd.s32 %v216, 80
    %v227 = vadd.s32 %v216, 88
    %v228 = vadd.s32 %v216, 96
    %v229 = vadd.s32 %v216, 104
    %v230 = vadd.s32 %v216, 112
    %v231 = vadd.s32 %v216, 120
    %v232 = vstv %s86
    %v233 = vadd.s32 %v216, %v232
    %v234 = vadd.s32 %v217, %v232
    %v235 = vadd.s32 %v218, %v232
    %v236 = vadd.s32 %v219, %v232
    %v237 = vadd.s32 %v220, %v232
    %v238 = vadd.s32 %v221, %v232
    %v239 = vadd.s32 %v222, %v232
    %v240 = vadd.s32 %v223, %v232
    %v241 = vadd.s32 %v224, %v232
    %v242 = vadd.s32 %v225, %v232
    %v243 = vadd.s32 %v226, %v232
    %v244 = vadd.s32 %v227, %v232
    %v245 = vadd.s32 %v228, %v232
    %v246 = vadd.s32 %v229, %v232
    %v247 = vadd.s32 %v230, %v232
    %v248 = vadd.s32 %v231, %v232
    %vm249 = vcmp.lt.s32.totalorder %v233, 512
    %vm250 = vcmp.lt.s32.totalorder %v234, 512
    %vm251 = vcmp.lt.s32.totalorder %v235, 512
    %vm252 = vcmp.lt.s32.totalorder %v236, 512
    %vm253 = vcmp.lt.s32.totalorder %v237, 512
    %vm254 = vcmp.lt.s32.totalorder %v238, 512
    %vm255 = vcmp.lt.s32.totalorder %v239, 512
    %vm256 = vcmp.lt.s32.totalorder %v240, 512
    %vm257 = vcmp.lt.s32.totalorder %v241, 512
    %vm258 = vcmp.lt.s32.totalorder %v242, 512
    %vm259 = vcmp.lt.s32.totalorder %v243, 512
    %vm260 = vcmp.lt.s32.totalorder %v244, 512
    %vm261 = vcmp.lt.s32.totalorder %v245, 512
    %vm262 = vcmp.lt.s32.totalorder %v246, 512
    %vm263 = vcmp.lt.s32.totalorder %v247, 512
    %vm264 = vcmp.lt.s32.totalorder %v248, 512
    %v265 = vsel %vm249, 1, 0
    %v266 = vsel %vm250, 1, 0
    %v267 = vsel %vm251, 1, 0
    %v268 = vsel %vm252, 1, 0
    %v269 = vsel %vm253, 1, 0
    %v270 = vsel %vm254, 1, 0
    %v271 = vsel %vm255, 1, 0
    %v272 = vsel %vm256, 1, 0
    %v273 = vsel %vm257, 1, 0
    %v274 = vsel %vm258, 1, 0
    %v275 = vsel %vm259, 1, 0
    %v276 = vsel %vm260, 1, 0
    %v277 = vsel %vm261, 1, 0
    %v278 = vsel %vm262, 1, 0
    %v279 = vsel %vm263, 1, 0
    %v280 = vsel %vm264, 1, 0
    %vm281 = vcmp.eq.s32.totalorder %v265, 1
    %vm282 = vcmp.eq.s32.totalorder %v266, 1
    %vm283 = vcmp.eq.s32.totalorder %v267, 1
    %vm284 = vcmp.eq.s32.totalorder %v268, 1
    %vm285 = vcmp.eq.s32.totalorder %v269, 1
    %vm286 = vcmp.eq.s32.totalorder %v270, 1
    %vm287 = vcmp.eq.s32.totalorder %v271, 1
    %vm288 = vcmp.eq.s32.totalorder %v272, 1
    %vm289 = vcmp.eq.s32.totalorder %v273, 1
    %vm290 = vcmp.eq.s32.totalorder %v274, 1
    %vm291 = vcmp.eq.s32.totalorder %v275, 1
    %vm292 = vcmp.eq.s32.totalorder %v276, 1
    %vm293 = vcmp.eq.s32.totalorder %v277, 1
    %vm294 = vcmp.eq.s32.totalorder %v278, 1
    %vm295 = vcmp.eq.s32.totalorder %v279, 1
    %vm296 = vcmp.eq.s32.totalorder %v280, 1
    %v297 = vsel %vm281, %v87, 0.0
    %v298 = vsel %vm281, %v88, 0.0
    %v299 = vsel %vm281, %v89, 0.0
    %v300 = vsel %vm281, %v90, 0.0
    %v301 = vsel %vm282, %v91, 0.0
    %v302 = vsel %vm282, %v92, 0.0
    %v303 = vsel %vm282, %v93, 0.0
    %v304 = vsel %vm282, %v94, 0.0
    %v305 = vsel %vm283, %v95, 0.0
    %v306 = vsel %vm283, %v96, 0.0
    %v307 = vsel %vm283, %v97, 0.0
    %v308 = vsel %vm283, %v98, 0.0
    %v309 = vsel %vm284, %v99, 0.0
    %v310 = vsel %vm284, %v100, 0.0
    %v311 = vsel %vm284, %v101, 0.0
    %v312 = vsel %vm284, %v102, 0.0
    %v313 = vsel %vm285, %v103, 0.0
    %v314 = vsel %vm285, %v104, 0.0
    %v315 = vsel %vm285, %v105, 0.0
    %v316 = vsel %vm285, %v106, 0.0
    %v317 = vsel %vm286, %v107, 0.0
    %v318 = vsel %vm286, %v108, 0.0
    %v319 = vsel %vm286, %v109, 0.0
    %v320 = vsel %vm286, %v110, 0.0
    %v321 = vsel %vm287, %v111, 0.0
    %v322 = vsel %vm287, %v112, 0.0
    %v323 = vsel %vm287, %v113, 0.0
    %v324 = vsel %vm287, %v114, 0.0
    %v325 = vsel %vm288, %v115, 0.0
    %v326 = vsel %vm288, %v116, 0.0
    %v327 = vsel %vm288, %v117, 0.0
    %v328 = vsel %vm288, %v118, 0.0
    %v329 = vsel %vm289, %v119, 0.0
    %v330 = vsel %vm289, %v120, 0.0
    %v331 = vsel %vm289, %v121, 0.0
    %v332 = vsel %vm289, %v122, 0.0
    %v333 = vsel %vm290, %v123, 0.0
    %v334 = vsel %vm290, %v124, 0.0
    %v335 = vsel %vm290, %v125, 0.0
    %v336 = vsel %vm290, %v126, 0.0
    %v337 = vsel %vm291, %v127, 0.0
    %v338 = vsel %vm291, %v128, 0.0
    %v339 = vsel %vm291, %v129, 0.0
    %v340 = vsel %vm291, %v130, 0.0
    %v341 = vsel %vm292, %v131, 0.0
    %v342 = vsel %vm292, %v132, 0.0
    %v343 = vsel %vm292, %v133, 0.0
    %v344 = vsel %vm292, %v134, 0.0
    %v345 = vsel %vm293, %v135, 0.0
    %v346 = vsel %vm293, %v136, 0.0
    %v347 = vsel %vm293, %v137, 0.0
    %v348 = vsel %vm293, %v138, 0.0
    %v349 = vsel %vm294, %v139, 0.0
    %v350 = vsel %vm294, %v140, 0.0
    %v351 = vsel %vm294, %v141, 0.0
    %v352 = vsel %vm294, %v142, 0.0
    %v353 = vsel %vm295, %v143, 0.0
    %v354 = vsel %vm295, %v144, 0.0
    %v355 = vsel %vm295, %v145, 0.0
    %v356 = vsel %vm295, %v146, 0.0
    %v357 = vsel %vm296, %v147, 0.0
    %v358 = vsel %vm296, %v148, 0.0
    %v359 = vsel %vm296, %v149, 0.0
    %v360 = vsel %vm296, %v150, 0.0
    %v361 = vsel %vm281, %v151, 0.0
    %v362 = vsel %vm281, %v152, 0.0
    %v363 = vsel %vm281, %v153, 0.0
    %v364 = vsel %vm281, %v154, 0.0
    %v365 = vsel %vm282, %v155, 0.0
    %v366 = vsel %vm282, %v156, 0.0
    %v367 = vsel %vm282, %v157, 0.0
    %v368 = vsel %vm282, %v158, 0.0
    %v369 = vsel %vm283, %v159, 0.0
    %v370 = vsel %vm283, %v160, 0.0
    %v371 = vsel %vm283, %v161, 0.0
    %v372 = vsel %vm283, %v162, 0.0
    %v373 = vsel %vm284, %v163, 0.0
    %v374 = vsel %vm284, %v164, 0.0
    %v375 = vsel %vm284, %v165, 0.0
    %v376 = vsel %vm284, %v166, 0.0
    %v377 = vsel %vm285, %v167, 0.0
    %v378 = vsel %vm285, %v168, 0.0
    %v379 = vsel %vm285, %v169, 0.0
    %v380 = vsel %vm285, %v170, 0.0
    %v381 = vsel %vm286, %v171, 0.0
    %v382 = vsel %vm286, %v172, 0.0
    %v383 = vsel %vm286, %v173, 0.0
    %v384 = vsel %vm286, %v174, 0.0
    %v385 = vsel %vm287, %v175, 0.0
    %v386 = vsel %vm287, %v176, 0.0
    %v387 = vsel %vm287, %v177, 0.0
    %v388 = vsel %vm287, %v178, 0.0
    %v389 = vsel %vm288, %v179, 0.0
    %v390 = vsel %vm288, %v180, 0.0
    %v391 = vsel %vm288, %v181, 0.0
    %v392 = vsel %vm288, %v182, 0.0
    %v393 = vsel %vm289, %v183, 0.0
    %v394 = vsel %vm289, %v184, 0.0
    %v395 = vsel %vm289, %v185, 0.0
    %v396 = vsel %vm289, %v186, 0.0
    %v397 = vsel %vm290, %v187, 0.0
    %v398 = vsel %vm290, %v188, 0.0
    %v399 = vsel %vm290, %v189, 0.0
    %v400 = vsel %vm290, %v190, 0.0
    %v401 = vsel %vm291, %v191, 0.0
    %v402 = vsel %vm291, %v192, 0.0
    %v403 = vsel %vm291, %v193, 0.0
    %v404 = vsel %vm291, %v194, 0.0
    %v405 = vsel %vm292, %v195, 0.0
    %v406 = vsel %vm292, %v196, 0.0
    %v407 = vsel %vm292, %v197, 0.0
    %v408 = vsel %vm292, %v198, 0.0
    %v409 = vsel %vm293, %v199, 0.0
    %v410 = vsel %vm293, %v200, 0.0
    %v411 = vsel %vm293, %v201, 0.0
    %v412 = vsel %vm293, %v202, 0.0
    %v413 = vsel %vm294, %v203, 0.0
    %v414 = vsel %vm294, %v204, 0.0
    %v415 = vsel %vm294, %v205, 0.0
    %v416 = vsel %vm294, %v206, 0.0
    %v417 = vsel %vm295, %v207, 0.0
    %v418 = vsel %vm295, %v208, 0.0
    %v419 = vsel %vm295, %v209, 0.0
    %v420 = vsel %vm295, %v210, 0.0
    %v421 = vsel %vm296, %v211, 0.0
    %v422 = vsel %vm296, %v212, 0.0
    %v423 = vsel %vm296, %v213, 0.0
    %v424 = vsel %vm296, %v214, 0.0
    %v425 = vadd.f32 %v297, %v301
    %v426 = vadd.f32 %v425, %v305
    %v427 = vadd.f32 %v426, %v309
    %v428 = vadd.f32 %v427, %v313
    %v429 = vadd.f32 %v428, %v317
    %v430 = vadd.f32 %v429, %v321
    %v431 = vadd.f32 %v430, %v325
    %v432 = vadd.f32 %v431, %v329
    %v433 = vadd.f32 %v432, %v333
    %v434 = vadd.f32 %v433, %v337
    %v435 = vadd.f32 %v434, %v341
    %v436 = vadd.f32 %v435, %v345
    %v437 = vadd.f32 %v436, %v349
    %v438 = vadd.f32 %v437, %v353
    %v439 = vadd.f32 %v438, %v357
    %v440 = vadd.f32 %v298, %v302
    %v441 = vadd.f32 %v440, %v306
    %v442 = vadd.f32 %v441, %v310
    %v443 = vadd.f32 %v442, %v314
    %v444 = vadd.f32 %v443, %v318
    %v445 = vadd.f32 %v444, %v322
    %v446 = vadd.f32 %v445, %v326
    %v447 = vadd.f32 %v446, %v330
    %v448 = vadd.f32 %v447, %v334
    %v449 = vadd.f32 %v448, %v338
    %v450 = vadd.f32 %v449, %v342
    %v451 = vadd.f32 %v450, %v346
    %v452 = vadd.f32 %v451, %v350
    %v453 = vadd.f32 %v452, %v354
    %v454 = vadd.f32 %v453, %v358
    %v455 = vadd.f32 %v299, %v303
    %v456 = vadd.f32 %v455, %v307
    %v457 = vadd.f32 %v456, %v311
    %v458 = vadd.f32 %v457, %v315
    %v459 = vadd.f32 %v458, %v319
    %v460 = vadd.f32 %v459, %v323
    %v461 = vadd.f32 %v460, %v327
    %v462 = vadd.f32 %v461, %v331
    %v463 = vadd.f32 %v462, %v335
    %v464 = vadd.f32 %v463, %v339
    %v465 = vadd.f32 %v464, %v343
    %v466 = vadd.f32 %v465, %v347
    %v467 = vadd.f32 %v466, %v351
    %v468 = vadd.f32 %v467, %v355
    %v469 = vadd.f32 %v468, %v359
    %v470 = vadd.f32 %v300, %v304
    %v471 = vadd.f32 %v470, %v308
    %v472 = vadd.f32 %v471, %v312
    %v473 = vadd.f32 %v472, %v316
    %v474 = vadd.f32 %v473, %v320
    %v475 = vadd.f32 %v474, %v324
    %v476 = vadd.f32 %v475, %v328
    %v477 = vadd.f32 %v476, %v332
    %v478 = vadd.f32 %v477, %v336
    %v479 = vadd.f32 %v478, %v340
    %v480 = vadd.f32 %v479, %v344
    %v481 = vadd.f32 %v480, %v348
    %v482 = vadd.f32 %v481, %v352
    %v483 = vadd.f32 %v482, %v356
    %v484 = vadd.f32 %v483, %v360
    %v485 = vadd.f32 %v439, 0.0
    %v486 = vadd.f32 %v454, 0.0
    %v487 = vadd.f32 %v469, 0.0
    %v488 = vadd.f32 %v484, 0.0
    %v489 = vadd.f32 %v361, %v365
    %v490 = vadd.f32 %v489, %v369
    %v491 = vadd.f32 %v490, %v373
    %v492 = vadd.f32 %v491, %v377
    %v493 = vadd.f32 %v492, %v381
    %v494 = vadd.f32 %v493, %v385
    %v495 = vadd.f32 %v494, %v389
    %v496 = vadd.f32 %v495, %v393
    %v497 = vadd.f32 %v496, %v397
    %v498 = vadd.f32 %v497, %v401
    %v499 = vadd.f32 %v498, %v405
    %v500 = vadd.f32 %v499, %v409
    %v501 = vadd.f32 %v500, %v413
    %v502 = vadd.f32 %v501, %v417
    %v503 = vadd.f32 %v502, %v421
    %v504 = vadd.f32 %v362, %v366
    %v505 = vadd.f32 %v504, %v370
    %v506 = vadd.f32 %v505, %v374
    %v507 = vadd.f32 %v506, %v378
    %v508 = vadd.f32 %v507, %v382
    %v509 = vadd.f32 %v508, %v386
    %v510 = vadd.f32 %v509, %v390
    %v511 = vadd.f32 %v510, %v394
    %v512 = vadd.f32 %v511, %v398
    %v513 = vadd.f32 %v512, %v402
    %v514 = vadd.f32 %v513, %v406
    %v515 = vadd.f32 %v514, %v410
    %v516 = vadd.f32 %v515, %v414
    %v517 = vadd.f32 %v516, %v418
    %v518 = vadd.f32 %v517, %v422
    %v519 = vadd.f32 %v363, %v367
    %v520 = vadd.f32 %v519, %v371
    %v521 = vadd.f32 %v520, %v375
    %v522 = vadd.f32 %v521, %v379
    %v523 = vadd.f32 %v522, %v383
    %v524 = vadd.f32 %v523, %v387
    %v525 = vadd.f32 %v524, %v391
    %v526 = vadd.f32 %v525, %v395
    %v527 = vadd.f32 %v526, %v399
    %v528 = vadd.f32 %v527, %v403
    %v529 = vadd.f32 %v528, %v407
    %v530 = vadd.f32 %v529, %v411
    %v531 = vadd.f32 %v530, %v415
    %v532 = vadd.f32 %v531, %v419
    %v533 = vadd.f32 %v532, %v423
    %v534 = vadd.f32 %v364, %v368
    %v535 = vadd.f32 %v534, %v372
    %v536 = vadd.f32 %v535, %v376
    %v537 = vadd.f32 %v536, %v380
    %v538 = vadd.f32 %v537, %v384
    %v539 = vadd.f32 %v538, %v388
    %v540 = vadd.f32 %v539, %v392
    %v541 = vadd.f32 %v540, %v396
    %v542 = vadd.f32 %v541, %v400
    %v543 = vadd.f32 %v542, %v404
    %v544 = vadd.f32 %v543, %v408
    %v545 = vadd.f32 %v544, %v412
    %v546 = vadd.f32 %v545, %v416
    %v547 = vadd.f32 %v546, %v420
    %v548 = vadd.f32 %v547, %v424
    %v549 = vadd.f32 %v503, 0.0
    %v550 = vadd.f32 %v518, 0.0
    %v551 = vadd.f32 %v533, 0.0
    %v552 = vadd.f32 %v548, 0.0
    %v553 = vmul.f32 %v297, %v297
    %v554 = vmul.f32 %v298, %v298
    %v555 = vmul.f32 %v299, %v299
    %v556 = vmul.f32 %v300, %v300
    %v557 = vmul.f32 %v301, %v301
    %v558 = vmul.f32 %v302, %v302
    %v559 = vmul.f32 %v303, %v303
    %v560 = vmul.f32 %v304, %v304
    %v561 = vmul.f32 %v305, %v305
    %v562 = vmul.f32 %v306, %v306
    %v563 = vmul.f32 %v307, %v307
    %v564 = vmul.f32 %v308, %v308
    %v565 = vmul.f32 %v309, %v309
    %v566 = vmul.f32 %v310, %v310
    %v567 = vmul.f32 %v311, %v311
    %v568 = vmul.f32 %v312, %v312
    %v569 = vmul.f32 %v313, %v313
    %v570 = vmul.f32 %v314, %v314
    %v571 = vmul.f32 %v315, %v315
    %v572 = vmul.f32 %v316, %v316
    %v573 = vmul.f32 %v317, %v317
    %v574 = vmul.f32 %v318, %v318
    %v575 = vmul.f32 %v319, %v319
    %v576 = vmul.f32 %v320, %v320
    %v577 = vmul.f32 %v321, %v321
    %v578 = vmul.f32 %v322, %v322
    %v579 = vmul.f32 %v323, %v323
    %v580 = vmul.f32 %v324, %v324
    %v581 = vmul.f32 %v325, %v325
    %v582 = vmul.f32 %v326, %v326
    %v583 = vmul.f32 %v327, %v327
    %v584 = vmul.f32 %v328, %v328
    %v585 = vmul.f32 %v329, %v329
    %v586 = vmul.f32 %v330, %v330
    %v587 = vmul.f32 %v331, %v331
    %v588 = vmul.f32 %v332, %v332
    %v589 = vmul.f32 %v333, %v333
    %v590 = vmul.f32 %v334, %v334
    %v591 = vmul.f32 %v335, %v335
    %v592 = vmul.f32 %v336, %v336
    %v593 = vmul.f32 %v337, %v337
    %v594 = vmul.f32 %v338, %v338
    %v595 = vmul.f32 %v339, %v339
    %v596 = vmul.f32 %v340, %v340
    %v597 = vmul.f32 %v341, %v341
    %v598 = vmul.f32 %v342, %v342
    %v599 = vmul.f32 %v343, %v343
    %v600 = vmul.f32 %v344, %v344
    %v601 = vmul.f32 %v345, %v345
    %v602 = vmul.f32 %v346, %v346
    %v603 = vmul.f32 %v347, %v347
    %v604 = vmul.f32 %v348, %v348
    %v605 = vmul.f32 %v349, %v349
    %v606 = vmul.f32 %v350, %v350
    %v607 = vmul.f32 %v351, %v351
    %v608 = vmul.f32 %v352, %v352
    %v609 = vmul.f32 %v353, %v353
    %v610 = vmul.f32 %v354, %v354
    %v611 = vmul.f32 %v355, %v355
    %v612 = vmul.f32 %v356, %v356
    %v613 = vmul.f32 %v357, %v357
    %v614 = vmul.f32 %v358, %v358
    %v615 = vmul.f32 %v359, %v359
    %v616 = vmul.f32 %v360, %v360
    %v617 = vadd.f32 %v553, %v557
    %v618 = vadd.f32 %v617, %v561
    %v619 = vadd.f32 %v618, %v565
    %v620 = vadd.f32 %v619, %v569
    %v621 = vadd.f32 %v620, %v573
    %v622 = vadd.f32 %v621, %v577
    %v623 = vadd.f32 %v622, %v581
    %v624 = vadd.f32 %v623, %v585
    %v625 = vadd.f32 %v624, %v589
    %v626 = vadd.f32 %v625, %v593
    %v627 = vadd.f32 %v626, %v597
    %v628 = vadd.f32 %v627, %v601
    %v629 = vadd.f32 %v628, %v605
    %v630 = vadd.f32 %v629, %v609
    %v631 = vadd.f32 %v630, %v613
    %v632 = vadd.f32 %v554, %v558
    %v633 = vadd.f32 %v632, %v562
    %v634 = vadd.f32 %v633, %v566
    %v635 = vadd.f32 %v634, %v570
    %v636 = vadd.f32 %v635, %v574
    %v637 = vadd.f32 %v636, %v578
    %v638 = vadd.f32 %v637, %v582
    %v639 = vadd.f32 %v638, %v586
    %v640 = vadd.f32 %v639, %v590
    %v641 = vadd.f32 %v640, %v594
    %v642 = vadd.f32 %v641, %v598
    %v643 = vadd.f32 %v642, %v602
    %v644 = vadd.f32 %v643, %v606
    %v645 = vadd.f32 %v644, %v610
    %v646 = vadd.f32 %v645, %v614
    %v647 = vadd.f32 %v555, %v559
    %v648 = vadd.f32 %v647, %v563
    %v649 = vadd.f32 %v648, %v567
    %v650 = vadd.f32 %v649, %v571
    %v651 = vadd.f32 %v650, %v575
    %v652 = vadd.f32 %v651, %v579
    %v653 = vadd.f32 %v652, %v583
    %v654 = vadd.f32 %v653, %v587
    %v655 = vadd.f32 %v654, %v591
    %v656 = vadd.f32 %v655, %v595
    %v657 = vadd.f32 %v656, %v599
    %v658 = vadd.f32 %v657, %v603
    %v659 = vadd.f32 %v658, %v607
    %v660 = vadd.f32 %v659, %v611
    %v661 = vadd.f32 %v660, %v615
    %v662 = vadd.f32 %v556, %v560
    %v663 = vadd.f32 %v662, %v564
    %v664 = vadd.f32 %v663, %v568
    %v665 = vadd.f32 %v664, %v572
    %v666 = vadd.f32 %v665, %v576
    %v667 = vadd.f32 %v666, %v580
    %v668 = vadd.f32 %v667, %v584
    %v669 = vadd.f32 %v668, %v588
    %v670 = vadd.f32 %v669, %v592
    %v671 = vadd.f32 %v670, %v596
    %v672 = vadd.f32 %v671, %v600
    %v673 = vadd.f32 %v672, %v604
    %v674 = vadd.f32 %v673, %v608
    %v675 = vadd.f32 %v674, %v612
    %v676 = vadd.f32 %v675, %v616
    %v677 = vadd.f32 %v631, 0.0
    %v678 = vadd.f32 %v646, 0.0
    %v679 = vadd.f32 %v661, 0.0
    %v680 = vadd.f32 %v676, 0.0
    %v681 = vmul.f32 %v361, %v361
    %v682 = vmul.f32 %v362, %v362
    %v683 = vmul.f32 %v363, %v363
    %v684 = vmul.f32 %v364, %v364
    %v685 = vmul.f32 %v365, %v365
    %v686 = vmul.f32 %v366, %v366
    %v687 = vmul.f32 %v367, %v367
    %v688 = vmul.f32 %v368, %v368
    %v689 = vmul.f32 %v369, %v369
    %v690 = vmul.f32 %v370, %v370
    %v691 = vmul.f32 %v371, %v371
    %v692 = vmul.f32 %v372, %v372
    %v693 = vmul.f32 %v373, %v373
    %v694 = vmul.f32 %v374, %v374
    %v695 = vmul.f32 %v375, %v375
    %v696 = vmul.f32 %v376, %v376
    %v697 = vmul.f32 %v377, %v377
    %v698 = vmul.f32 %v378, %v378
    %v699 = vmul.f32 %v379, %v379
    %v700 = vmul.f32 %v380, %v380
    %v701 = vmul.f32 %v381, %v381
    %v702 = vmul.f32 %v382, %v382
    %v703 = vmul.f32 %v383, %v383
    %v704 = vmul.f32 %v384, %v384
    %v705 = vmul.f32 %v385, %v385
    %v706 = vmul.f32 %v386, %v386
    %v707 = vmul.f32 %v387, %v387
    %v708 = vmul.f32 %v388, %v388
    %v709 = vmul.f32 %v389, %v389
    %v710 = vmul.f32 %v390, %v390
    %v711 = vmul.f32 %v391, %v391
    %v712 = vmul.f32 %v392, %v392
    %v713 = vmul.f32 %v393, %v393
    %v714 = vmul.f32 %v394, %v394
    %v715 = vmul.f32 %v395, %v395
    %v716 = vmul.f32 %v396, %v396
    %v717 = vmul.f32 %v397, %v397
    %v718 = vmul.f32 %v398, %v398
    %v719 = vmul.f32 %v399, %v399
    %v720 = vmul.f32 %v400, %v400
    %v721 = vmul.f32 %v401, %v401
    %v722 = vmul.f32 %v402, %v402
    %v723 = vmul.f32 %v403, %v403
    %v724 = vmul.f32 %v404, %v404
    %v725 = vmul.f32 %v405, %v405
    %v726 = vmul.f32 %v406, %v406
    %v727 = vmul.f32 %v407, %v407
    %v728 = vmul.f32 %v408, %v408
    %v729 = vmul.f32 %v409, %v409
    %v730 = vmul.f32 %v410, %v410
    %v731 = vmul.f32 %v411, %v411
    %v732 = vmul.f32 %v412, %v412
    %v733 = vmul.f32 %v413, %v413
    %v734 = vmul.f32 %v414, %v414
    %v735 = vmul.f32 %v415, %v415
    %v736 = vmul.f32 %v416, %v416
    %v737 = vmul.f32 %v417, %v417
    %v738 = vmul.f32 %v418, %v418
    %v739 = vmul.f32 %v419, %v419
    %v740 = vmul.f32 %v420, %v420
    %v741 = vmul.f32 %v421, %v421
    %v742 = vmul.f32 %v422, %v422
    %v743 = vmul.f32 %v423, %v423
    %v744 = vmul.f32 %v424, %v424
    %v745 = vadd.f32 %v681, %v685
    %v746 = vadd.f32 %v745, %v689
    %v747 = vadd.f32 %v746, %v693
    %v748 = vadd.f32 %v747, %v697
    %v749 = vadd.f32 %v748, %v701
    %v750 = vadd.f32 %v749, %v705
    %v751 = vadd.f32 %v750, %v709
    %v752 = vadd.f32 %v751, %v713
    %v753 = vadd.f32 %v752, %v717
    %v754 = vadd.f32 %v753, %v721
    %v755 = vadd.f32 %v754, %v725
    %v756 = vadd.f32 %v755, %v729
    %v757 = vadd.f32 %v756, %v733
    %v758 = vadd.f32 %v757, %v737
    %v759 = vadd.f32 %v758, %v741
    %v760 = vadd.f32 %v682, %v686
    %v761 = vadd.f32 %v760, %v690
    %v762 = vadd.f32 %v761, %v694
    %v763 = vadd.f32 %v762, %v698
    %v764 = vadd.f32 %v763, %v702
    %v765 = vadd.f32 %v764, %v706
    %v766 = vadd.f32 %v765, %v710
    %v767 = vadd.f32 %v766, %v714
    %v768 = vadd.f32 %v767, %v718
    %v769 = vadd.f32 %v768, %v722
    %v770 = vadd.f32 %v769, %v726
    %v771 = vadd.f32 %v770, %v730
    %v772 = vadd.f32 %v771, %v734
    %v773 = vadd.f32 %v772, %v738
    %v774 = vadd.f32 %v773, %v742
    %v775 = vadd.f32 %v683, %v687
    %v776 = vadd.f32 %v775, %v691
    %v777 = vadd.f32 %v776, %v695
    %v778 = vadd.f32 %v777, %v699
    %v779 = vadd.f32 %v778, %v703
    %v780 = vadd.f32 %v779, %v707
    %v781 = vadd.f32 %v780, %v711
    %v782 = vadd.f32 %v781, %v715
    %v783 = vadd.f32 %v782, %v719
    %v784 = vadd.f32 %v783, %v723
    %v785 = vadd.f32 %v784, %v727
    %v786 = vadd.f32 %v785, %v731
    %v787 = vadd.f32 %v786, %v735
    %v788 = vadd.f32 %v787, %v739
    %v789 = vadd.f32 %v788, %v743
    %v790 = vadd.f32 %v684, %v688
    %v791 = vadd.f32 %v790, %v692
    %v792 = vadd.f32 %v791, %v696
    %v793 = vadd.f32 %v792, %v700
    %v794 = vadd.f32 %v793, %v704
    %v795 = vadd.f32 %v794, %v708
    %v796 = vadd.f32 %v795, %v712
    %v797 = vadd.f32 %v796, %v716
    %v798 = vadd.f32 %v797, %v720
    %v799 = vadd.f32 %v798, %v724
    %v800 = vadd.f32 %v799, %v728
    %v801 = vadd.f32 %v800, %v732
    %v802 = vadd.f32 %v801, %v736
    %v803 = vadd.f32 %v802, %v740
    %v804 = vadd.f32 %v803, %v744
    %v805 = vadd.f32 %v759, 0.0
    %v806 = vadd.f32 %v774, 0.0
    %v807 = vadd.f32 %v789, 0.0
    %v808 = vadd.f32 %v804, 0.0
    %v809 = vmul.f32 %v297, %v361
    %v810 = vmul.f32 %v298, %v362
    %v811 = vmul.f32 %v299, %v363
    %v812 = vmul.f32 %v300, %v364
    %v813 = vmul.f32 %v301, %v365
    %v814 = vmul.f32 %v302, %v366
    %v815 = vmul.f32 %v303, %v367
    %v816 = vmul.f32 %v304, %v368
    %v817 = vmul.f32 %v305, %v369
    %v818 = vmul.f32 %v306, %v370
    %v819 = vmul.f32 %v307, %v371
    %v820 = vmul.f32 %v308, %v372
    %v821 = vmul.f32 %v309, %v373
    %v822 = vmul.f32 %v310, %v374
    %v823 = vmul.f32 %v311, %v375
    %v824 = vmul.f32 %v312, %v376
    %v825 = vmul.f32 %v313, %v377
    %v826 = vmul.f32 %v314, %v378
    %v827 = vmul.f32 %v315, %v379
    %v828 = vmul.f32 %v316, %v380
    %v829 = vmul.f32 %v317, %v381
    %v830 = vmul.f32 %v318, %v382
    %v831 = vmul.f32 %v319, %v383
    %v832 = vmul.f32 %v320, %v384
    %v833 = vmul.f32 %v321, %v385
    %v834 = vmul.f32 %v322, %v386
    %v835 = vmul.f32 %v323, %v387
    %v836 = vmul.f32 %v324, %v388
    %v837 = vmul.f32 %v325, %v389
    %v838 = vmul.f32 %v326, %v390
    %v839 = vmul.f32 %v327, %v391
    %v840 = vmul.f32 %v328, %v392
    %v841 = vmul.f32 %v329, %v393
    %v842 = vmul.f32 %v330, %v394
    %v843 = vmul.f32 %v331, %v395
    %v844 = vmul.f32 %v332, %v396
    %v845 = vmul.f32 %v333, %v397
    %v846 = vmul.f32 %v334, %v398
    %v847 = vmul.f32 %v335, %v399
    %v848 = vmul.f32 %v336, %v400
    %v849 = vmul.f32 %v337, %v401
    %v850 = vmul.f32 %v338, %v402
    %v851 = vmul.f32 %v339, %v403
    %v852 = vmul.f32 %v340, %v404
    %v853 = vmul.f32 %v341, %v405
    %v854 = vmul.f32 %v342, %v406
    %v855 = vmul.f32 %v343, %v407
    %v856 = vmul.f32 %v344, %v408
    %v857 = vmul.f32 %v345, %v409
    %v858 = vmul.f32 %v346, %v410
    %v859 = vmul.f32 %v347, %v411
    %v860 = vmul.f32 %v348, %v412
    %v861 = vmul.f32 %v349, %v413
    %v862 = vmul.f32 %v350, %v414
    %v863 = vmul.f32 %v351, %v415
    %v864 = vmul.f32 %v352, %v416
    %v865 = vmul.f32 %v353, %v417
    %v866 = vmul.f32 %v354, %v418
    %v867 = vmul.f32 %v355, %v419
    %v868 = vmul.f32 %v356, %v420
    %v869 = vmul.f32 %v357, %v421
    %v870 = vmul.f32 %v358, %v422
    %v871 = vmul.f32 %v359, %v423
    %v872 = vmul.f32 %v360, %v424
    %v873 = vadd.f32 %v809, %v813
    %v874 = vadd.f32 %v873, %v817
    %v875 = vadd.f32 %v874, %v821
    %v876 = vadd.f32 %v875, %v825
    %v877 = vadd.f32 %v876, %v829
    %v878 = vadd.f32 %v877, %v833
    %v879 = vadd.f32 %v878, %v837
    %v880 = vadd.f32 %v879, %v841
    %v881 = vadd.f32 %v880, %v845
    %v882 = vadd.f32 %v881, %v849
    %v883 = vadd.f32 %v882, %v853
    %v884 = vadd.f32 %v883, %v857
    %v885 = vadd.f32 %v884, %v861
    %v886 = vadd.f32 %v885, %v865
    %v887 = vadd.f32 %v886, %v869
    %v888 = vadd.f32 %v810, %v814
    %v889 = vadd.f32 %v888, %v818
    %v890 = vadd.f32 %v889, %v822
    %v891 = vadd.f32 %v890, %v826
    %v892 = vadd.f32 %v891, %v830
    %v893 = vadd.f32 %v892, %v834
    %v894 = vadd.f32 %v893, %v838
    %v895 = vadd.f32 %v894, %v842
    %v896 = vadd.f32 %v895, %v846
    %v897 = vadd.f32 %v896, %v850
    %v898 = vadd.f32 %v897, %v854
    %v899 = vadd.f32 %v898, %v858
    %v900 = vadd.f32 %v899, %v862
    %v901 = vadd.f32 %v900, %v866
    %v902 = vadd.f32 %v901, %v870
    %v903 = vadd.f32 %v811, %v815
    %v904 = vadd.f32 %v903, %v819
    %v905 = vadd.f32 %v904, %v823
    %v906 = vadd.f32 %v905, %v827
    %v907 = vadd.f32 %v906, %v831
    %v908 = vadd.f32 %v907, %v835
    %v909 = vadd.f32 %v908, %v839
    %v910 = vadd.f32 %v909, %v843
    %v911 = vadd.f32 %v910, %v847
    %v912 = vadd.f32 %v911, %v851
    %v913 = vadd.f32 %v912, %v855
    %v914 = vadd.f32 %v913, %v859
    %v915 = vadd.f32 %v914, %v863
    %v916 = vadd.f32 %v915, %v867
    %v917 = vadd.f32 %v916, %v871
    %v918 = vadd.f32 %v812, %v816
    %v919 = vadd.f32 %v918, %v820
    %v920 = vadd.f32 %v919, %v824
    %v921 = vadd.f32 %v920, %v828
    %v922 = vadd.f32 %v921, %v832
    %v923 = vadd.f32 %v922, %v836
    %v924 = vadd.f32 %v923, %v840
    %v925 = vadd.f32 %v924, %v844
    %v926 = vadd.f32 %v925, %v848
    %v927 = vadd.f32 %v926, %v852
    %v928 = vadd.f32 %v927, %v856
    %v929 = vadd.f32 %v928, %v860
    %v930 = vadd.f32 %v929, %v864
    %v931 = vadd.f32 %v930, %v868
    %v932 = vadd.f32 %v931, %v872
    %v933 = vadd.f32 %v887, 0.0
    %v934 = vadd.f32 %v902, 0.0
    %v935 = vadd.f32 %v917, 0.0
    %v936 = vadd.f32 %v932, 0.0
    %v937 = vld [vmem:[#allocation3 + $0x200] sm:$0xff]
    %v938 = vld [vmem:[#allocation3 + $0x208] sm:$0xff]
    %v939 = vld [vmem:[#allocation3 + $0x210] sm:$0xff]
    %v940 = vld [vmem:[#allocation3 + $0x218] sm:$0xff]
    %v941 = vld [vmem:[#allocation3 + $0x220] sm:$0xff]
    %v942 = vld [vmem:[#allocation3 + $0x228] sm:$0xff]
    %v943 = vld [vmem:[#allocation3 + $0x230] sm:$0xff]
    %v944 = vld [vmem:[#allocation3 + $0x238] sm:$0xff]
    %v945 = vld [vmem:[#allocation3 + $0x240] sm:$0xff]
    %v946 = vld [vmem:[#allocation3 + $0x248] sm:$0xff]
    %v947 = vld [vmem:[#allocation3 + $0x250] sm:$0xff]
    %v948 = vld [vmem:[#allocation3 + $0x258] sm:$0xff]
    %v949 = vld [vmem:[#allocation3 + $0x260] sm:$0xff]
    %v950 = vld [vmem:[#allocation3 + $0x268] sm:$0xff]
    %v951 = vld [vmem:[#allocation3 + $0x270] sm:$0xff]
    %v952 = vld [vmem:[#allocation3 + $0x278] sm:$0xff]
    %v953 = vld [vmem:[#allocation3 + $0x280] sm:$0xff]
    %v954 = vld [vmem:[#allocation3 + $0x288] sm:$0xff]
    %v955 = vld [vmem:[#allocation3 + $0x290] sm:$0xff]
    %v956 = vld [vmem:[#allocation3 + $0x298] sm:$0xff]
    %v957 = vld [vmem:[#allocation3 + $0x2a0] sm:$0xff]
    %v958 = vld [vmem:[#allocation3 + $0x2a8] sm:$0xff]
    %v959 = vld [vmem:[#allocation3 + $0x2b0] sm:$0xff]
    %v960 = vld [vmem:[#allocation3 + $0x2b8] sm:$0xff]
    %v961 = vld [vmem:[#allocation3 + $0x2c0] sm:$0xff]
    %v962 = vld [vmem:[#allocation3 + $0x2c8] sm:$0xff]
    %v963 = vld [vmem:[#allocation3 + $0x2d0] sm:$0xff]
    %v964 = vld [vmem:[#allocation3 + $0x2d8] sm:$0xff]
    %v965 = vld [vmem:[#allocation3 + $0x2e0] sm:$0xff]
    %v966 = vld [vmem:[#allocation3 + $0x2e8] sm:$0xff]
    %v967 = vld [vmem:[#allocation3 + $0x2f0] sm:$0xff]
    %v968 = vld [vmem:[#allocation3 + $0x2f8] sm:$0xff]
    %v969 = vld [vmem:[#allocation3 + $0x300] sm:$0xff]
    %v970 = vld [vmem:[#allocation3 + $0x308] sm:$0xff]
    %v971 = vld [vmem:[#allocation3 + $0x310] sm:$0xff]
    %v972 = vld [vmem:[#allocation3 + $0x318] sm:$0xff]
    %v973 = vld [vmem:[#allocation3 + $0x320] sm:$0xff]
    %v974 = vld [vmem:[#allocation3 + $0x328] sm:$0xff]
    %v975 = vld [vmem:[#allocation3 + $0x330] sm:$0xff]
    %v976 = vld [vmem:[#allocation3 + $0x338] sm:$0xff]
    %v977 = vld [vmem:[#allocation3 + $0x340] sm:$0xff]
    %v978 = vld [vmem:[#allocation3 + $0x348] sm:$0xff]
    %v979 = vld [vmem:[#allocation3 + $0x350] sm:$0xff]
    %v980 = vld [vmem:[#allocation3 + $0x358] sm:$0xff]
    %v981 = vld [vmem:[#allocation3 + $0x360] sm:$0xff]
    %v982 = vld [vmem:[#allocation3 + $0x368] sm:$0xff]
    %v983 = vld [vmem:[#allocation3 + $0x370] sm:$0xff]
    %v984 = vld [vmem:[#allocation3 + $0x378] sm:$0xff]
    %v985 = vld [vmem:[#allocation3 + $0x380] sm:$0xff]
    %v986 = vld [vmem:[#allocation3 + $0x388] sm:$0xff]
    %v987 = vld [vmem:[#allocation3 + $0x390] sm:$0xff]
    %v988 = vld [vmem:[#allocation3 + $0x398] sm:$0xff]
    %v989 = vld [vmem:[#allocation3 + $0x3a0] sm:$0xff]
    %v990 = vld [vmem:[#allocation3 + $0x3a8] sm:$0xff]
    %v991 = vld [vmem:[#allocation3 + $0x3b0] sm:$0xff]
    %v992 = vld [vmem:[#allocation3 + $0x3b8] sm:$0xff]
    %v993 = vld [vmem:[#allocation3 + $0x3c0] sm:$0xff]
    %v994 = vld [vmem:[#allocation3 + $0x3c8] sm:$0xff]
    %v995 = vld [vmem:[#allocation3 + $0x3d0] sm:$0xff]
    %v996 = vld [vmem:[#allocation3 + $0x3d8] sm:$0xff]
    %v997 = vld [vmem:[#allocation3 + $0x3e0] sm:$0xff]
    %v998 = vld [vmem:[#allocation3 + $0x3e8] sm:$0xff]
    %v999 = vld [vmem:[#allocation3 + $0x3f0] sm:$0xff]
    %v1000 = vld [vmem:[#allocation3 + $0x3f8] sm:$0xff]
    %v1001 = vld [vmem:[#allocation5 + $0x200] sm:$0xff]
    %v1002 = vld [vmem:[#allocation5 + $0x208] sm:$0xff]
    %v1003 = vld [vmem:[#allocation5 + $0x210] sm:$0xff]
    %v1004 = vld [vmem:[#allocation5 + $0x218] sm:$0xff]
    %v1005 = vld [vmem:[#allocation5 + $0x220] sm:$0xff]
    %v1006 = vld [vmem:[#allocation5 + $0x228] sm:$0xff]
    %v1007 = vld [vmem:[#allocation5 + $0x230] sm:$0xff]
    %v1008 = vld [vmem:[#allocation5 + $0x238] sm:$0xff]
    %v1009 = vld [vmem:[#allocation5 + $0x240] sm:$0xff]
    %v1010 = vld [vmem:[#allocation5 + $0x248] sm:$0xff]
    %v1011 = vld [vmem:[#allocation5 + $0x250] sm:$0xff]
    %v1012 = vld [vmem:[#allocation5 + $0x258] sm:$0xff]
    %v1013 = vld [vmem:[#allocation5 + $0x260] sm:$0xff]
    %v1014 = vld [vmem:[#allocation5 + $0x268] sm:$0xff]
    %v1015 = vld [vmem:[#allocation5 + $0x270] sm:$0xff]
    %v1016 = vld [vmem:[#allocation5 + $0x278] sm:$0xff]
    %v1017 = vld [vmem:[#allocation5 + $0x280] sm:$0xff]
    %v1018 = vld [vmem:[#allocation5 + $0x288] sm:$0xff]
    %v1019 = vld [vmem:[#allocation5 + $0x290] sm:$0xff]
    %v1020 = vld [vmem:[#allocation5 + $0x298] sm:$0xff]
    %v1021 = vld [vmem:[#allocation5 + $0x2a0] sm:$0xff]
    %v1022 = vld [vmem:[#allocation5 + $0x2a8] sm:$0xff]
    %v1023 = vld [vmem:[#allocation5 + $0x2b0] sm:$0xff]
    %v1024 = vld [vmem:[#allocation5 + $0x2b8] sm:$0xff]
    %v1025 = vld [vmem:[#allocation5 + $0x2c0] sm:$0xff]
    %v1026 = vld [vmem:[#allocation5 + $0x2c8] sm:$0xff]
    %v1027 = vld [vmem:[#allocation5 + $0x2d0] sm:$0xff]
    %v1028 = vld [vmem:[#allocation5 + $0x2d8] sm:$0xff]
    %v1029 = vld [vmem:[#allocation5 + $0x2e0] sm:$0xff]
    %v1030 = vld [vmem:[#allocation5 + $0x2e8] sm:$0xff]
    %v1031 = vld [vmem:[#allocation5 + $0x2f0] sm:$0xff]
    %v1032 = vld [vmem:[#allocation5 + $0x2f8] sm:$0xff]
    %v1033 = vld [vmem:[#allocation5 + $0x300] sm:$0xff]
    %v1034 = vld [vmem:[#allocation5 + $0x308] sm:$0xff]
    %v1035 = vld [vmem:[#allocation5 + $0x310] sm:$0xff]
    %v1036 = vld [vmem:[#allocation5 + $0x318] sm:$0xff]
    %v1037 = vld [vmem:[#allocation5 + $0x320] sm:$0xff]
    %v1038 = vld [vmem:[#allocation5 + $0x328] sm:$0xff]
    %v1039 = vld [vmem:[#allocation5 + $0x330] sm:$0xff]
    %v1040 = vld [vmem:[#allocation5 + $0x338] sm:$0xff]
    %v1041 = vld [vmem:[#allocation5 + $0x340] sm:$0xff]
    %v1042 = vld [vmem:[#allocation5 + $0x348] sm:$0xff]
    %v1043 = vld [vmem:[#allocation5 + $0x350] sm:$0xff]
    %v1044 = vld [vmem:[#allocation5 + $0x358] sm:$0xff]
    %v1045 = vld [vmem:[#allocation5 + $0x360] sm:$0xff]
    %v1046 = vld [vmem:[#allocation5 + $0x368] sm:$0xff]
    %v1047 = vld [vmem:[#allocation5 + $0x370] sm:$0xff]
    %v1048 = vld [vmem:[#allocation5 + $0x378] sm:$0xff]
    %v1049 = vld [vmem:[#allocation5 + $0x380] sm:$0xff]
    %v1050 = vld [vmem:[#allocation5 + $0x388] sm:$0xff]
    %v1051 = vld [vmem:[#allocation5 + $0x390] sm:$0xff]
    %v1052 = vld [vmem:[#allocation5 + $0x398] sm:$0xff]
    %v1053 = vld [vmem:[#allocation5 + $0x3a0] sm:$0xff]
    %v1054 = vld [vmem:[#allocation5 + $0x3a8] sm:$0xff]
    %v1055 = vld [vmem:[#allocation5 + $0x3b0] sm:$0xff]
    %v1056 = vld [vmem:[#allocation5 + $0x3b8] sm:$0xff]
    %v1057 = vld [vmem:[#allocation5 + $0x3c0] sm:$0xff]
    %v1058 = vld [vmem:[#allocation5 + $0x3c8] sm:$0xff]
    %v1059 = vld [vmem:[#allocation5 + $0x3d0] sm:$0xff]
    %v1060 = vld [vmem:[#allocation5 + $0x3d8] sm:$0xff]
    %v1061 = vld [vmem:[#allocation5 + $0x3e0] sm:$0xff]
    %v1062 = vld [vmem:[#allocation5 + $0x3e8] sm:$0xff]
    %v1063 = vld [vmem:[#allocation5 + $0x3f0] sm:$0xff]
    %v1064 = vld [vmem:[#allocation5 + $0x3f8] sm:$0xff]
    %s1065 = sadd.s32 %s86, 128
    %v1066 = vstv %s1065
    %v1067 = vadd.s32 %v216, %v1066
    %v1068 = vadd.s32 %v217, %v1066
    %v1069 = vadd.s32 %v218, %v1066
    %v1070 = vadd.s32 %v219, %v1066
    %v1071 = vadd.s32 %v220, %v1066
    %v1072 = vadd.s32 %v221, %v1066
    %v1073 = vadd.s32 %v222, %v1066
    %v1074 = vadd.s32 %v223, %v1066
    %v1075 = vadd.s32 %v224, %v1066
    %v1076 = vadd.s32 %v225, %v1066
    %v1077 = vadd.s32 %v226, %v1066
    %v1078 = vadd.s32 %v227, %v1066
    %v1079 = vadd.s32 %v228, %v1066
    %v1080 = vadd.s32 %v229, %v1066
    %v1081 = vadd.s32 %v230, %v1066
    %v1082 = vadd.s32 %v231, %v1066
    %vm1083 = vcmp.lt.s32.totalorder %v1067, 512
    %vm1084 = vcmp.lt.s32.totalorder %v1068, 512
    %vm1085 = vcmp.lt.s32.totalorder %v1069, 512
    %vm1086 = vcmp.lt.s32.totalorder %v1070, 512
    %vm1087 = vcmp.lt.s32.totalorder %v1071, 512
    %vm1088 = vcmp.lt.s32.totalorder %v1072, 512
    %vm1089 = vcmp.lt.s32.totalorder %v1073, 512
    %vm1090 = vcmp.lt.s32.totalorder %v1074, 512
    %vm1091 = vcmp.lt.s32.totalorder %v1075, 512
    %vm1092 = vcmp.lt.s32.totalorder %v1076, 512
    %vm1093 = vcmp.lt.s32.totalorder %v1077, 512
    %vm1094 = vcmp.lt.s32.totalorder %v1078, 512
    %vm1095 = vcmp.lt.s32.totalorder %v1079, 512
    %vm1096 = vcmp.lt.s32.totalorder %v1080, 512
    %vm1097 = vcmp.lt.s32.totalorder %v1081, 512
    %vm1098 = vcmp.lt.s32.totalorder %v1082, 512
    %v1099 = vsel %vm1083, 1, 0
    %v1100 = vsel %vm1084, 1, 0
    %v1101 = vsel %vm1085, 1, 0
    %v1102 = vsel %vm1086, 1, 0
    %v1103 = vsel %vm1087, 1, 0
    %v1104 = vsel %vm1088, 1, 0
    %v1105 = vsel %vm1089, 1, 0
    %v1106 = vsel %vm1090, 1, 0
    %v1107 = vsel %vm1091, 1, 0
    %v1108 = vsel %vm1092, 1, 0
    %v1109 = vsel %vm1093, 1, 0
    %v1110 = vsel %vm1094, 1, 0
    %v1111 = vsel %vm1095, 1, 0
    %v1112 = vsel %vm1096, 1, 0
    %v1113 = vsel %vm1097, 1, 0
    %v1114 = vsel %vm1098, 1, 0
    %vm1115 = vcmp.eq.s32.totalorder %v1099, 1
    %vm1116 = vcmp.eq.s32.totalorder %v1100, 1
    %vm1117 = vcmp.eq.s32.totalorder %v1101, 1
    %vm1118 = vcmp.eq.s32.totalorder %v1102, 1
    %vm1119 = vcmp.eq.s32.totalorder %v1103, 1
    %vm1120 = vcmp.eq.s32.totalorder %v1104, 1
    %vm1121 = vcmp.eq.s32.totalorder %v1105, 1
    %vm1122 = vcmp.eq.s32.totalorder %v1106, 1
    %vm1123 = vcmp.eq.s32.totalorder %v1107, 1
    %vm1124 = vcmp.eq.s32.totalorder %v1108, 1
    %vm1125 = vcmp.eq.s32.totalorder %v1109, 1
    %vm1126 = vcmp.eq.s32.totalorder %v1110, 1
    %vm1127 = vcmp.eq.s32.totalorder %v1111, 1
    %vm1128 = vcmp.eq.s32.totalorder %v1112, 1
    %vm1129 = vcmp.eq.s32.totalorder %v1113, 1
    %vm1130 = vcmp.eq.s32.totalorder %v1114, 1
    %v1131 = vsel %vm1115, %v937, 0.0
    %v1132 = vsel %vm1115, %v938, 0.0
    %v1133 = vsel %vm1115, %v939, 0.0
    %v1134 = vsel %vm1115, %v940, 0.0
    %v1135 = vsel %vm1116, %v941, 0.0
    %v1136 = vsel %vm1116, %v942, 0.0
    %v1137 = vsel %vm1116, %v943, 0.0
    %v1138 = vsel %vm1116, %v944, 0.0
    %v1139 = vsel %vm1117, %v945, 0.0
    %v1140 = vsel %vm1117, %v946, 0.0
    %v1141 = vsel %vm1117, %v947, 0.0
    %v1142 = vsel %vm1117, %v948, 0.0
    %v1143 = vsel %vm1118, %v949, 0.0
    %v1144 = vsel %vm1118, %v950, 0.0
    %v1145 = vsel %vm1118, %v951, 0.0
    %v1146 = vsel %vm1118, %v952, 0.0
    %v1147 = vsel %vm1119, %v953, 0.0
    %v1148 = vsel %vm1119, %v954, 0.0
    %v1149 = vsel %vm1119, %v955, 0.0
    %v1150 = vsel %vm1119, %v956, 0.0
    %v1151 = vsel %vm1120, %v957, 0.0
    %v1152 = vsel %vm1120, %v958, 0.0
    %v1153 = vsel %vm1120, %v959, 0.0
    %v1154 = vsel %vm1120, %v960, 0.0
    %v1155 = vsel %vm1121, %v961, 0.0
    %v1156 = vsel %vm1121, %v962, 0.0
    %v1157 = vsel %vm1121, %v963, 0.0
    %v1158 = vsel %vm1121, %v964, 0.0
    %v1159 = vsel %vm1122, %v965, 0.0
    %v1160 = vsel %vm1122, %v966, 0.0
    %v1161 = vsel %vm1122, %v967, 0.0
    %v1162 = vsel %vm1122, %v968, 0.0
    %v1163 = vsel %vm1123, %v969, 0.0
    %v1164 = vsel %vm1123, %v970, 0.0
    %v1165 = vsel %vm1123, %v971, 0.0
    %v1166 = vsel %vm1123, %v972, 0.0
    %v1167 = vsel %vm1124, %v973, 0.0
    %v1168 = vsel %vm1124, %v974, 0.0
    %v1169 = vsel %vm1124, %v975, 0.0
    %v1170 = vsel %vm1124, %v976, 0.0
    %v1171 = vsel %vm1125, %v977, 0.0
    %v1172 = vsel %vm1125, %v978, 0.0
    %v1173 = vsel %vm1125, %v979, 0.0
    %v1174 = vsel %vm1125, %v980, 0.0
    %v1175 = vsel %vm1126, %v981, 0.0
    %v1176 = vsel %vm1126, %v982, 0.0
    %v1177 = vsel %vm1126, %v983, 0.0
    %v1178 = vsel %vm1126, %v984, 0.0
    %v1179 = vsel %vm1127, %v985, 0.0
    %v1180 = vsel %vm1127, %v986, 0.0
    %v1181 = vsel %vm1127, %v987, 0.0
    %v1182 = vsel %vm1127, %v988, 0.0
    %v1183 = vsel %vm1128, %v989, 0.0
    %v1184 = vsel %vm1128, %v990, 0.0
    %v1185 = vsel %vm1128, %v991, 0.0
    %v1186 = vsel %vm1128, %v992, 0.0
    %v1187 = vsel %vm1129, %v993, 0.0
    %v1188 = vsel %vm1129, %v994, 0.0
    %v1189 = vsel %vm1129, %v995, 0.0
    %v1190 = vsel %vm1129, %v996, 0.0
    %v1191 = vsel %vm1130, %v997, 0.0
    %v1192 = vsel %vm1130, %v998, 0.0
    %v1193 = vsel %vm1130, %v999, 0.0
    %v1194 = vsel %vm1130, %v1000, 0.0
    %v1195 = vsel %vm1115, %v1001, 0.0
    %v1196 = vsel %vm1115, %v1002, 0.0
    %v1197 = vsel %vm1115, %v1003, 0.0
    %v1198 = vsel %vm1115, %v1004, 0.0
    %v1199 = vsel %vm1116, %v1005, 0.0
    %v1200 = vsel %vm1116, %v1006, 0.0
    %v1201 = vsel %vm1116, %v1007, 0.0
    %v1202 = vsel %vm1116, %v1008, 0.0
    %v1203 = vsel %vm1117, %v1009, 0.0
    %v1204 = vsel %vm1117, %v1010, 0.0
    %v1205 = vsel %vm1117, %v1011, 0.0
    %v1206 = vsel %vm1117, %v1012, 0.0
    %v1207 = vsel %vm1118, %v1013, 0.0
    %v1208 = vsel %vm1118, %v1014, 0.0
    %v1209 = vsel %vm1118, %v1015, 0.0
    %v1210 = vsel %vm1118, %v1016, 0.0
    %v1211 = vsel %vm1119, %v1017, 0.0
    %v1212 = vsel %vm1119, %v1018, 0.0
    %v1213 = vsel %vm1119, %v1019, 0.0
    %v1214 = vsel %vm1119, %v1020, 0.0
    %v1215 = vsel %vm1120, %v1021, 0.0
    %v1216 = vsel %vm1120, %v1022, 0.0
    %v1217 = vsel %vm1120, %v1023, 0.0
    %v1218 = vsel %vm1120, %v1024, 0.0
    %v1219 = vsel %vm1121, %v1025, 0.0
    %v1220 = vsel %vm1121, %v1026, 0.0
    %v1221 = vsel %vm1121, %v1027, 0.0
    %v1222 = vsel %vm1121, %v1028, 0.0
    %v1223 = vsel %vm1122, %v1029, 0.0
    %v1224 = vsel %vm1122, %v1030, 0.0
    %v1225 = vsel %vm1122, %v1031, 0.0
    %v1226 = vsel %vm1122, %v1032, 0.0
    %v1227 = vsel %vm1123, %v1033, 0.0
    %v1228 = vsel %vm1123, %v1034, 0.0
    %v1229 = vsel %vm1123, %v1035, 0.0
    %v1230 = vsel %vm1123, %v1036, 0.0
    %v1231 = vsel %vm1124, %v1037, 0.0
    %v1232 = vsel %vm1124, %v1038, 0.0
    %v1233 = vsel %vm1124, %v1039, 0.0
    %v1234 = vsel %vm1124, %v1040, 0.0
    %v1235 = vsel %vm1125, %v1041, 0.0
    %v1236 = vsel %vm1125, %v1042, 0.0
    %v1237 = vsel %vm1125, %v1043, 0.0
    %v1238 = vsel %vm1125, %v1044, 0.0
    %v1239 = vsel %vm1126, %v1045, 0.0
    %v1240 = vsel %vm1126, %v1046, 0.0
    %v1241 = vsel %vm1126, %v1047, 0.0
    %v1242 = vsel %vm1126, %v1048, 0.0
    %v1243 = vsel %vm1127, %v1049, 0.0
    %v1244 = vsel %vm1127, %v1050, 0.0
    %v1245 = vsel %vm1127, %v1051, 0.0
    %v1246 = vsel %vm1127, %v1052, 0.0
    %v1247 = vsel %vm1128, %v1053, 0.0
    %v1248 = vsel %vm1128, %v1054, 0.0
    %v1249 = vsel %vm1128, %v1055, 0.0
    %v1250 = vsel %vm1128, %v1056, 0.0
    %v1251 = vsel %vm1129, %v1057, 0.0
    %v1252 = vsel %vm1129, %v1058, 0.0
    %v1253 = vsel %vm1129, %v1059, 0.0
    %v1254 = vsel %vm1129, %v1060, 0.0
    %v1255 = vsel %vm1130, %v1061, 0.0
    %v1256 = vsel %vm1130, %v1062, 0.0
    %v1257 = vsel %vm1130, %v1063, 0.0
    %v1258 = vsel %vm1130, %v1064, 0.0
    %v1259 = vadd.f32 %v1131, %v1135
    %v1260 = vadd.f32 %v1259, %v1139
    %v1261 = vadd.f32 %v1260, %v1143
    %v1262 = vadd.f32 %v1261, %v1147
    %v1263 = vadd.f32 %v1262, %v1151
    %v1264 = vadd.f32 %v1263, %v1155
    %v1265 = vadd.f32 %v1264, %v1159
    %v1266 = vadd.f32 %v1265, %v1163
    %v1267 = vadd.f32 %v1266, %v1167
    %v1268 = vadd.f32 %v1267, %v1171
    %v1269 = vadd.f32 %v1268, %v1175
    %v1270 = vadd.f32 %v1269, %v1179
    %v1271 = vadd.f32 %v1270, %v1183
    %v1272 = vadd.f32 %v1271, %v1187
    %v1273 = vadd.f32 %v1272, %v1191
    %v1274 = vadd.f32 %v1132, %v1136
    %v1275 = vadd.f32 %v1274, %v1140
    %v1276 = vadd.f32 %v1275, %v1144
    %v1277 = vadd.f32 %v1276, %v1148
    %v1278 = vadd.f32 %v1277, %v1152
    %v1279 = vadd.f32 %v1278, %v1156
    %v1280 = vadd.f32 %v1279, %v1160
    %v1281 = vadd.f32 %v1280, %v1164
    %v1282 = vadd.f32 %v1281, %v1168
    %v1283 = vadd.f32 %v1282, %v1172
    %v1284 = vadd.f32 %v1283, %v1176
    %v1285 = vadd.f32 %v1284, %v1180
    %v1286 = vadd.f32 %v1285, %v1184
    %v1287 = vadd.f32 %v1286, %v1188
    %v1288 = vadd.f32 %v1287, %v1192
    %v1289 = vadd.f32 %v1133, %v1137
    %v1290 = vadd.f32 %v1289, %v1141
    %v1291 = vadd.f32 %v1290, %v1145
    %v1292 = vadd.f32 %v1291, %v1149
    %v1293 = vadd.f32 %v1292, %v1153
    %v1294 = vadd.f32 %v1293, %v1157
    %v1295 = vadd.f32 %v1294, %v1161
    %v1296 = vadd.f32 %v1295, %v1165
    %v1297 = vadd.f32 %v1296, %v1169
    %v1298 = vadd.f32 %v1297, %v1173
    %v1299 = vadd.f32 %v1298, %v1177
    %v1300 = vadd.f32 %v1299, %v1181
    %v1301 = vadd.f32 %v1300, %v1185
    %v1302 = vadd.f32 %v1301, %v1189
    %v1303 = vadd.f32 %v1302, %v1193
    %v1304 = vadd.f32 %v1134, %v1138
    %v1305 = vadd.f32 %v1304, %v1142
    %v1306 = vadd.f32 %v1305, %v1146
    %v1307 = vadd.f32 %v1306, %v1150
    %v1308 = vadd.f32 %v1307, %v1154
    %v1309 = vadd.f32 %v1308, %v1158
    %v1310 = vadd.f32 %v1309, %v1162
    %v1311 = vadd.f32 %v1310, %v1166
    %v1312 = vadd.f32 %v1311, %v1170
    %v1313 = vadd.f32 %v1312, %v1174
    %v1314 = vadd.f32 %v1313, %v1178
    %v1315 = vadd.f32 %v1314, %v1182
    %v1316 = vadd.f32 %v1315, %v1186
    %v1317 = vadd.f32 %v1316, %v1190
    %v1318 = vadd.f32 %v1317, %v1194
    %v1319 = vadd.f32 %v485, %v1273
    %v1320 = vadd.f32 %v486, %v1288
    %v1321 = vadd.f32 %v487, %v1303
    %v1322 = vadd.f32 %v488, %v1318
    %v1323 = vadd.f32 %v1195, %v1199
    %v1324 = vadd.f32 %v1323, %v1203
    %v1325 = vadd.f32 %v1324, %v1207
    %v1326 = vadd.f32 %v1325, %v1211
    %v1327 = vadd.f32 %v1326, %v1215
    %v1328 = vadd.f32 %v1327, %v1219
    %v1329 = vadd.f32 %v1328, %v1223
    %v1330 = vadd.f32 %v1329, %v1227
    %v1331 = vadd.f32 %v1330, %v1231
    %v1332 = vadd.f32 %v1331, %v1235
    %v1333 = vadd.f32 %v1332, %v1239
    %v1334 = vadd.f32 %v1333, %v1243
    %v1335 = vadd.f32 %v1334, %v1247
    %v1336 = vadd.f32 %v1335, %v1251
    %v1337 = vadd.f32 %v1336, %v1255
    %v1338 = vadd.f32 %v1196, %v1200
    %v1339 = vadd.f32 %v1338, %v1204
    %v1340 = vadd.f32 %v1339, %v1208
    %v1341 = vadd.f32 %v1340, %v1212
    %v1342 = vadd.f32 %v1341, %v1216
    %v1343 = vadd.f32 %v1342, %v1220
    %v1344 = vadd.f32 %v1343, %v1224
    %v1345 = vadd.f32 %v1344, %v1228
    %v1346 = vadd.f32 %v1345, %v1232
    %v1347 = vadd.f32 %v1346, %v1236
    %v1348 = vadd.f32 %v1347, %v1240
    %v1349 = vadd.f32 %v1348, %v1244
    %v1350 = vadd.f32 %v1349, %v1248
    %v1351 = vadd.f32 %v1350, %v1252
    %v1352 = vadd.f32 %v1351, %v1256
    %v1353 = vadd.f32 %v1197, %v1201
    %v1354 = vadd.f32 %v1353, %v1205
    %v1355 = vadd.f32 %v1354, %v1209
    %v1356 = vadd.f32 %v1355, %v1213
    %v1357 = vadd.f32 %v1356, %v1217
    %v1358 = vadd.f32 %v1357, %v1221
    %v1359 = vadd.f32 %v1358, %v1225
    %v1360 = vadd.f32 %v1359, %v1229
    %v1361 = vadd.f32 %v1360, %v1233
    %v1362 = vadd.f32 %v1361, %v1237
    %v1363 = vadd.f32 %v1362, %v1241
    %v1364 = vadd.f32 %v1363, %v1245
    %v1365 = vadd.f32 %v1364, %v1249
    %v1366 = vadd.f32 %v1365, %v1253
    %v1367 = vadd.f32 %v1366, %v1257
    %v1368 = vadd.f32 %v1198, %v1202
    %v1369 = vadd.f32 %v1368, %v1206
    %v1370 = vadd.f32 %v1369, %v1210
    %v1371 = vadd.f32 %v1370, %v1214
    %v1372 = vadd.f32 %v1371, %v1218
    %v1373 = vadd.f32 %v1372, %v1222
    %v1374 = vadd.f32 %v1373, %v1226
    %v1375 = vadd.f32 %v1374, %v1230
    %v1376 = vadd.f32 %v1375, %v1234
    %v1377 = vadd.f32 %v1376, %v1238
    %v1378 = vadd.f32 %v1377, %v1242
    %v1379 = vadd.f32 %v1378, %v1246
    %v1380 = vadd.f32 %v1379, %v1250
    %v1381 = vadd.f32 %v1380, %v1254
    %v1382 = vadd.f32 %v1381, %v1258
    %v1383 = vadd.f32 %v549, %v1337
    %v1384 = vadd.f32 %v550, %v1352
    %v1385 = vadd.f32 %v551, %v1367
    %v1386 = vadd.f32 %v552, %v1382
    %v1387 = vmul.f32 %v1131, %v1131
    %v1388 = vmul.f32 %v1132, %v1132
    %v1389 = vmul.f32 %v1133, %v1133
    %v1390 = vmul.f32 %v1134, %v1134
    %v1391 = vmul.f32 %v1135, %v1135
    %v1392 = vmul.f32 %v1136, %v1136
    %v1393 = vmul.f32 %v1137, %v1137
    %v1394 = vmul.f32 %v1138, %v1138
    %v1395 = vmul.f32 %v1139, %v1139
    %v1396 = vmul.f32 %v1140, %v1140
    %v1397 = vmul.f32 %v1141, %v1141
    %v1398 = vmul.f32 %v1142, %v1142
    %v1399 = vmul.f32 %v1143, %v1143
    %v1400 = vmul.f32 %v1144, %v1144
    %v1401 = vmul.f32 %v1145, %v1145
    %v1402 = vmul.f32 %v1146, %v1146
    %v1403 = vmul.f32 %v1147, %v1147
    %v1404 = vmul.f32 %v1148, %v1148
    %v1405 = vmul.f32 %v1149, %v1149
    %v1406 = vmul.f32 %v1150, %v1150
    %v1407 = vmul.f32 %v1151, %v1151
    %v1408 = vmul.f32 %v1152, %v1152
    %v1409 = vmul.f32 %v1153, %v1153
    %v1410 = vmul.f32 %v1154, %v1154
    %v1411 = vmul.f32 %v1155, %v1155
    %v1412 = vmul.f32 %v1156, %v1156
    %v1413 = vmul.f32 %v1157, %v1157
    %v1414 = vmul.f32 %v1158, %v1158
    %v1415 = vmul.f32 %v1159, %v1159
    %v1416 = vmul.f32 %v1160, %v1160
    %v1417 = vmul.f32 %v1161, %v1161
    %v1418 = vmul.f32 %v1162, %v1162
    %v1419 = vmul.f32 %v1163, %v1163
    %v1420 = vmul.f32 %v1164, %v1164
    %v1421 = vmul.f32 %v1165, %v1165
    %v1422 = vmul.f32 %v1166, %v1166
    %v1423 = vmul.f32 %v1167, %v1167
    %v1424 = vmul.f32 %v1168, %v1168
    %v1425 = vmul.f32 %v1169, %v1169
    %v1426 = vmul.f32 %v1170, %v1170
    %v1427 = vmul.f32 %v1171, %v1171
    %v1428 = vmul.f32 %v1172, %v1172
    %v1429 = vmul.f32 %v1173, %v1173
    %v1430 = vmul.f32 %v1174, %v1174
    %v1431 = vmul.f32 %v1175, %v1175
    %v1432 = vmul.f32 %v1176, %v1176
    %v1433 = vmul.f32 %v1177, %v1177
    %v1434 = vmul.f32 %v1178, %v1178
    %v1435 = vmul.f32 %v1179, %v1179
    %v1436 = vmul.f32 %v1180, %v1180
    %v1437 = vmul.f32 %v1181, %v1181
    %v1438 = vmul.f32 %v1182, %v1182
    %v1439 = vmul.f32 %v1183, %v1183
    %v1440 = vmul.f32 %v1184, %v1184
    %v1441 = vmul.f32 %v1185, %v1185
    %v1442 = vmul.f32 %v1186, %v1186
    %v1443 = vmul.f32 %v1187, %v1187
    %v1444 = vmul.f32 %v1188, %v1188
    %v1445 = vmul.f32 %v1189, %v1189
    %v1446 = vmul.f32 %v1190, %v1190
    %v1447 = vmul.f32 %v1191, %v1191
    %v1448 = vmul.f32 %v1192, %v1192
    %v1449 = vmul.f32 %v1193, %v1193
    %v1450 = vmul.f32 %v1194, %v1194
    %v1451 = vadd.f32 %v1387, %v1391
    %v1452 = vadd.f32 %v1451, %v1395
    %v1453 = vadd.f32 %v1452, %v1399
    %v1454 = vadd.f32 %v1453, %v1403
    %v1455 = vadd.f32 %v1454, %v1407
    %v1456 = vadd.f32 %v1455, %v1411
    %v1457 = vadd.f32 %v1456, %v1415
    %v1458 = vadd.f32 %v1457, %v1419
    %v1459 = vadd.f32 %v1458, %v1423
    %v1460 = vadd.f32 %v1459, %v1427
    %v1461 = vadd.f32 %v1460, %v1431
    %v1462 = vadd.f32 %v1461, %v1435
    %v1463 = vadd.f32 %v1462, %v1439
    %v1464 = vadd.f32 %v1463, %v1443
    %v1465 = vadd.f32 %v1464, %v1447
    %v1466 = vadd.f32 %v1388, %v1392
    %v1467 = vadd.f32 %v1466, %v1396
    %v1468 = vadd.f32 %v1467, %v1400
    %v1469 = vadd.f32 %v1468, %v1404
    %v1470 = vadd.f32 %v1469, %v1408
    %v1471 = vadd.f32 %v1470, %v1412
    %v1472 = vadd.f32 %v1471, %v1416
    %v1473 = vadd.f32 %v1472, %v1420
    %v1474 = vadd.f32 %v1473, %v1424
    %v1475 = vadd.f32 %v1474, %v1428
    %v1476 = vadd.f32 %v1475, %v1432
    %v1477 = vadd.f32 %v1476, %v1436
    %v1478 = vadd.f32 %v1477, %v1440
    %v1479 = vadd.f32 %v1478, %v1444
    %v1480 = vadd.f32 %v1479, %v1448
    %v1481 = vadd.f32 %v1389, %v1393
    %v1482 = vadd.f32 %v1481, %v1397
    %v1483 = vadd.f32 %v1482, %v1401
    %v1484 = vadd.f32 %v1483, %v1405
    %v1485 = vadd.f32 %v1484, %v1409
    %v1486 = vadd.f32 %v1485, %v1413
    %v1487 = vadd.f32 %v1486, %v1417
    %v1488 = vadd.f32 %v1487, %v1421
    %v1489 = vadd.f32 %v1488, %v1425
    %v1490 = vadd.f32 %v1489, %v1429
    %v1491 = vadd.f32 %v1490, %v1433
    %v1492 = vadd.f32 %v1491, %v1437
    %v1493 = vadd.f32 %v1492, %v1441
    %v1494 = vadd.f32 %v1493, %v1445
    %v1495 = vadd.f32 %v1494, %v1449
    %v1496 = vadd.f32 %v1390, %v1394
    %v1497 = vadd.f32 %v1496, %v1398
    %v1498 = vadd.f32 %v1497, %v1402
    %v1499 = vadd.f32 %v1498, %v1406
    %v1500 = vadd.f32 %v1499, %v1410
    %v1501 = vadd.f32 %v1500, %v1414
    %v1502 = vadd.f32 %v1501, %v1418
    %v1503 = vadd.f32 %v1502, %v1422
    %v1504 = vadd.f32 %v1503, %v1426
    %v1505 = vadd.f32 %v1504, %v1430
    %v1506 = vadd.f32 %v1505, %v1434
    %v1507 = vadd.f32 %v1506, %v1438
    %v1508 = vadd.f32 %v1507, %v1442
    %v1509 = vadd.f32 %v1508, %v1446
    %v1510 = vadd.f32 %v1509, %v1450
    %v1511 = vadd.f32 %v677, %v1465
    %v1512 = vadd.f32 %v678, %v1480
    %v1513 = vadd.f32 %v679, %v1495
    %v1514 = vadd.f32 %v680, %v1510
    %v1515 = vmul.f32 %v1195, %v1195
    %v1516 = vmul.f32 %v1196, %v1196
    %v1517 = vmul.f32 %v1197, %v1197
    %v1518 = vmul.f32 %v1198, %v1198
    %v1519 = vmul.f32 %v1199, %v1199
    %v1520 = vmul.f32 %v1200, %v1200
    %v1521 = vmul.f32 %v1201, %v1201
    %v1522 = vmul.f32 %v1202, %v1202
    %v1523 = vmul.f32 %v1203, %v1203
    %v1524 = vmul.f32 %v1204, %v1204
    %v1525 = vmul.f32 %v1205, %v1205
    %v1526 = vmul.f32 %v1206, %v1206
    %v1527 = vmul.f32 %v1207, %v1207
    %v1528 = vmul.f32 %v1208, %v1208
    %v1529 = vmul.f32 %v1209, %v1209
    %v1530 = vmul.f32 %v1210, %v1210
    %v1531 = vmul.f32 %v1211, %v1211
    %v1532 = vmul.f32 %v1212, %v1212
    %v1533 = vmul.f32 %v1213, %v1213
    %v1534 = vmul.f32 %v1214, %v1214
    %v1535 = vmul.f32 %v1215, %v1215
    %v1536 = vmul.f32 %v1216, %v1216
    %v1537 = vmul.f32 %v1217, %v1217
    %v1538 = vmul.f32 %v1218, %v1218
    %v1539 = vmul.f32 %v1219, %v1219
    %v1540 = vmul.f32 %v1220, %v1220
    %v1541 = vmul.f32 %v1221, %v1221
    %v1542 = vmul.f32 %v1222, %v1222
    %v1543 = vmul.f32 %v1223, %v1223
    %v1544 = vmul.f32 %v1224, %v1224
    %v1545 = vmul.f32 %v1225, %v1225
    %v1546 = vmul.f32 %v1226, %v1226
    %v1547 = vmul.f32 %v1227, %v1227
    %v1548 = vmul.f32 %v1228, %v1228
    %v1549 = vmul.f32 %v1229, %v1229
    %v1550 = vmul.f32 %v1230, %v1230
    %v1551 = vmul.f32 %v1231, %v1231
    %v1552 = vmul.f32 %v1232, %v1232
    %v1553 = vmul.f32 %v1233, %v1233
    %v1554 = vmul.f32 %v1234, %v1234
    %v1555 = vmul.f32 %v1235, %v1235
    %v1556 = vmul.f32 %v1236, %v1236
    %v1557 = vmul.f32 %v1237, %v1237
    %v1558 = vmul.f32 %v1238, %v1238
    %v1559 = vmul.f32 %v1239, %v1239
    %v1560 = vmul.f32 %v1240, %v1240
    %v1561 = vmul.f32 %v1241, %v1241
    %v1562 = vmul.f32 %v1242, %v1242
    %v1563 = vmul.f32 %v1243, %v1243
    %v1564 = vmul.f32 %v1244, %v1244
    %v1565 = vmul.f32 %v1245, %v1245
    %v1566 = vmul.f32 %v1246, %v1246
    %v1567 = vmul.f32 %v1247, %v1247
    %v1568 = vmul.f32 %v1248, %v1248
    %v1569 = vmul.f32 %v1249, %v1249
    %v1570 = vmul.f32 %v1250, %v1250
    %v1571 = vmul.f32 %v1251, %v1251
    %v1572 = vmul.f32 %v1252, %v1252
    %v1573 = vmul.f32 %v1253, %v1253
    %v1574 = vmul.f32 %v1254, %v1254
    %v1575 = vmul.f32 %v1255, %v1255
    %v1576 = vmul.f32 %v1256, %v1256
    %v1577 = vmul.f32 %v1257, %v1257
    %v1578 = vmul.f32 %v1258, %v1258
    %v1579 = vadd.f32 %v1515, %v1519
    %v1580 = vadd.f32 %v1579, %v1523
    %v1581 = vadd.f32 %v1580, %v1527
    %v1582 = vadd.f32 %v1581, %v1531
    %v1583 = vadd.f32 %v1582, %v1535
    %v1584 = vadd.f32 %v1583, %v1539
    %v1585 = vadd.f32 %v1584, %v1543
    %v1586 = vadd.f32 %v1585, %v1547
    %v1587 = vadd.f32 %v1586, %v1551
    %v1588 = vadd.f32 %v1587, %v1555
    %v1589 = vadd.f32 %v1588, %v1559
    %v1590 = vadd.f32 %v1589, %v1563
    %v1591 = vadd.f32 %v1590, %v1567
    %v1592 = vadd.f32 %v1591, %v1571
    %v1593 = vadd.f32 %v1592, %v1575
    %v1594 = vadd.f32 %v1516, %v1520
    %v1595 = vadd.f32 %v1594, %v1524
    %v1596 = vadd.f32 %v1595, %v1528
    %v1597 = vadd.f32 %v1596, %v1532
    %v1598 = vadd.f32 %v1597, %v1536
    %v1599 = vadd.f32 %v1598, %v1540
    %v1600 = vadd.f32 %v1599, %v1544
    %v1601 = vadd.f32 %v1600, %v1548
    %v1602 = vadd.f32 %v1601, %v1552
    %v1603 = vadd.f32 %v1602, %v1556
    %v1604 = vadd.f32 %v1603, %v1560
    %v1605 = vadd.f32 %v1604, %v1564
    %v1606 = vadd.f32 %v1605, %v1568
    %v1607 = vadd.f32 %v1606, %v1572
    %v1608 = vadd.f32 %v1607, %v1576
    %v1609 = vadd.f32 %v1517, %v1521
    %v1610 = vadd.f32 %v1609, %v1525
    %v1611 = vadd.f32 %v1610, %v1529
    %v1612 = vadd.f32 %v1611, %v1533
    %v1613 = vadd.f32 %v1612, %v1537
    %v1614 = vadd.f32 %v1613, %v1541
    %v1615 = vadd.f32 %v1614, %v1545
    %v1616 = vadd.f32 %v1615, %v1549
    %v1617 = vadd.f32 %v1616, %v1553
    %v1618 = vadd.f32 %v1617, %v1557
    %v1619 = vadd.f32 %v1618, %v1561
    %v1620 = vadd.f32 %v1619, %v1565
    %v1621 = vadd.f32 %v1620, %v1569
    %v1622 = vadd.f32 %v1621, %v1573
    %v1623 = vadd.f32 %v1622, %v1577
    %v1624 = vadd.f32 %v1518, %v1522
    %v1625 = vadd.f32 %v1624, %v1526
    %v1626 = vadd.f32 %v1625, %v1530
    %v1627 = vadd.f32 %v1626, %v1534
    %v1628 = vadd.f32 %v1627, %v1538
    %v1629 = vadd.f32 %v1628, %v1542
    %v1630 = vadd.f32 %v1629, %v1546
    %v1631 = vadd.f32 %v1630, %v1550
    %v1632 = vadd.f32 %v1631, %v1554
    %v1633 = vadd.f32 %v1632, %v1558
    %v1634 = vadd.f32 %v1633, %v1562
    %v1635 = vadd.f32 %v1634, %v1566
    %v1636 = vadd.f32 %v1635, %v1570
    %v1637 = vadd.f32 %v1636, %v1574
    %v1638 = vadd.f32 %v1637, %v1578
    %v1639 = vadd.f32 %v805, %v1593
    %v1640 = vadd.f32 %v806, %v1608
    %v1641 = vadd.f32 %v807, %v1623
    %v1642 = vadd.f32 %v808, %v1638
    %v1643 = vmul.f32 %v1131, %v1195
    %v1644 = vmul.f32 %v1132, %v1196
    %v1645 = vmul.f32 %v1133, %v1197
    %v1646 = vmul.f32 %v1134, %v1198
    %v1647 = vmul.f32 %v1135, %v1199
    %v1648 = vmul.f32 %v1136, %v1200
    %v1649 = vmul.f32 %v1137, %v1201
    %v1650 = vmul.f32 %v1138, %v1202
    %v1651 = vmul.f32 %v1139, %v1203
    %v1652 = vmul.f32 %v1140, %v1204
    %v1653 = vmul.f32 %v1141, %v1205
    %v1654 = vmul.f32 %v1142, %v1206
    %v1655 = vmul.f32 %v1143, %v1207
    %v1656 = vmul.f32 %v1144, %v1208
    %v1657 = vmul.f32 %v1145, %v1209
    %v1658 = vmul.f32 %v1146, %v1210
    %v1659 = vmul.f32 %v1147, %v1211
    %v1660 = vmul.f32 %v1148, %v1212
    %v1661 = vmul.f32 %v1149, %v1213
    %v1662 = vmul.f32 %v1150, %v1214
    %v1663 = vmul.f32 %v1151, %v1215
    %v1664 = vmul.f32 %v1152, %v1216
    %v1665 = vmul.f32 %v1153, %v1217
    %v1666 = vmul.f32 %v1154, %v1218
    %v1667 = vmul.f32 %v1155, %v1219
    %v1668 = vmul.f32 %v1156, %v1220
    %v1669 = vmul.f32 %v1157, %v1221
    %v1670 = vmul.f32 %v1158, %v1222
    %v1671 = vmul.f32 %v1159, %v1223
    %v1672 = vmul.f32 %v1160, %v1224
    %v1673 = vmul.f32 %v1161, %v1225
    %v1674 = vmul.f32 %v1162, %v1226
    %v1675 = vmul.f32 %v1163, %v1227
    %v1676 = vmul.f32 %v1164, %v1228
    %v1677 = vmul.f32 %v1165, %v1229
    %v1678 = vmul.f32 %v1166, %v1230
    %v1679 = vmul.f32 %v1167, %v1231
    %v1680 = vmul.f32 %v1168, %v1232
    %v1681 = vmul.f32 %v1169, %v1233
    %v1682 = vmul.f32 %v1170, %v1234
    %v1683 = vmul.f32 %v1171, %v1235
    %v1684 = vmul.f32 %v1172, %v1236
    %v1685 = vmul.f32 %v1173, %v1237
    %v1686 = vmul.f32 %v1174, %v1238
    %v1687 = vmul.f32 %v1175, %v1239
    %v1688 = vmul.f32 %v1176, %v1240
    %v1689 = vmul.f32 %v1177, %v1241
    %v1690 = vmul.f32 %v1178, %v1242
    %v1691 = vmul.f32 %v1179, %v1243
    %v1692 = vmul.f32 %v1180, %v1244
    %v1693 = vmul.f32 %v1181, %v1245
    %v1694 = vmul.f32 %v1182, %v1246
    %v1695 = vmul.f32 %v1183, %v1247
    %v1696 = vmul.f32 %v1184, %v1248
    %v1697 = vmul.f32 %v1185, %v1249
    %v1698 = vmul.f32 %v1186, %v1250
    %v1699 = vmul.f32 %v1187, %v1251
    %v1700 = vmul.f32 %v1188, %v1252
    %v1701 = vmul.f32 %v1189, %v1253
    %v1702 = vmul.f32 %v1190, %v1254
    %v1703 = vmul.f32 %v1191, %v1255
    %v1704 = vmul.f32 %v1192, %v1256
    %v1705 = vmul.f32 %v1193, %v1257
    %v1706 = vmul.f32 %v1194, %v1258
    %v1707 = vadd.f32 %v1643, %v1647
    %v1708 = vadd.f32 %v1707, %v1651
    %v1709 = vadd.f32 %v1708, %v1655
    %v1710 = vadd.f32 %v1709, %v1659
    %v1711 = vadd.f32 %v1710, %v1663
    %v1712 = vadd.f32 %v1711, %v1667
    %v1713 = vadd.f32 %v1712, %v1671
    %v1714 = vadd.f32 %v1713, %v1675
    %v1715 = vadd.f32 %v1714, %v1679
    %v1716 = vadd.f32 %v1715, %v1683
    %v1717 = vadd.f32 %v1716, %v1687
    %v1718 = vadd.f32 %v1717, %v1691
    %v1719 = vadd.f32 %v1718, %v1695
    %v1720 = vadd.f32 %v1719, %v1699
    %v1721 = vadd.f32 %v1720, %v1703
    %v1722 = vadd.f32 %v1644, %v1648
    %v1723 = vadd.f32 %v1722, %v1652
    %v1724 = vadd.f32 %v1723, %v1656
    %v1725 = vadd.f32 %v1724, %v1660
    %v1726 = vadd.f32 %v1725, %v1664
    %v1727 = vadd.f32 %v1726, %v1668
    %v1728 = vadd.f32 %v1727, %v1672
    %v1729 = vadd.f32 %v1728, %v1676
    %v1730 = vadd.f32 %v1729, %v1680
    %v1731 = vadd.f32 %v1730, %v1684
    %v1732 = vadd.f32 %v1731, %v1688
    %v1733 = vadd.f32 %v1732, %v1692
    %v1734 = vadd.f32 %v1733, %v1696
    %v1735 = vadd.f32 %v1734, %v1700
    %v1736 = vadd.f32 %v1735, %v1704
    %v1737 = vadd.f32 %v1645, %v1649
    %v1738 = vadd.f32 %v1737, %v1653
    %v1739 = vadd.f32 %v1738, %v1657
    %v1740 = vadd.f32 %v1739, %v1661
    %v1741 = vadd.f32 %v1740, %v1665
    %v1742 = vadd.f32 %v1741, %v1669
    %v1743 = vadd.f32 %v1742, %v1673
    %v1744 = vadd.f32 %v1743, %v1677
    %v1745 = vadd.f32 %v1744, %v1681
    %v1746 = vadd.f32 %v1745, %v1685
    %v1747 = vadd.f32 %v1746, %v1689
    %v1748 = vadd.f32 %v1747, %v1693
    %v1749 = vadd.f32 %v1748, %v1697
    %v1750 = vadd.f32 %v1749, %v1701
    %v1751 = vadd.f32 %v1750, %v1705
    %v1752 = vadd.f32 %v1646, %v1650
    %v1753 = vadd.f32 %v1752, %v1654
    %v1754 = vadd.f32 %v1753, %v1658
    %v1755 = vadd.f32 %v1754, %v1662
    %v1756 = vadd.f32 %v1755, %v1666
    %v1757 = vadd.f32 %v1756, %v1670
    %v1758 = vadd.f32 %v1757, %v1674
    %v1759 = vadd.f32 %v1758, %v1678
    %v1760 = vadd.f32 %v1759, %v1682
    %v1761 = vadd.f32 %v1760, %v1686
    %v1762 = vadd.f32 %v1761, %v1690
    %v1763 = vadd.f32 %v1762, %v1694
    %v1764 = vadd.f32 %v1763, %v1698
    %v1765 = vadd.f32 %v1764, %v1702
    %v1766 = vadd.f32 %v1765, %v1706
    %v1767 = vadd.f32 %v933, %v1721
    %v1768 = vadd.f32 %v934, %v1736
    %v1769 = vadd.f32 %v935, %v1751
    %v1770 = vadd.f32 %v936, %v1766
    %v1771 = vld [vmem:[#allocation3 + $0x400] sm:$0xff]
    %v1772 = vld [vmem:[#allocation3 + $0x408] sm:$0xff]
    %v1773 = vld [vmem:[#allocation3 + $0x410] sm:$0xff]
    %v1774 = vld [vmem:[#allocation3 + $0x418] sm:$0xff]
    %v1775 = vld [vmem:[#allocation3 + $0x420] sm:$0xff]
    %v1776 = vld [vmem:[#allocation3 + $0x428] sm:$0xff]
    %v1777 = vld [vmem:[#allocation3 + $0x430] sm:$0xff]
    %v1778 = vld [vmem:[#allocation3 + $0x438] sm:$0xff]
    %v1779 = vld [vmem:[#allocation3 + $0x440] sm:$0xff]
    %v1780 = vld [vmem:[#allocation3 + $0x448] sm:$0xff]
    %v1781 = vld [vmem:[#allocation3 + $0x450] sm:$0xff]
    %v1782 = vld [vmem:[#allocation3 + $0x458] sm:$0xff]
    %v1783 = vld [vmem:[#allocation3 + $0x460] sm:$0xff]
    %v1784 = vld [vmem:[#allocation3 + $0x468] sm:$0xff]
    %v1785 = vld [vmem:[#allocation3 + $0x470] sm:$0xff]
    %v1786 = vld [vmem:[#allocation3 + $0x478] sm:$0xff]
    %v1787 = vld [vmem:[#allocation3 + $0x480] sm:$0xff]
    %v1788 = vld [vmem:[#allocation3 + $0x488] sm:$0xff]
    %v1789 = vld [vmem:[#allocation3 + $0x490] sm:$0xff]
    %v1790 = vld [vmem:[#allocation3 + $0x498] sm:$0xff]
    %v1791 = vld [vmem:[#allocation3 + $0x4a0] sm:$0xff]
    %v1792 = vld [vmem:[#allocation3 + $0x4a8] sm:$0xff]
    %v1793 = vld [vmem:[#allocation3 + $0x4b0] sm:$0xff]
    %v1794 = vld [vmem:[#allocation3 + $0x4b8] sm:$0xff]
    %v1795 = vld [vmem:[#allocation3 + $0x4c0] sm:$0xff]
    %v1796 = vld [vmem:[#allocation3 + $0x4c8] sm:$0xff]
    %v1797 = vld [vmem:[#allocation3 + $0x4d0] sm:$0xff]
    %v1798 = vld [vmem:[#allocation3 + $0x4d8] sm:$0xff]
    %v1799 = vld [vmem:[#allocation3 + $0x4e0] sm:$0xff]
    %v1800 = vld [vmem:[#allocation3 + $0x4e8] sm:$0xff]
    %v1801 = vld [vmem:[#allocation3 + $0x4f0] sm:$0xff]
    %v1802 = vld [vmem:[#allocation3 + $0x4f8] sm:$0xff]
    %v1803 = vld [vmem:[#allocation3 + $0x500] sm:$0xff]
    %v1804 = vld [vmem:[#allocation3 + $0x508] sm:$0xff]
    %v1805 = vld [vmem:[#allocation3 + $0x510] sm:$0xff]
    %v1806 = vld [vmem:[#allocation3 + $0x518] sm:$0xff]
    %v1807 = vld [vmem:[#allocation3 + $0x520] sm:$0xff]
    %v1808 = vld [vmem:[#allocation3 + $0x528] sm:$0xff]
    %v1809 = vld [vmem:[#allocation3 + $0x530] sm:$0xff]
    %v1810 = vld [vmem:[#allocation3 + $0x538] sm:$0xff]
    %v1811 = vld [vmem:[#allocation3 + $0x540] sm:$0xff]
    %v1812 = vld [vmem:[#allocation3 + $0x548] sm:$0xff]
    %v1813 = vld [vmem:[#allocation3 + $0x550] sm:$0xff]
    %v1814 = vld [vmem:[#allocation3 + $0x558] sm:$0xff]
    %v1815 = vld [vmem:[#allocation3 + $0x560] sm:$0xff]
    %v1816 = vld [vmem:[#allocation3 + $0x568] sm:$0xff]
    %v1817 = vld [vmem:[#allocation3 + $0x570] sm:$0xff]
    %v1818 = vld [vmem:[#allocation3 + $0x578] sm:$0xff]
    %v1819 = vld [vmem:[#allocation3 + $0x580] sm:$0xff]
    %v1820 = vld [vmem:[#allocation3 + $0x588] sm:$0xff]
    %v1821 = vld [vmem:[#allocation3 + $0x590] sm:$0xff]
    %v1822 = vld [vmem:[#allocation3 + $0x598] sm:$0xff]
    %v1823 = vld [vmem:[#allocation3 + $0x5a0] sm:$0xff]
    %v1824 = vld [vmem:[#allocation3 + $0x5a8] sm:$0xff]
    %v1825 = vld [vmem:[#allocation3 + $0x5b0] sm:$0xff]
    %v1826 = vld [vmem:[#allocation3 + $0x5b8] sm:$0xff]
    %v1827 = vld [vmem:[#allocation3 + $0x5c0] sm:$0xff]
    %v1828 = vld [vmem:[#allocation3 + $0x5c8] sm:$0xff]
    %v1829 = vld [vmem:[#allocation3 + $0x5d0] sm:$0xff]
    %v1830 = vld [vmem:[#allocation3 + $0x5d8] sm:$0xff]
    %v1831 = vld [vmem:[#allocation3 + $0x5e0] sm:$0xff]
    %v1832 = vld [vmem:[#allocation3 + $0x5e8] sm:$0xff]
    %v1833 = vld [vmem:[#allocation3 + $0x5f0] sm:$0xff]
    %v1834 = vld [vmem:[#allocation3 + $0x5f8] sm:$0xff]
    %v1835 = vld [vmem:[#allocation5 + $0x400] sm:$0xff]
    %v1836 = vld [vmem:[#allocation5 + $0x408] sm:$0xff]
    %v1837 = vld [vmem:[#allocation5 + $0x410] sm:$0xff]
    %v1838 = vld [vmem:[#allocation5 + $0x418] sm:$0xff]
    %v1839 = vld [vmem:[#allocation5 + $0x420] sm:$0xff]
    %v1840 = vld [vmem:[#allocation5 + $0x428] sm:$0xff]
    %v1841 = vld [vmem:[#allocation5 + $0x430] sm:$0xff]
    %v1842 = vld [vmem:[#allocation5 + $0x438] sm:$0xff]
    %v1843 = vld [vmem:[#allocation5 + $0x440] sm:$0xff]
    %v1844 = vld [vmem:[#allocation5 + $0x448] sm:$0xff]
    %v1845 = vld [vmem:[#allocation5 + $0x450] sm:$0xff]
    %v1846 = vld [vmem:[#allocation5 + $0x458] sm:$0xff]
    %v1847 = vld [vmem:[#allocation5 + $0x460] sm:$0xff]
    %v1848 = vld [vmem:[#allocation5 + $0x468] sm:$0xff]
    %v1849 = vld [vmem:[#allocation5 + $0x470] sm:$0xff]
    %v1850 = vld [vmem:[#allocation5 + $0x478] sm:$0xff]
    %v1851 = vld [vmem:[#allocation5 + $0x480] sm:$0xff]
    %v1852 = vld [vmem:[#allocation5 + $0x488] sm:$0xff]
    %v1853 = vld [vmem:[#allocation5 + $0x490] sm:$0xff]
    %v1854 = vld [vmem:[#allocation5 + $0x498] sm:$0xff]
    %v1855 = vld [vmem:[#allocation5 + $0x4a0] sm:$0xff]
    %v1856 = vld [vmem:[#allocation5 + $0x4a8] sm:$0xff]
    %v1857 = vld [vmem:[#allocation5 + $0x4b0] sm:$0xff]
    %v1858 = vld [vmem:[#allocation5 + $0x4b8] sm:$0xff]
    %v1859 = vld [vmem:[#allocation5 + $0x4c0] sm:$0xff]
    %v1860 = vld [vmem:[#allocation5 + $0x4c8] sm:$0xff]
    %v1861 = vld [vmem:[#allocation5 + $0x4d0] sm:$0xff]
    %v1862 = vld [vmem:[#allocation5 + $0x4d8] sm:$0xff]
    %v1863 = vld [vmem:[#allocation5 + $0x4e0] sm:$0xff]
    %v1864 = vld [vmem:[#allocation5 + $0x4e8] sm:$0xff]
    %v1865 = vld [vmem:[#allocation5 + $0x4f0] sm:$0xff]
    %v1866 = vld [vmem:[#allocation5 + $0x4f8] sm:$0xff]
    %v1867 = vld [vmem:[#allocation5 + $0x500] sm:$0xff]
    %v1868 = vld [vmem:[#allocation5 + $0x508] sm:$0xff]
    %v1869 = vld [vmem:[#allocation5 + $0x510] sm:$0xff]
    %v1870 = vld [vmem:[#allocation5 + $0x518] sm:$0xff]
    %v1871 = vld [vmem:[#allocation5 + $0x520] sm:$0xff]
    %v1872 = vld [vmem:[#allocation5 + $0x528] sm:$0xff]
    %v1873 = vld [vmem:[#allocation5 + $0x530] sm:$0xff]
    %v1874 = vld [vmem:[#allocation5 + $0x538] sm:$0xff]
    %v1875 = vld [vmem:[#allocation5 + $0x540] sm:$0xff]
    %v1876 = vld [vmem:[#allocation5 + $0x548] sm:$0xff]
    %v1877 = vld [vmem:[#allocation5 + $0x550] sm:$0xff]
    %v1878 = vld [vmem:[#allocation5 + $0x558] sm:$0xff]
    %v1879 = vld [vmem:[#allocation5 + $0x560] sm:$0xff]
    %v1880 = vld [vmem:[#allocation5 + $0x568] sm:$0xff]
    %v1881 = vld [vmem:[#allocation5 + $0x570] sm:$0xff]
    %v1882 = vld [vmem:[#allocation5 + $0x578] sm:$0xff]
    %v1883 = vld [vmem:[#allocation5 + $0x580] sm:$0xff]
    %v1884 = vld [vmem:[#allocation5 + $0x588] sm:$0xff]
    %v1885 = vld [vmem:[#allocation5 + $0x590] sm:$0xff]
    %v1886 = vld [vmem:[#allocation5 + $0x598] sm:$0xff]
    %v1887 = vld [vmem:[#allocation5 + $0x5a0] sm:$0xff]
    %v1888 = vld [vmem:[#allocation5 + $0x5a8] sm:$0xff]
    %v1889 = vld [vmem:[#allocation5 + $0x5b0] sm:$0xff]
    %v1890 = vld [vmem:[#allocation5 + $0x5b8] sm:$0xff]
    %v1891 = vld [vmem:[#allocation5 + $0x5c0] sm:$0xff]
    %v1892 = vld [vmem:[#allocation5 + $0x5c8] sm:$0xff]
    %v1893 = vld [vmem:[#allocation5 + $0x5d0] sm:$0xff]
    %v1894 = vld [vmem:[#allocation5 + $0x5d8] sm:$0xff]
    %v1895 = vld [vmem:[#allocation5 + $0x5e0] sm:$0xff]
    %v1896 = vld [vmem:[#allocation5 + $0x5e8] sm:$0xff]
    %v1897 = vld [vmem:[#allocation5 + $0x5f0] sm:$0xff]
    %v1898 = vld [vmem:[#allocation5 + $0x5f8] sm:$0xff]
    %s1899 = sadd.s32 %s86, 256
    %v1900 = vstv %s1899
    %v1901 = vadd.s32 %v216, %v1900
    %v1902 = vadd.s32 %v217, %v1900
    %v1903 = vadd.s32 %v218, %v1900
    %v1904 = vadd.s32 %v219, %v1900
    %v1905 = vadd.s32 %v220, %v1900
    %v1906 = vadd.s32 %v221, %v1900
    %v1907 = vadd.s32 %v222, %v1900
    %v1908 = vadd.s32 %v223, %v1900
    %v1909 = vadd.s32 %v224, %v1900
    %v1910 = vadd.s32 %v225, %v1900
    %v1911 = vadd.s32 %v226, %v1900
    %v1912 = vadd.s32 %v227, %v1900
    %v1913 = vadd.s32 %v228, %v1900
    %v1914 = vadd.s32 %v229, %v1900
    %v1915 = vadd.s32 %v230, %v1900
    %v1916 = vadd.s32 %v231, %v1900
    %vm1917 = vcmp.lt.s32.totalorder %v1901, 512
    %vm1918 = vcmp.lt.s32.totalorder %v1902, 512
    %vm1919 = vcmp.lt.s32.totalorder %v1903, 512
    %vm1920 = vcmp.lt.s32.totalorder %v1904, 512
    %vm1921 = vcmp.lt.s32.totalorder %v1905, 512
    %vm1922 = vcmp.lt.s32.totalorder %v1906, 512
    %vm1923 = vcmp.lt.s32.totalorder %v1907, 512
    %vm1924 = vcmp.lt.s32.totalorder %v1908, 512
    %vm1925 = vcmp.lt.s32.totalorder %v1909, 512
    %vm1926 = vcmp.lt.s32.totalorder %v1910, 512
    %vm1927 = vcmp.lt.s32.totalorder %v1911, 512
    %vm1928 = vcmp.lt.s32.totalorder %v1912, 512
    %vm1929 = vcmp.lt.s32.totalorder %v1913, 512
    %vm1930 = vcmp.lt.s32.totalorder %v1914, 512
    %vm1931 = vcmp.lt.s32.totalorder %v1915, 512
    %vm1932 = vcmp.lt.s32.totalorder %v1916, 512
    %v1933 = vsel %vm1917, 1, 0
    %v1934 = vsel %vm1918, 1, 0
    %v1935 = vsel %vm1919, 1, 0
    %v1936 = vsel %vm1920, 1, 0
    %v1937 = vsel %vm1921, 1, 0
    %v1938 = vsel %vm1922, 1, 0
    %v1939 = vsel %vm1923, 1, 0
    %v1940 = vsel %vm1924, 1, 0
    %v1941 = vsel %vm1925, 1, 0
    %v1942 = vsel %vm1926, 1, 0
    %v1943 = vsel %vm1927, 1, 0
    %v1944 = vsel %vm1928, 1, 0
    %v1945 = vsel %vm1929, 1, 0
    %v1946 = vsel %vm1930, 1, 0
    %v1947 = vsel %vm1931, 1, 0
    %v1948 = vsel %vm1932, 1, 0
    %vm1949 = vcmp.eq.s32.totalorder %v1933, 1
    %vm1950 = vcmp.eq.s32.totalorder %v1934, 1
    %vm1951 = vcmp.eq.s32.totalorder %v1935, 1
    %vm1952 = vcmp.eq.s32.totalorder %v1936, 1
    %vm1953 = vcmp.eq.s32.totalorder %v1937, 1
    %vm1954 = vcmp.eq.s32.totalorder %v1938, 1
    %vm1955 = vcmp.eq.s32.totalorder %v1939, 1
    %vm1956 = vcmp.eq.s32.totalorder %v1940, 1
    %vm1957 = vcmp.eq.s32.totalorder %v1941, 1
    %vm1958 = vcmp.eq.s32.totalorder %v1942, 1
    %vm1959 = vcmp.eq.s32.totalorder %v1943, 1
    %vm1960 = vcmp.eq.s32.totalorder %v1944, 1
    %vm1961 = vcmp.eq.s32.totalorder %v1945, 1
    %vm1962 = vcmp.eq.s32.totalorder %v1946, 1
    %vm1963 = vcmp.eq.s32.totalorder %v1947, 1
    %vm1964 = vcmp.eq.s32.totalorder %v1948, 1
    %v1965 = vsel %vm1949, %v1771, 0.0
    %v1966 = vsel %vm1949, %v1772, 0.0
    %v1967 = vsel %vm1949, %v1773, 0.0
    %v1968 = vsel %vm1949, %v1774, 0.0
    %v1969 = vsel %vm1950, %v1775, 0.0
    %v1970 = vsel %vm1950, %v1776, 0.0
    %v1971 = vsel %vm1950, %v1777, 0.0
    %v1972 = vsel %vm1950, %v1778, 0.0
    %v1973 = vsel %vm1951, %v1779, 0.0
    %v1974 = vsel %vm1951, %v1780, 0.0
    %v1975 = vsel %vm1951, %v1781, 0.0
    %v1976 = vsel %vm1951, %v1782, 0.0
    %v1977 = vsel %vm1952, %v1783, 0.0
    %v1978 = vsel %vm1952, %v1784, 0.0
    %v1979 = vsel %vm1952, %v1785, 0.0
    %v1980 = vsel %vm1952, %v1786, 0.0
    %v1981 = vsel %vm1953, %v1787, 0.0
    %v1982 = vsel %vm1953, %v1788, 0.0
    %v1983 = vsel %vm1953, %v1789, 0.0
    %v1984 = vsel %vm1953, %v1790, 0.0
    %v1985 = vsel %vm1954, %v1791, 0.0
    %v1986 = vsel %vm1954, %v1792, 0.0
    %v1987 = vsel %vm1954, %v1793, 0.0
    %v1988 = vsel %vm1954, %v1794, 0.0
    %v1989 = vsel %vm1955, %v1795, 0.0
    %v1990 = vsel %vm1955, %v1796, 0.0
    %v1991 = vsel %vm1955, %v1797, 0.0
    %v1992 = vsel %vm1955, %v1798, 0.0
    %v1993 = vsel %vm1956, %v1799, 0.0
    %v1994 = vsel %vm1956, %v1800, 0.0
    %v1995 = vsel %vm1956, %v1801, 0.0
    %v1996 = vsel %vm1956, %v1802, 0.0
    %v1997 = vsel %vm1957, %v1803, 0.0
    %v1998 = vsel %vm1957, %v1804, 0.0
    %v1999 = vsel %vm1957, %v1805, 0.0
    %v2000 = vsel %vm1957, %v1806, 0.0
    %v2001 = vsel %vm1958, %v1807, 0.0
    %v2002 = vsel %vm1958, %v1808, 0.0
    %v2003 = vsel %vm1958, %v1809, 0.0
    %v2004 = vsel %vm1958, %v1810, 0.0
    %v2005 = vsel %vm1959, %v1811, 0.0
    %v2006 = vsel %vm1959, %v1812, 0.0
    %v2007 = vsel %vm1959, %v1813, 0.0
    %v2008 = vsel %vm1959, %v1814, 0.0
    %v2009 = vsel %vm1960, %v1815, 0.0
    %v2010 = vsel %vm1960, %v1816, 0.0
    %v2011 = vsel %vm1960, %v1817, 0.0
    %v2012 = vsel %vm1960, %v1818, 0.0
    %v2013 = vsel %vm1961, %v1819, 0.0
    %v2014 = vsel %vm1961, %v1820, 0.0
    %v2015 = vsel %vm1961, %v1821, 0.0
    %v2016 = vsel %vm1961, %v1822, 0.0
    %v2017 = vsel %vm1962, %v1823, 0.0
    %v2018 = vsel %vm1962, %v1824, 0.0
    %v2019 = vsel %vm1962, %v1825, 0.0
    %v2020 = vsel %vm1962, %v1826, 0.0
    %v2021 = vsel %vm1963, %v1827, 0.0
    %v2022 = vsel %vm1963, %v1828, 0.0
    %v2023 = vsel %vm1963, %v1829, 0.0
    %v2024 = vsel %vm1963, %v1830, 0.0
    %v2025 = vsel %vm1964, %v1831, 0.0
    %v2026 = vsel %vm1964, %v1832, 0.0
    %v2027 = vsel %vm1964, %v1833, 0.0
    %v2028 = vsel %vm1964, %v1834, 0.0
    %v2029 = vsel %vm1949, %v1835, 0.0
    %v2030 = vsel %vm1949, %v1836, 0.0
    %v2031 = vsel %vm1949, %v1837, 0.0
    %v2032 = vsel %vm1949, %v1838, 0.0
    %v2033 = vsel %vm1950, %v1839, 0.0
    %v2034 = vsel %vm1950, %v1840, 0.0
    %v2035 = vsel %vm1950, %v1841, 0.0
    %v2036 = vsel %vm1950, %v1842, 0.0
    %v2037 = vsel %vm1951, %v1843, 0.0
    %v2038 = vsel %vm1951, %v1844, 0.0
    %v2039 = vsel %vm1951, %v1845, 0.0
    %v2040 = vsel %vm1951, %v1846, 0.0
    %v2041 = vsel %vm1952, %v1847, 0.0
    %v2042 = vsel %vm1952, %v1848, 0.0
    %v2043 = vsel %vm1952, %v1849, 0.0
    %v2044 = vsel %vm1952, %v1850, 0.0
    %v2045 = vsel %vm1953, %v1851, 0.0
    %v2046 = vsel %vm1953, %v1852, 0.0
    %v2047 = vsel %vm1953, %v1853, 0.0
    %v2048 = vsel %vm1953, %v1854, 0.0
    %v2049 = vsel %vm1954, %v1855, 0.0
    %v2050 = vsel %vm1954, %v1856, 0.0
    %v2051 = vsel %vm1954, %v1857, 0.0
    %v2052 = vsel %vm1954, %v1858, 0.0
    %v2053 = vsel %vm1955, %v1859, 0.0
    %v2054 = vsel %vm1955, %v1860, 0.0
    %v2055 = vsel %vm1955, %v1861, 0.0
    %v2056 = vsel %vm1955, %v1862, 0.0
    %v2057 = vsel %vm1956, %v1863, 0.0
    %v2058 = vsel %vm1956, %v1864, 0.0
    %v2059 = vsel %vm1956, %v1865, 0.0
    %v2060 = vsel %vm1956, %v1866, 0.0
    %v2061 = vsel %vm1957, %v1867, 0.0
    %v2062 = vsel %vm1957, %v1868, 0.0
    %v2063 = vsel %vm1957, %v1869, 0.0
    %v2064 = vsel %vm1957, %v1870, 0.0
    %v2065 = vsel %vm1958, %v1871, 0.0
    %v2066 = vsel %vm1958, %v1872, 0.0
    %v2067 = vsel %vm1958, %v1873, 0.0
    %v2068 = vsel %vm1958, %v1874, 0.0
    %v2069 = vsel %vm1959, %v1875, 0.0
    %v2070 = vsel %vm1959, %v1876, 0.0
    %v2071 = vsel %vm1959, %v1877, 0.0
    %v2072 = vsel %vm1959, %v1878, 0.0
    %v2073 = vsel %vm1960, %v1879, 0.0
    %v2074 = vsel %vm1960, %v1880, 0.0
    %v2075 = vsel %vm1960, %v1881, 0.0
    %v2076 = vsel %vm1960, %v1882, 0.0
    %v2077 = vsel %vm1961, %v1883, 0.0
    %v2078 = vsel %vm1961, %v1884, 0.0
    %v2079 = vsel %vm1961, %v1885, 0.0
    %v2080 = vsel %vm1961, %v1886, 0.0
    %v2081 = vsel %vm1962, %v1887, 0.0
    %v2082 = vsel %vm1962, %v1888, 0.0
    %v2083 = vsel %vm1962, %v1889, 0.0
    %v2084 = vsel %vm1962, %v1890, 0.0
    %v2085 = vsel %vm1963, %v1891, 0.0
    %v2086 = vsel %vm1963, %v1892, 0.0
    %v2087 = vsel %vm1963, %v1893, 0.0
    %v2088 = vsel %vm1963, %v1894, 0.0
    %v2089 = vsel %vm1964, %v1895, 0.0
    %v2090 = vsel %vm1964, %v1896, 0.0
    %v2091 = vsel %vm1964, %v1897, 0.0
    %v2092 = vsel %vm1964, %v1898, 0.0
    %v2093 = vadd.f32 %v1965, %v1969
    %v2094 = vadd.f32 %v2093, %v1973
    %v2095 = vadd.f32 %v2094, %v1977
    %v2096 = vadd.f32 %v2095, %v1981
    %v2097 = vadd.f32 %v2096, %v1985
    %v2098 = vadd.f32 %v2097, %v1989
    %v2099 = vadd.f32 %v2098, %v1993
    %v2100 = vadd.f32 %v2099, %v1997
    %v2101 = vadd.f32 %v2100, %v2001
    %v2102 = vadd.f32 %v2101, %v2005
    %v2103 = vadd.f32 %v2102, %v2009
    %v2104 = vadd.f32 %v2103, %v2013
    %v2105 = vadd.f32 %v2104, %v2017
    %v2106 = vadd.f32 %v2105, %v2021
    %v2107 = vadd.f32 %v2106, %v2025
    %v2108 = vadd.f32 %v1966, %v1970
    %v2109 = vadd.f32 %v2108, %v1974
    %v2110 = vadd.f32 %v2109, %v1978
    %v2111 = vadd.f32 %v2110, %v1982
    %v2112 = vadd.f32 %v2111, %v1986
    %v2113 = vadd.f32 %v2112, %v1990
    %v2114 = vadd.f32 %v2113, %v1994
    %v2115 = vadd.f32 %v2114, %v1998
    %v2116 = vadd.f32 %v2115, %v2002
    %v2117 = vadd.f32 %v2116, %v2006
    %v2118 = vadd.f32 %v2117, %v2010
    %v2119 = vadd.f32 %v2118, %v2014
    %v2120 = vadd.f32 %v2119, %v2018
    %v2121 = vadd.f32 %v2120, %v2022
    %v2122 = vadd.f32 %v2121, %v2026
    %v2123 = vadd.f32 %v1967, %v1971
    %v2124 = vadd.f32 %v2123, %v1975
    %v2125 = vadd.f32 %v2124, %v1979
    %v2126 = vadd.f32 %v2125, %v1983
    %v2127 = vadd.f32 %v2126, %v1987
    %v2128 = vadd.f32 %v2127, %v1991
    %v2129 = vadd.f32 %v2128, %v1995
    %v2130 = vadd.f32 %v2129, %v1999
    %v2131 = vadd.f32 %v2130, %v2003
    %v2132 = vadd.f32 %v2131, %v2007
    %v2133 = vadd.f32 %v2132, %v2011
    %v2134 = vadd.f32 %v2133, %v2015
    %v2135 = vadd.f32 %v2134, %v2019
    %v2136 = vadd.f32 %v2135, %v2023
    %v2137 = vadd.f32 %v2136, %v2027
    %v2138 = vadd.f32 %v1968, %v1972
    %v2139 = vadd.f32 %v2138, %v1976
    %v2140 = vadd.f32 %v2139, %v1980
    %v2141 = vadd.f32 %v2140, %v1984
    %v2142 = vadd.f32 %v2141, %v1988
    %v2143 = vadd.f32 %v2142, %v1992
    %v2144 = vadd.f32 %v2143, %v1996
    %v2145 = vadd.f32 %v2144, %v2000
    %v2146 = vadd.f32 %v2145, %v2004
    %v2147 = vadd.f32 %v2146, %v2008
    %v2148 = vadd.f32 %v2147, %v2012
    %v2149 = vadd.f32 %v2148, %v2016
    %v2150 = vadd.f32 %v2149, %v2020
    %v2151 = vadd.f32 %v2150, %v2024
    %v2152 = vadd.f32 %v2151, %v2028
    %v2153 = vadd.f32 %v1319, %v2107
    %v2154 = vadd.f32 %v1320, %v2122
    %v2155 = vadd.f32 %v1321, %v2137
    %v2156 = vadd.f32 %v1322, %v2152
    %v2157 = vadd.f32 %v2029, %v2033
    %v2158 = vadd.f32 %v2157, %v2037
    %v2159 = vadd.f32 %v2158, %v2041
    %v2160 = vadd.f32 %v2159, %v2045
    %v2161 = vadd.f32 %v2160, %v2049
    %v2162 = vadd.f32 %v2161, %v2053
    %v2163 = vadd.f32 %v2162, %v2057
    %v2164 = vadd.f32 %v2163, %v2061
    %v2165 = vadd.f32 %v2164, %v2065
    %v2166 = vadd.f32 %v2165, %v2069
    %v2167 = vadd.f32 %v2166, %v2073
    %v2168 = vadd.f32 %v2167, %v2077
    %v2169 = vadd.f32 %v2168, %v2081
    %v2170 = vadd.f32 %v2169, %v2085
    %v2171 = vadd.f32 %v2170, %v2089
    %v2172 = vadd.f32 %v2030, %v2034
    %v2173 = vadd.f32 %v2172, %v2038
    %v2174 = vadd.f32 %v2173, %v2042
    %v2175 = vadd.f32 %v2174, %v2046
    %v2176 = vadd.f32 %v2175, %v2050
    %v2177 = vadd.f32 %v2176, %v2054
    %v2178 = vadd.f32 %v2177, %v2058
    %v2179 = vadd.f32 %v2178, %v2062
    %v2180 = vadd.f32 %v2179, %v2066
    %v2181 = vadd.f32 %v2180, %v2070
    %v2182 = vadd.f32 %v2181, %v2074
    %v2183 = vadd.f32 %v2182, %v2078
    %v2184 = vadd.f32 %v2183, %v2082
    %v2185 = vadd.f32 %v2184, %v2086
    %v2186 = vadd.f32 %v2185, %v2090
    %v2187 = vadd.f32 %v2031, %v2035
    %v2188 = vadd.f32 %v2187, %v2039
    %v2189 = vadd.f32 %v2188, %v2043
    %v2190 = vadd.f32 %v2189, %v2047
    %v2191 = vadd.f32 %v2190, %v2051
    %v2192 = vadd.f32 %v2191, %v2055
    %v2193 = vadd.f32 %v2192, %v2059
    %v2194 = vadd.f32 %v2193, %v2063
    %v2195 = vadd.f32 %v2194, %v2067
    %v2196 = vadd.f32 %v2195, %v2071
    %v2197 = vadd.f32 %v2196, %v2075
    %v2198 = vadd.f32 %v2197, %v2079
    %v2199 = vadd.f32 %v2198, %v2083
    %v2200 = vadd.f32 %v2199, %v2087
    %v2201 = vadd.f32 %v2200, %v2091
    %v2202 = vadd.f32 %v2032, %v2036
    %v2203 = vadd.f32 %v2202, %v2040
    %v2204 = vadd.f32 %v2203, %v2044
    %v2205 = vadd.f32 %v2204, %v2048
    %v2206 = vadd.f32 %v2205, %v2052
    %v2207 = vadd.f32 %v2206, %v2056
    %v2208 = vadd.f32 %v2207, %v2060
    %v2209 = vadd.f32 %v2208, %v2064
    %v2210 = vadd.f32 %v2209, %v2068
    %v2211 = vadd.f32 %v2210, %v2072
    %v2212 = vadd.f32 %v2211, %v2076
    %v2213 = vadd.f32 %v2212, %v2080
    %v2214 = vadd.f32 %v2213, %v2084
    %v2215 = vadd.f32 %v2214, %v2088
    %v2216 = vadd.f32 %v2215, %v2092
    %v2217 = vadd.f32 %v1383, %v2171
    %v2218 = vadd.f32 %v1384, %v2186
    %v2219 = vadd.f32 %v1385, %v2201
    %v2220 = vadd.f32 %v1386, %v2216
    %v2221 = vmul.f32 %v1965, %v1965
    %v2222 = vmul.f32 %v1966, %v1966
    %v2223 = vmul.f32 %v1967, %v1967
    %v2224 = vmul.f32 %v1968, %v1968
    %v2225 = vmul.f32 %v1969, %v1969
    %v2226 = vmul.f32 %v1970, %v1970
    %v2227 = vmul.f32 %v1971, %v1971
    %v2228 = vmul.f32 %v1972, %v1972
    %v2229 = vmul.f32 %v1973, %v1973
    %v2230 = vmul.f32 %v1974, %v1974
    %v2231 = vmul.f32 %v1975, %v1975
    %v2232 = vmul.f32 %v1976, %v1976
    %v2233 = vmul.f32 %v1977, %v1977
    %v2234 = vmul.f32 %v1978, %v1978
    %v2235 = vmul.f32 %v1979, %v1979
    %v2236 = vmul.f32 %v1980, %v1980
    %v2237 = vmul.f32 %v1981, %v1981
    %v2238 = vmul.f32 %v1982, %v1982
    %v2239 = vmul.f32 %v1983, %v1983
    %v2240 = vmul.f32 %v1984, %v1984
    %v2241 = vmul.f32 %v1985, %v1985
    %v2242 = vmul.f32 %v1986, %v1986
    %v2243 = vmul.f32 %v1987, %v1987
    %v2244 = vmul.f32 %v1988, %v1988
    %v2245 = vmul.f32 %v1989, %v1989
    %v2246 = vmul.f32 %v1990, %v1990
    %v2247 = vmul.f32 %v1991, %v1991
    %v2248 = vmul.f32 %v1992, %v1992
    %v2249 = vmul.f32 %v1993, %v1993
    %v2250 = vmul.f32 %v1994, %v1994
    %v2251 = vmul.f32 %v1995, %v1995
    %v2252 = vmul.f32 %v1996, %v1996
    %v2253 = vmul.f32 %v1997, %v1997
    %v2254 = vmul.f32 %v1998, %v1998
    %v2255 = vmul.f32 %v1999, %v1999
    %v2256 = vmul.f32 %v2000, %v2000
    %v2257 = vmul.f32 %v2001, %v2001
    %v2258 = vmul.f32 %v2002, %v2002
    %v2259 = vmul.f32 %v2003, %v2003
    %v2260 = vmul.f32 %v2004, %v2004
    %v2261 = vmul.f32 %v2005, %v2005
    %v2262 = vmul.f32 %v2006, %v2006
    %v2263 = vmul.f32 %v2007, %v2007
    %v2264 = vmul.f32 %v2008, %v2008
    %v2265 = vmul.f32 %v2009, %v2009
    %v2266 = vmul.f32 %v2010, %v2010
    %v2267 = vmul.f32 %v2011, %v2011
    %v2268 = vmul.f32 %v2012, %v2012
    %v2269 = vmul.f32 %v2013, %v2013
    %v2270 = vmul.f32 %v2014, %v2014
    %v2271 = vmul.f32 %v2015, %v2015
    %v2272 = vmul.f32 %v2016, %v2016
    %v2273 = vmul.f32 %v2017, %v2017
    %v2274 = vmul.f32 %v2018, %v2018
    %v2275 = vmul.f32 %v2019, %v2019
    %v2276 = vmul.f32 %v2020, %v2020
    %v2277 = vmul.f32 %v2021, %v2021
    %v2278 = vmul.f32 %v2022, %v2022
    %v2279 = vmul.f32 %v2023, %v2023
    %v2280 = vmul.f32 %v2024, %v2024
    %v2281 = vmul.f32 %v2025, %v2025
    %v2282 = vmul.f32 %v2026, %v2026
    %v2283 = vmul.f32 %v2027, %v2027
    %v2284 = vmul.f32 %v2028, %v2028
    %v2285 = vadd.f32 %v2221, %v2225
    %v2286 = vadd.f32 %v2285, %v2229
    %v2287 = vadd.f32 %v2286, %v2233
    %v2288 = vadd.f32 %v2287, %v2237
    %v2289 = vadd.f32 %v2288, %v2241
    %v2290 = vadd.f32 %v2289, %v2245
    %v2291 = vadd.f32 %v2290, %v2249
    %v2292 = vadd.f32 %v2291, %v2253
    %v2293 = vadd.f32 %v2292, %v2257
    %v2294 = vadd.f32 %v2293, %v2261
    %v2295 = vadd.f32 %v2294, %v2265
    %v2296 = vadd.f32 %v2295, %v2269
    %v2297 = vadd.f32 %v2296, %v2273
    %v2298 = vadd.f32 %v2297, %v2277
    %v2299 = vadd.f32 %v2298, %v2281
    %v2300 = vadd.f32 %v2222, %v2226
    %v2301 = vadd.f32 %v2300, %v2230
    %v2302 = vadd.f32 %v2301, %v2234
    %v2303 = vadd.f32 %v2302, %v2238
    %v2304 = vadd.f32 %v2303, %v2242
    %v2305 = vadd.f32 %v2304, %v2246
    %v2306 = vadd.f32 %v2305, %v2250
    %v2307 = vadd.f32 %v2306, %v2254
    %v2308 = vadd.f32 %v2307, %v2258
    %v2309 = vadd.f32 %v2308, %v2262
    %v2310 = vadd.f32 %v2309, %v2266
    %v2311 = vadd.f32 %v2310, %v2270
    %v2312 = vadd.f32 %v2311, %v2274
    %v2313 = vadd.f32 %v2312, %v2278
    %v2314 = vadd.f32 %v2313, %v2282
    %v2315 = vadd.f32 %v2223, %v2227
    %v2316 = vadd.f32 %v2315, %v2231
    %v2317 = vadd.f32 %v2316, %v2235
    %v2318 = vadd.f32 %v2317, %v2239
    %v2319 = vadd.f32 %v2318, %v2243
    %v2320 = vadd.f32 %v2319, %v2247
    %v2321 = vadd.f32 %v2320, %v2251
    %v2322 = vadd.f32 %v2321, %v2255
    %v2323 = vadd.f32 %v2322, %v2259
    %v2324 = vadd.f32 %v2323, %v2263
    %v2325 = vadd.f32 %v2324, %v2267
    %v2326 = vadd.f32 %v2325, %v2271
    %v2327 = vadd.f32 %v2326, %v2275
    %v2328 = vadd.f32 %v2327, %v2279
    %v2329 = vadd.f32 %v2328, %v2283
    %v2330 = vadd.f32 %v2224, %v2228
    %v2331 = vadd.f32 %v2330, %v2232
    %v2332 = vadd.f32 %v2331, %v2236
    %v2333 = vadd.f32 %v2332, %v2240
    %v2334 = vadd.f32 %v2333, %v2244
    %v2335 = vadd.f32 %v2334, %v2248
    %v2336 = vadd.f32 %v2335, %v2252
    %v2337 = vadd.f32 %v2336, %v2256
    %v2338 = vadd.f32 %v2337, %v2260
    %v2339 = vadd.f32 %v2338, %v2264
    %v2340 = vadd.f32 %v2339, %v2268
    %v2341 = vadd.f32 %v2340, %v2272
    %v2342 = vadd.f32 %v2341, %v2276
    %v2343 = vadd.f32 %v2342, %v2280
    %v2344 = vadd.f32 %v2343, %v2284
    %v2345 = vadd.f32 %v1511, %v2299
    %v2346 = vadd.f32 %v1512, %v2314
    %v2347 = vadd.f32 %v1513, %v2329
    %v2348 = vadd.f32 %v1514, %v2344
    %v2349 = vmul.f32 %v2029, %v2029
    %v2350 = vmul.f32 %v2030, %v2030
    %v2351 = vmul.f32 %v2031, %v2031
    %v2352 = vmul.f32 %v2032, %v2032
    %v2353 = vmul.f32 %v2033, %v2033
    %v2354 = vmul.f32 %v2034, %v2034
    %v2355 = vmul.f32 %v2035, %v2035
    %v2356 = vmul.f32 %v2036, %v2036
    %v2357 = vmul.f32 %v2037, %v2037
    %v2358 = vmul.f32 %v2038, %v2038
    %v2359 = vmul.f32 %v2039, %v2039
    %v2360 = vmul.f32 %v2040, %v2040
    %v2361 = vmul.f32 %v2041, %v2041
    %v2362 = vmul.f32 %v2042, %v2042
    %v2363 = vmul.f32 %v2043, %v2043
    %v2364 = vmul.f32 %v2044, %v2044
    %v2365 = vmul.f32 %v2045, %v2045
    %v2366 = vmul.f32 %v2046, %v2046
    %v2367 = vmul.f32 %v2047, %v2047
    %v2368 = vmul.f32 %v2048, %v2048
    %v2369 = vmul.f32 %v2049, %v2049
    %v2370 = vmul.f32 %v2050, %v2050
    %v2371 = vmul.f32 %v2051, %v2051
    %v2372 = vmul.f32 %v2052, %v2052
    %v2373 = vmul.f32 %v2053, %v2053
    %v2374 = vmul.f32 %v2054, %v2054
    %v2375 = vmul.f32 %v2055, %v2055
    %v2376 = vmul.f32 %v2056, %v2056
    %v2377 = vmul.f32 %v2057, %v2057
    %v2378 = vmul.f32 %v2058, %v2058
    %v2379 = vmul.f32 %v2059, %v2059
    %v2380 = vmul.f32 %v2060, %v2060
    %v2381 = vmul.f32 %v2061, %v2061
    %v2382 = vmul.f32 %v2062, %v2062
    %v2383 = vmul.f32 %v2063, %v2063
    %v2384 = vmul.f32 %v2064, %v2064
    %v2385 = vmul.f32 %v2065, %v2065
    %v2386 = vmul.f32 %v2066, %v2066
    %v2387 = vmul.f32 %v2067, %v2067
    %v2388 = vmul.f32 %v2068, %v2068
    %v2389 = vmul.f32 %v2069, %v2069
    %v2390 = vmul.f32 %v2070, %v2070
    %v2391 = vmul.f32 %v2071, %v2071
    %v2392 = vmul.f32 %v2072, %v2072
    %v2393 = vmul.f32 %v2073, %v2073
    %v2394 = vmul.f32 %v2074, %v2074
    %v2395 = vmul.f32 %v2075, %v2075
    %v2396 = vmul.f32 %v2076, %v2076
    %v2397 = vmul.f32 %v2077, %v2077
    %v2398 = vmul.f32 %v2078, %v2078
    %v2399 = vmul.f32 %v2079, %v2079
    %v2400 = vmul.f32 %v2080, %v2080
    %v2401 = vmul.f32 %v2081, %v2081
    %v2402 = vmul.f32 %v2082, %v2082
    %v2403 = vmul.f32 %v2083, %v2083
    %v2404 = vmul.f32 %v2084, %v2084
    %v2405 = vmul.f32 %v2085, %v2085
    %v2406 = vmul.f32 %v2086, %v2086
    %v2407 = vmul.f32 %v2087, %v2087
    %v2408 = vmul.f32 %v2088, %v2088
    %v2409 = vmul.f32 %v2089, %v2089
    %v2410 = vmul.f32 %v2090, %v2090
    %v2411 = vmul.f32 %v2091, %v2091
    %v2412 = vmul.f32 %v2092, %v2092
    %v2413 = vadd.f32 %v2349, %v2353
    %v2414 = vadd.f32 %v2413, %v2357
    %v2415 = vadd.f32 %v2414, %v2361
    %v2416 = vadd.f32 %v2415, %v2365
    %v2417 = vadd.f32 %v2416, %v2369
    %v2418 = vadd.f32 %v2417, %v2373
    %v2419 = vadd.f32 %v2418, %v2377
    %v2420 = vadd.f32 %v2419, %v2381
    %v2421 = vadd.f32 %v2420, %v2385
    %v2422 = vadd.f32 %v2421, %v2389
    %v2423 = vadd.f32 %v2422, %v2393
    %v2424 = vadd.f32 %v2423, %v2397
    %v2425 = vadd.f32 %v2424, %v2401
    %v2426 = vadd.f32 %v2425, %v2405
    %v2427 = vadd.f32 %v2426, %v2409
    %v2428 = vadd.f32 %v2350, %v2354
    %v2429 = vadd.f32 %v2428, %v2358
    %v2430 = vadd.f32 %v2429, %v2362
    %v2431 = vadd.f32 %v2430, %v2366
    %v2432 = vadd.f32 %v2431, %v2370
    %v2433 = vadd.f32 %v2432, %v2374
    %v2434 = vadd.f32 %v2433, %v2378
    %v2435 = vadd.f32 %v2434, %v2382
    %v2436 = vadd.f32 %v2435, %v2386
    %v2437 = vadd.f32 %v2436, %v2390
    %v2438 = vadd.f32 %v2437, %v2394
    %v2439 = vadd.f32 %v2438, %v2398
    %v2440 = vadd.f32 %v2439, %v2402
    %v2441 = vadd.f32 %v2440, %v2406
    %v2442 = vadd.f32 %v2441, %v2410
    %v2443 = vadd.f32 %v2351, %v2355
    %v2444 = vadd.f32 %v2443, %v2359
    %v2445 = vadd.f32 %v2444, %v2363
    %v2446 = vadd.f32 %v2445, %v2367
    %v2447 = vadd.f32 %v2446, %v2371
    %v2448 = vadd.f32 %v2447, %v2375
    %v2449 = vadd.f32 %v2448, %v2379
    %v2450 = vadd.f32 %v2449, %v2383
    %v2451 = vadd.f32 %v2450, %v2387
    %v2452 = vadd.f32 %v2451, %v2391
    %v2453 = vadd.f32 %v2452, %v2395
    %v2454 = vadd.f32 %v2453, %v2399
    %v2455 = vadd.f32 %v2454, %v2403
    %v2456 = vadd.f32 %v2455, %v2407
    %v2457 = vadd.f32 %v2456, %v2411
    %v2458 = vadd.f32 %v2352, %v2356
    %v2459 = vadd.f32 %v2458, %v2360
    %v2460 = vadd.f32 %v2459, %v2364
    %v2461 = vadd.f32 %v2460, %v2368
    %v2462 = vadd.f32 %v2461, %v2372
    %v2463 = vadd.f32 %v2462, %v2376
    %v2464 = vadd.f32 %v2463, %v2380
    %v2465 = vadd.f32 %v2464, %v2384
    %v2466 = vadd.f32 %v2465, %v2388
    %v2467 = vadd.f32 %v2466, %v2392
    %v2468 = vadd.f32 %v2467, %v2396
    %v2469 = vadd.f32 %v2468, %v2400
    %v2470 = vadd.f32 %v2469, %v2404
    %v2471 = vadd.f32 %v2470, %v2408
    %v2472 = vadd.f32 %v2471, %v2412
    %v2473 = vadd.f32 %v1639, %v2427
    %v2474 = vadd.f32 %v1640, %v2442
    %v2475 = vadd.f32 %v1641, %v2457
    %v2476 = vadd.f32 %v1642, %v2472
    %v2477 = vmul.f32 %v1965, %v2029
    %v2478 = vmul.f32 %v1966, %v2030
    %v2479 = vmul.f32 %v1967, %v2031
    %v2480 = vmul.f32 %v1968, %v2032
    %v2481 = vmul.f32 %v1969, %v2033
    %v2482 = vmul.f32 %v1970, %v2034
    %v2483 = vmul.f32 %v1971, %v2035
    %v2484 = vmul.f32 %v1972, %v2036
    %v2485 = vmul.f32 %v1973, %v2037
    %v2486 = vmul.f32 %v1974, %v2038
    %v2487 = vmul.f32 %v1975, %v2039
    %v2488 = vmul.f32 %v1976, %v2040
    %v2489 = vmul.f32 %v1977, %v2041
    %v2490 = vmul.f32 %v1978, %v2042
    %v2491 = vmul.f32 %v1979, %v2043
    %v2492 = vmul.f32 %v1980, %v2044
    %v2493 = vmul.f32 %v1981, %v2045
    %v2494 = vmul.f32 %v1982, %v2046
    %v2495 = vmul.f32 %v1983, %v2047
    %v2496 = vmul.f32 %v1984, %v2048
    %v2497 = vmul.f32 %v1985, %v2049
    %v2498 = vmul.f32 %v1986, %v2050
    %v2499 = vmul.f32 %v1987, %v2051
    %v2500 = vmul.f32 %v1988, %v2052
    %v2501 = vmul.f32 %v1989, %v2053
    %v2502 = vmul.f32 %v1990, %v2054
    %v2503 = vmul.f32 %v1991, %v2055
    %v2504 = vmul.f32 %v1992, %v2056
    %v2505 = vmul.f32 %v1993, %v2057
    %v2506 = vmul.f32 %v1994, %v2058
    %v2507 = vmul.f32 %v1995, %v2059
    %v2508 = vmul.f32 %v1996, %v2060
    %v2509 = vmul.f32 %v1997, %v2061
    %v2510 = vmul.f32 %v1998, %v2062
    %v2511 = vmul.f32 %v1999, %v2063
    %v2512 = vmul.f32 %v2000, %v2064
    %v2513 = vmul.f32 %v2001, %v2065
    %v2514 = vmul.f32 %v2002, %v2066
    %v2515 = vmul.f32 %v2003, %v2067
    %v2516 = vmul.f32 %v2004, %v2068
    %v2517 = vmul.f32 %v2005, %v2069
    %v2518 = vmul.f32 %v2006, %v2070
    %v2519 = vmul.f32 %v2007, %v2071
    %v2520 = vmul.f32 %v2008, %v2072
    %v2521 = vmul.f32 %v2009, %v2073
    %v2522 = vmul.f32 %v2010, %v2074
    %v2523 = vmul.f32 %v2011, %v2075
    %v2524 = vmul.f32 %v2012, %v2076
    %v2525 = vmul.f32 %v2013, %v2077
    %v2526 = vmul.f32 %v2014, %v2078
    %v2527 = vmul.f32 %v2015, %v2079
    %v2528 = vmul.f32 %v2016, %v2080
    %v2529 = vmul.f32 %v2017, %v2081
    %v2530 = vmul.f32 %v2018, %v2082
    %v2531 = vmul.f32 %v2019, %v2083
    %v2532 = vmul.f32 %v2020, %v2084
    %v2533 = vmul.f32 %v2021, %v2085
    %v2534 = vmul.f32 %v2022, %v2086
    %v2535 = vmul.f32 %v2023, %v2087
    %v2536 = vmul.f32 %v2024, %v2088
    %v2537 = vmul.f32 %v2025, %v2089
    %v2538 = vmul.f32 %v2026, %v2090
    %v2539 = vmul.f32 %v2027, %v2091
    %v2540 = vmul.f32 %v2028, %v2092
    %v2541 = vadd.f32 %v2477, %v2481
    %v2542 = vadd.f32 %v2541, %v2485
    %v2543 = vadd.f32 %v2542, %v2489
    %v2544 = vadd.f32 %v2543, %v2493
    %v2545 = vadd.f32 %v2544, %v2497
    %v2546 = vadd.f32 %v2545, %v2501
    %v2547 = vadd.f32 %v2546, %v2505
    %v2548 = vadd.f32 %v2547, %v2509
    %v2549 = vadd.f32 %v2548, %v2513
    %v2550 = vadd.f32 %v2549, %v2517
    %v2551 = vadd.f32 %v2550, %v2521
    %v2552 = vadd.f32 %v2551, %v2525
    %v2553 = vadd.f32 %v2552, %v2529
    %v2554 = vadd.f32 %v2553, %v2533
    %v2555 = vadd.f32 %v2554, %v2537
    %v2556 = vadd.f32 %v2478, %v2482
    %v2557 = vadd.f32 %v2556, %v2486
    %v2558 = vadd.f32 %v2557, %v2490
    %v2559 = vadd.f32 %v2558, %v2494
    %v2560 = vadd.f32 %v2559, %v2498
    %v2561 = vadd.f32 %v2560, %v2502
    %v2562 = vadd.f32 %v2561, %v2506
    %v2563 = vadd.f32 %v2562, %v2510
    %v2564 = vadd.f32 %v2563, %v2514
    %v2565 = vadd.f32 %v2564, %v2518
    %v2566 = vadd.f32 %v2565, %v2522
    %v2567 = vadd.f32 %v2566, %v2526
    %v2568 = vadd.f32 %v2567, %v2530
    %v2569 = vadd.f32 %v2568, %v2534
    %v2570 = vadd.f32 %v2569, %v2538
    %v2571 = vadd.f32 %v2479, %v2483
    %v2572 = vadd.f32 %v2571, %v2487
    %v2573 = vadd.f32 %v2572, %v2491
    %v2574 = vadd.f32 %v2573, %v2495
    %v2575 = vadd.f32 %v2574, %v2499
    %v2576 = vadd.f32 %v2575, %v2503
    %v2577 = vadd.f32 %v2576, %v2507
    %v2578 = vadd.f32 %v2577, %v2511
    %v2579 = vadd.f32 %v2578, %v2515
    %v2580 = vadd.f32 %v2579, %v2519
    %v2581 = vadd.f32 %v2580, %v2523
    %v2582 = vadd.f32 %v2581, %v2527
    %v2583 = vadd.f32 %v2582, %v2531
    %v2584 = vadd.f32 %v2583, %v2535
    %v2585 = vadd.f32 %v2584, %v2539
    %v2586 = vadd.f32 %v2480, %v2484
    %v2587 = vadd.f32 %v2586, %v2488
    %v2588 = vadd.f32 %v2587, %v2492
    %v2589 = vadd.f32 %v2588, %v2496
    %v2590 = vadd.f32 %v2589, %v2500
    %v2591 = vadd.f32 %v2590, %v2504
    %v2592 = vadd.f32 %v2591, %v2508
    %v2593 = vadd.f32 %v2592, %v2512
    %v2594 = vadd.f32 %v2593, %v2516
    %v2595 = vadd.f32 %v2594, %v2520
    %v2596 = vadd.f32 %v2595, %v2524
    %v2597 = vadd.f32 %v2596, %v2528
    %v2598 = vadd.f32 %v2597, %v2532
    %v2599 = vadd.f32 %v2598, %v2536
    %v2600 = vadd.f32 %v2599, %v2540
    %v2601 = vadd.f32 %v1767, %v2555
    %v2602 = vadd.f32 %v1768, %v2570
    %v2603 = vadd.f32 %v1769, %v2585
    %v2604 = vadd.f32 %v1770, %v2600
    %v2605 = vld [vmem:[#allocation3 + $0x600] sm:$0xff]
    %v2606 = vld [vmem:[#allocation3 + $0x608] sm:$0xff]
    %v2607 = vld [vmem:[#allocation3 + $0x610] sm:$0xff]
    %v2608 = vld [vmem:[#allocation3 + $0x618] sm:$0xff]
    %v2609 = vld [vmem:[#allocation3 + $0x620] sm:$0xff]
    %v2610 = vld [vmem:[#allocation3 + $0x628] sm:$0xff]
    %v2611 = vld [vmem:[#allocation3 + $0x630] sm:$0xff]
    %v2612 = vld [vmem:[#allocation3 + $0x638] sm:$0xff]
    %v2613 = vld [vmem:[#allocation3 + $0x640] sm:$0xff]
    %v2614 = vld [vmem:[#allocation3 + $0x648] sm:$0xff]
    %v2615 = vld [vmem:[#allocation3 + $0x650] sm:$0xff]
    %v2616 = vld [vmem:[#allocation3 + $0x658] sm:$0xff]
    %v2617 = vld [vmem:[#allocation3 + $0x660] sm:$0xff]
    %v2618 = vld [vmem:[#allocation3 + $0x668] sm:$0xff]
    %v2619 = vld [vmem:[#allocation3 + $0x670] sm:$0xff]
    %v2620 = vld [vmem:[#allocation3 + $0x678] sm:$0xff]
    %v2621 = vld [vmem:[#allocation3 + $0x680] sm:$0xff]
    %v2622 = vld [vmem:[#allocation3 + $0x688] sm:$0xff]
    %v2623 = vld [vmem:[#allocation3 + $0x690] sm:$0xff]
    %v2624 = vld [vmem:[#allocation3 + $0x698] sm:$0xff]
    %v2625 = vld [vmem:[#allocation3 + $0x6a0] sm:$0xff]
    %v2626 = vld [vmem:[#allocation3 + $0x6a8] sm:$0xff]
    %v2627 = vld [vmem:[#allocation3 + $0x6b0] sm:$0xff]
    %v2628 = vld [vmem:[#allocation3 + $0x6b8] sm:$0xff]
    %v2629 = vld [vmem:[#allocation3 + $0x6c0] sm:$0xff]
    %v2630 = vld [vmem:[#allocation3 + $0x6c8] sm:$0xff]
    %v2631 = vld [vmem:[#allocation3 + $0x6d0] sm:$0xff]
    %v2632 = vld [vmem:[#allocation3 + $0x6d8] sm:$0xff]
    %v2633 = vld [vmem:[#allocation3 + $0x6e0] sm:$0xff]
    %v2634 = vld [vmem:[#allocation3 + $0x6e8] sm:$0xff]
    %v2635 = vld [vmem:[#allocation3 + $0x6f0] sm:$0xff]
    %v2636 = vld [vmem:[#allocation3 + $0x6f8] sm:$0xff]
    %v2637 = vld [vmem:[#allocation3 + $0x700] sm:$0xff]
    %v2638 = vld [vmem:[#allocation3 + $0x708] sm:$0xff]
    %v2639 = vld [vmem:[#allocation3 + $0x710] sm:$0xff]
    %v2640 = vld [vmem:[#allocation3 + $0x718] sm:$0xff]
    %v2641 = vld [vmem:[#allocation3 + $0x720] sm:$0xff]
    %v2642 = vld [vmem:[#allocation3 + $0x728] sm:$0xff]
    %v2643 = vld [vmem:[#allocation3 + $0x730] sm:$0xff]
    %v2644 = vld [vmem:[#allocation3 + $0x738] sm:$0xff]
    %v2645 = vld [vmem:[#allocation3 + $0x740] sm:$0xff]
    %v2646 = vld [vmem:[#allocation3 + $0x748] sm:$0xff]
    %v2647 = vld [vmem:[#allocation3 + $0x750] sm:$0xff]
    %v2648 = vld [vmem:[#allocation3 + $0x758] sm:$0xff]
    %v2649 = vld [vmem:[#allocation3 + $0x760] sm:$0xff]
    %v2650 = vld [vmem:[#allocation3 + $0x768] sm:$0xff]
    %v2651 = vld [vmem:[#allocation3 + $0x770] sm:$0xff]
    %v2652 = vld [vmem:[#allocation3 + $0x778] sm:$0xff]
    %v2653 = vld [vmem:[#allocation3 + $0x780] sm:$0xff]
    %v2654 = vld [vmem:[#allocation3 + $0x788] sm:$0xff]
    %v2655 = vld [vmem:[#allocation3 + $0x790] sm:$0xff]
    %v2656 = vld [vmem:[#allocation3 + $0x798] sm:$0xff]
    %v2657 = vld [vmem:[#allocation3 + $0x7a0] sm:$0xff]
    %v2658 = vld [vmem:[#allocation3 + $0x7a8] sm:$0xff]
    %v2659 = vld [vmem:[#allocation3 + $0x7b0] sm:$0xff]
    %v2660 = vld [vmem:[#allocation3 + $0x7b8] sm:$0xff]
    %v2661 = vld [vmem:[#allocation3 + $0x7c0] sm:$0xff]
    %v2662 = vld [vmem:[#allocation3 + $0x7c8] sm:$0xff]
    %v2663 = vld [vmem:[#allocation3 + $0x7d0] sm:$0xff]
    %v2664 = vld [vmem:[#allocation3 + $0x7d8] sm:$0xff]
    %v2665 = vld [vmem:[#allocation3 + $0x7e0] sm:$0xff]
    %v2666 = vld [vmem:[#allocation3 + $0x7e8] sm:$0xff]
    %v2667 = vld [vmem:[#allocation3 + $0x7f0] sm:$0xff]
    %v2668 = vld [vmem:[#allocation3 + $0x7f8] sm:$0xff]
    %v2669 = vld [vmem:[#allocation5 + $0x600] sm:$0xff]
    %v2670 = vld [vmem:[#allocation5 + $0x608] sm:$0xff]
    %v2671 = vld [vmem:[#allocation5 + $0x610] sm:$0xff]
    %v2672 = vld [vmem:[#allocation5 + $0x618] sm:$0xff]
    %v2673 = vld [vmem:[#allocation5 + $0x620] sm:$0xff]
    %v2674 = vld [vmem:[#allocation5 + $0x628] sm:$0xff]
    %v2675 = vld [vmem:[#allocation5 + $0x630] sm:$0xff]
    %v2676 = vld [vmem:[#allocation5 + $0x638] sm:$0xff]
    %v2677 = vld [vmem:[#allocation5 + $0x640] sm:$0xff]
    %v2678 = vld [vmem:[#allocation5 + $0x648] sm:$0xff]
    %v2679 = vld [vmem:[#allocation5 + $0x650] sm:$0xff]
    %v2680 = vld [vmem:[#allocation5 + $0x658] sm:$0xff]
    %v2681 = vld [vmem:[#allocation5 + $0x660] sm:$0xff]
    %v2682 = vld [vmem:[#allocation5 + $0x668] sm:$0xff]
    %v2683 = vld [vmem:[#allocation5 + $0x670] sm:$0xff]
    %v2684 = vld [vmem:[#allocation5 + $0x678] sm:$0xff]
    %v2685 = vld [vmem:[#allocation5 + $0x680] sm:$0xff]
    %v2686 = vld [vmem:[#allocation5 + $0x688] sm:$0xff]
    %v2687 = vld [vmem:[#allocation5 + $0x690] sm:$0xff]
    %v2688 = vld [vmem:[#allocation5 + $0x698] sm:$0xff]
    %v2689 = vld [vmem:[#allocation5 + $0x6a0] sm:$0xff]
    %v2690 = vld [vmem:[#allocation5 + $0x6a8] sm:$0xff]
    %v2691 = vld [vmem:[#allocation5 + $0x6b0] sm:$0xff]
    %v2692 = vld [vmem:[#allocation5 + $0x6b8] sm:$0xff]
    %v2693 = vld [vmem:[#allocation5 + $0x6c0] sm:$0xff]
    %v2694 = vld [vmem:[#allocation5 + $0x6c8] sm:$0xff]
    %v2695 = vld [vmem:[#allocation5 + $0x6d0] sm:$0xff]
    %v2696 = vld [vmem:[#allocation5 + $0x6d8] sm:$0xff]
    %v2697 = vld [vmem:[#allocation5 + $0x6e0] sm:$0xff]
    %v2698 = vld [vmem:[#allocation5 + $0x6e8] sm:$0xff]
    %v2699 = vld [vmem:[#allocation5 + $0x6f0] sm:$0xff]
    %v2700 = vld [vmem:[#allocation5 + $0x6f8] sm:$0xff]
    %v2701 = vld [vmem:[#allocation5 + $0x700] sm:$0xff]
    %v2702 = vld [vmem:[#allocation5 + $0x708] sm:$0xff]
    %v2703 = vld [vmem:[#allocation5 + $0x710] sm:$0xff]
    %v2704 = vld [vmem:[#allocation5 + $0x718] sm:$0xff]
    %v2705 = vld [vmem:[#allocation5 + $0x720] sm:$0xff]
    %v2706 = vld [vmem:[#allocation5 + $0x728] sm:$0xff]
    %v2707 = vld [vmem:[#allocation5 + $0x730] sm:$0xff]
    %v2708 = vld [vmem:[#allocation5 + $0x738] sm:$0xff]
    %v2709 = vld [vmem:[#allocation5 + $0x740] sm:$0xff]
    %v2710 = vld [vmem:[#allocation5 + $0x748] sm:$0xff]
    %v2711 = vld [vmem:[#allocation5 + $0x750] sm:$0xff]
    %v2712 = vld [vmem:[#allocation5 + $0x758] sm:$0xff]
    %v2713 = vld [vmem:[#allocation5 + $0x760] sm:$0xff]
    %v2714 = vld [vmem:[#allocation5 + $0x768] sm:$0xff]
    %v2715 = vld [vmem:[#allocation5 + $0x770] sm:$0xff]
    %v2716 = vld [vmem:[#allocation5 + $0x778] sm:$0xff]
    %v2717 = vld [vmem:[#allocation5 + $0x780] sm:$0xff]
    %v2718 = vld [vmem:[#allocation5 + $0x788] sm:$0xff]
    %v2719 = vld [vmem:[#allocation5 + $0x790] sm:$0xff]
    %v2720 = vld [vmem:[#allocation5 + $0x798] sm:$0xff]
    %v2721 = vld [vmem:[#allocation5 + $0x7a0] sm:$0xff]
    %v2722 = vld [vmem:[#allocation5 + $0x7a8] sm:$0xff]
    %v2723 = vld [vmem:[#allocation5 + $0x7b0] sm:$0xff]
    %v2724 = vld [vmem:[#allocation5 + $0x7b8] sm:$0xff]
    %v2725 = vld [vmem:[#allocation5 + $0x7c0] sm:$0xff]
    %v2726 = vld [vmem:[#allocation5 + $0x7c8] sm:$0xff]
    %v2727 = vld [vmem:[#allocation5 + $0x7d0] sm:$0xff]
    %v2728 = vld [vmem:[#allocation5 + $0x7d8] sm:$0xff]
    %v2729 = vld [vmem:[#allocation5 + $0x7e0] sm:$0xff]
    %v2730 = vld [vmem:[#allocation5 + $0x7e8] sm:$0xff]
    %v2731 = vld [vmem:[#allocation5 + $0x7f0] sm:$0xff]
    %v2732 = vld [vmem:[#allocation5 + $0x7f8] sm:$0xff]
    %s2733 = sadd.s32 %s86, 384
    %v2734 = vstv %s2733
    %v2735 = vadd.s32 %v216, %v2734
    %v2736 = vadd.s32 %v217, %v2734
    %v2737 = vadd.s32 %v218, %v2734
    %v2738 = vadd.s32 %v219, %v2734
    %v2739 = vadd.s32 %v220, %v2734
    %v2740 = vadd.s32 %v221, %v2734
    %v2741 = vadd.s32 %v222, %v2734
    %v2742 = vadd.s32 %v223, %v2734
    %v2743 = vadd.s32 %v224, %v2734
    %v2744 = vadd.s32 %v225, %v2734
    %v2745 = vadd.s32 %v226, %v2734
    %v2746 = vadd.s32 %v227, %v2734
    %v2747 = vadd.s32 %v228, %v2734
    %v2748 = vadd.s32 %v229, %v2734
    %v2749 = vadd.s32 %v230, %v2734
    %v2750 = vadd.s32 %v231, %v2734
    %vm2751 = vcmp.lt.s32.totalorder %v2735, 512
    %vm2752 = vcmp.lt.s32.totalorder %v2736, 512
    %vm2753 = vcmp.lt.s32.totalorder %v2737, 512
    %vm2754 = vcmp.lt.s32.totalorder %v2738, 512
    %vm2755 = vcmp.lt.s32.totalorder %v2739, 512
    %vm2756 = vcmp.lt.s32.totalorder %v2740, 512
    %vm2757 = vcmp.lt.s32.totalorder %v2741, 512
    %vm2758 = vcmp.lt.s32.totalorder %v2742, 512
    %vm2759 = vcmp.lt.s32.totalorder %v2743, 512
    %vm2760 = vcmp.lt.s32.totalorder %v2744, 512
    %vm2761 = vcmp.lt.s32.totalorder %v2745, 512
    %vm2762 = vcmp.lt.s32.totalorder %v2746, 512
    %vm2763 = vcmp.lt.s32.totalorder %v2747, 512
    %vm2764 = vcmp.lt.s32.totalorder %v2748, 512
    %vm2765 = vcmp.lt.s32.totalorder %v2749, 512
    %vm2766 = vcmp.lt.s32.totalorder %v2750, 512
    %v2767 = vsel %vm2751, 1, 0
    %v2768 = vsel %vm2752, 1, 0
    %v2769 = vsel %vm2753, 1, 0
    %v2770 = vsel %vm2754, 1, 0
    %v2771 = vsel %vm2755, 1, 0
    %v2772 = vsel %vm2756, 1, 0
    %v2773 = vsel %vm2757, 1, 0
    %v2774 = vsel %vm2758, 1, 0
    %v2775 = vsel %vm2759, 1, 0
    %v2776 = vsel %vm2760, 1, 0
    %v2777 = vsel %vm2761, 1, 0
    %v2778 = vsel %vm2762, 1, 0
    %v2779 = vsel %vm2763, 1, 0
    %v2780 = vsel %vm2764, 1, 0
    %v2781 = vsel %vm2765, 1, 0
    %v2782 = vsel %vm2766, 1, 0
    %vm2783 = vcmp.eq.s32.totalorder %v2767, 1
    %vm2784 = vcmp.eq.s32.totalorder %v2768, 1
    %vm2785 = vcmp.eq.s32.totalorder %v2769, 1
    %vm2786 = vcmp.eq.s32.totalorder %v2770, 1
    %vm2787 = vcmp.eq.s32.totalorder %v2771, 1
    %vm2788 = vcmp.eq.s32.totalorder %v2772, 1
    %vm2789 = vcmp.eq.s32.totalorder %v2773, 1
    %vm2790 = vcmp.eq.s32.totalorder %v2774, 1
    %vm2791 = vcmp.eq.s32.totalorder %v2775, 1
    %vm2792 = vcmp.eq.s32.totalorder %v2776, 1
    %vm2793 = vcmp.eq.s32.totalorder %v2777, 1
    %vm2794 = vcmp.eq.s32.totalorder %v2778, 1
    %vm2795 = vcmp.eq.s32.totalorder %v2779, 1
    %vm2796 = vcmp.eq.s32.totalorder %v2780, 1
    %vm2797 = vcmp.eq.s32.totalorder %v2781, 1
    %vm2798 = vcmp.eq.s32.totalorder %v2782, 1
    %v2799 = vsel %vm2783, %v2605, 0.0
    %v2800 = vsel %vm2783, %v2606, 0.0
    %v2801 = vsel %vm2783, %v2607, 0.0
    %v2802 = vsel %vm2783, %v2608, 0.0
    %v2803 = vsel %vm2784, %v2609, 0.0
    %v2804 = vsel %vm2784, %v2610, 0.0
    %v2805 = vsel %vm2784, %v2611, 0.0
    %v2806 = vsel %vm2784, %v2612, 0.0
    %v2807 = vsel %vm2785, %v2613, 0.0
    %v2808 = vsel %vm2785, %v2614, 0.0
    %v2809 = vsel %vm2785, %v2615, 0.0
    %v2810 = vsel %vm2785, %v2616, 0.0
    %v2811 = vsel %vm2786, %v2617, 0.0
    %v2812 = vsel %vm2786, %v2618, 0.0
    %v2813 = vsel %vm2786, %v2619, 0.0
    %v2814 = vsel %vm2786, %v2620, 0.0
    %v2815 = vsel %vm2787, %v2621, 0.0
    %v2816 = vsel %vm2787, %v2622, 0.0
    %v2817 = vsel %vm2787, %v2623, 0.0
    %v2818 = vsel %vm2787, %v2624, 0.0
    %v2819 = vsel %vm2788, %v2625, 0.0
    %v2820 = vsel %vm2788, %v2626, 0.0
    %v2821 = vsel %vm2788, %v2627, 0.0
    %v2822 = vsel %vm2788, %v2628, 0.0
    %v2823 = vsel %vm2789, %v2629, 0.0
    %v2824 = vsel %vm2789, %v2630, 0.0
    %v2825 = vsel %vm2789, %v2631, 0.0
    %v2826 = vsel %vm2789, %v2632, 0.0
    %v2827 = vsel %vm2790, %v2633, 0.0
    %v2828 = vsel %vm2790, %v2634, 0.0
    %v2829 = vsel %vm2790, %v2635, 0.0
    %v2830 = vsel %vm2790, %v2636, 0.0
    %v2831 = vsel %vm2791, %v2637, 0.0
    %v2832 = vsel %vm2791, %v2638, 0.0
    %v2833 = vsel %vm2791, %v2639, 0.0
    %v2834 = vsel %vm2791, %v2640, 0.0
    %v2835 = vsel %vm2792, %v2641, 0.0
    %v2836 = vsel %vm2792, %v2642, 0.0
    %v2837 = vsel %vm2792, %v2643, 0.0
    %v2838 = vsel %vm2792, %v2644, 0.0
    %v2839 = vsel %vm2793, %v2645, 0.0
    %v2840 = vsel %vm2793, %v2646, 0.0
    %v2841 = vsel %vm2793, %v2647, 0.0
    %v2842 = vsel %vm2793, %v2648, 0.0
    %v2843 = vsel %vm2794, %v2649, 0.0
    %v2844 = vsel %vm2794, %v2650, 0.0
    %v2845 = vsel %vm2794, %v2651, 0.0
    %v2846 = vsel %vm2794, %v2652, 0.0
    %v2847 = vsel %vm2795, %v2653, 0.0
    %v2848 = vsel %vm2795, %v2654, 0.0
    %v2849 = vsel %vm2795, %v2655, 0.0
    %v2850 = vsel %vm2795, %v2656, 0.0
    %v2851 = vsel %vm2796, %v2657, 0.0
    %v2852 = vsel %vm2796, %v2658, 0.0
    %v2853 = vsel %vm2796, %v2659, 0.0
    %v2854 = vsel %vm2796, %v2660, 0.0
    %v2855 = vsel %vm2797, %v2661, 0.0
    %v2856 = vsel %vm2797, %v2662, 0.0
    %v2857 = vsel %vm2797, %v2663, 0.0
    %v2858 = vsel %vm2797, %v2664, 0.0
    %v2859 = vsel %vm2798, %v2665, 0.0
    %v2860 = vsel %vm2798, %v2666, 0.0
    %v2861 = vsel %vm2798, %v2667, 0.0
    %v2862 = vsel %vm2798, %v2668, 0.0
    %v2863 = vsel %vm2783, %v2669, 0.0
    %v2864 = vsel %vm2783, %v2670, 0.0
    %v2865 = vsel %vm2783, %v2671, 0.0
    %v2866 = vsel %vm2783, %v2672, 0.0
    %v2867 = vsel %vm2784, %v2673, 0.0
    %v2868 = vsel %vm2784, %v2674, 0.0
    %v2869 = vsel %vm2784, %v2675, 0.0
    %v2870 = vsel %vm2784, %v2676, 0.0
    %v2871 = vsel %vm2785, %v2677, 0.0
    %v2872 = vsel %vm2785, %v2678, 0.0
    %v2873 = vsel %vm2785, %v2679, 0.0
    %v2874 = vsel %vm2785, %v2680, 0.0
    %v2875 = vsel %vm2786, %v2681, 0.0
    %v2876 = vsel %vm2786, %v2682, 0.0
    %v2877 = vsel %vm2786, %v2683, 0.0
    %v2878 = vsel %vm2786, %v2684, 0.0
    %v2879 = vsel %vm2787, %v2685, 0.0
    %v2880 = vsel %vm2787, %v2686, 0.0
    %v2881 = vsel %vm2787, %v2687, 0.0
    %v2882 = vsel %vm2787, %v2688, 0.0
    %v2883 = vsel %vm2788, %v2689, 0.0
    %v2884 = vsel %vm2788, %v2690, 0.0
    %v2885 = vsel %vm2788, %v2691, 0.0
    %v2886 = vsel %vm2788, %v2692, 0.0
    %v2887 = vsel %vm2789, %v2693, 0.0
    %v2888 = vsel %vm2789, %v2694, 0.0
    %v2889 = vsel %vm2789, %v2695, 0.0
    %v2890 = vsel %vm2789, %v2696, 0.0
    %v2891 = vsel %vm2790, %v2697, 0.0
    %v2892 = vsel %vm2790, %v2698, 0.0
    %v2893 = vsel %vm2790, %v2699, 0.0
    %v2894 = vsel %vm2790, %v2700, 0.0
    %v2895 = vsel %vm2791, %v2701, 0.0
    %v2896 = vsel %vm2791, %v2702, 0.0
    %v2897 = vsel %vm2791, %v2703, 0.0
    %v2898 = vsel %vm2791, %v2704, 0.0
    %v2899 = vsel %vm2792, %v2705, 0.0
    %v2900 = vsel %vm2792, %v2706, 0.0
    %v2901 = vsel %vm2792, %v2707, 0.0
    %v2902 = vsel %vm2792, %v2708, 0.0
    %v2903 = vsel %vm2793, %v2709, 0.0
    %v2904 = vsel %vm2793, %v2710, 0.0
    %v2905 = vsel %vm2793, %v2711, 0.0
    %v2906 = vsel %vm2793, %v2712, 0.0
    %v2907 = vsel %vm2794, %v2713, 0.0
    %v2908 = vsel %vm2794, %v2714, 0.0
    %v2909 = vsel %vm2794, %v2715, 0.0
    %v2910 = vsel %vm2794, %v2716, 0.0
    %v2911 = vsel %vm2795, %v2717, 0.0
    %v2912 = vsel %vm2795, %v2718, 0.0
    %v2913 = vsel %vm2795, %v2719, 0.0
    %v2914 = vsel %vm2795, %v2720, 0.0
    %v2915 = vsel %vm2796, %v2721, 0.0
    %v2916 = vsel %vm2796, %v2722, 0.0
    %v2917 = vsel %vm2796, %v2723, 0.0
    %v2918 = vsel %vm2796, %v2724, 0.0
    %v2919 = vsel %vm2797, %v2725, 0.0
    %v2920 = vsel %vm2797, %v2726, 0.0
    %v2921 = vsel %vm2797, %v2727, 0.0
    %v2922 = vsel %vm2797, %v2728, 0.0
    %v2923 = vsel %vm2798, %v2729, 0.0
    %v2924 = vsel %vm2798, %v2730, 0.0
    %v2925 = vsel %vm2798, %v2731, 0.0
    %v2926 = vsel %vm2798, %v2732, 0.0
    %v2927 = vadd.f32 %v2799, %v2803
    %v2928 = vadd.f32 %v2927, %v2807
    %v2929 = vadd.f32 %v2928, %v2811
    %v2930 = vadd.f32 %v2929, %v2815
    %v2931 = vadd.f32 %v2930, %v2819
    %v2932 = vadd.f32 %v2931, %v2823
    %v2933 = vadd.f32 %v2932, %v2827
    %v2934 = vadd.f32 %v2933, %v2831
    %v2935 = vadd.f32 %v2934, %v2835
    %v2936 = vadd.f32 %v2935, %v2839
    %v2937 = vadd.f32 %v2936, %v2843
    %v2938 = vadd.f32 %v2937, %v2847
    %v2939 = vadd.f32 %v2938, %v2851
    %v2940 = vadd.f32 %v2939, %v2855
    %v2941 = vadd.f32 %v2940, %v2859
    %v2942 = vadd.f32 %v2800, %v2804
    %v2943 = vadd.f32 %v2942, %v2808
    %v2944 = vadd.f32 %v2943, %v2812
    %v2945 = vadd.f32 %v2944, %v2816
    %v2946 = vadd.f32 %v2945, %v2820
    %v2947 = vadd.f32 %v2946, %v2824
    %v2948 = vadd.f32 %v2947, %v2828
    %v2949 = vadd.f32 %v2948, %v2832
    %v2950 = vadd.f32 %v2949, %v2836
    %v2951 = vadd.f32 %v2950, %v2840
    %v2952 = vadd.f32 %v2951, %v2844
    %v2953 = vadd.f32 %v2952, %v2848
    %v2954 = vadd.f32 %v2953, %v2852
    %v2955 = vadd.f32 %v2954, %v2856
    %v2956 = vadd.f32 %v2955, %v2860
    %v2957 = vadd.f32 %v2801, %v2805
    %v2958 = vadd.f32 %v2957, %v2809
    %v2959 = vadd.f32 %v2958, %v2813
    %v2960 = vadd.f32 %v2959, %v2817
    %v2961 = vadd.f32 %v2960, %v2821
    %v2962 = vadd.f32 %v2961, %v2825
    %v2963 = vadd.f32 %v2962, %v2829
    %v2964 = vadd.f32 %v2963, %v2833
    %v2965 = vadd.f32 %v2964, %v2837
    %v2966 = vadd.f32 %v2965, %v2841
    %v2967 = vadd.f32 %v2966, %v2845
    %v2968 = vadd.f32 %v2967, %v2849
    %v2969 = vadd.f32 %v2968, %v2853
    %v2970 = vadd.f32 %v2969, %v2857
    %v2971 = vadd.f32 %v2970, %v2861
    %v2972 = vadd.f32 %v2802, %v2806
    %v2973 = vadd.f32 %v2972, %v2810
    %v2974 = vadd.f32 %v2973, %v2814
    %v2975 = vadd.f32 %v2974, %v2818
    %v2976 = vadd.f32 %v2975, %v2822
    %v2977 = vadd.f32 %v2976, %v2826
    %v2978 = vadd.f32 %v2977, %v2830
    %v2979 = vadd.f32 %v2978, %v2834
    %v2980 = vadd.f32 %v2979, %v2838
    %v2981 = vadd.f32 %v2980, %v2842
    %v2982 = vadd.f32 %v2981, %v2846
    %v2983 = vadd.f32 %v2982, %v2850
    %v2984 = vadd.f32 %v2983, %v2854
    %v2985 = vadd.f32 %v2984, %v2858
    %v2986 = vadd.f32 %v2985, %v2862
    %v2987 = vadd.f32 %v2153, %v2941
    %v2988 = vadd.f32 %v2154, %v2956
    %v2989 = vadd.f32 %v2155, %v2971
    %v2990 = vadd.f32 %v2156, %v2986
    %v2991 = vadd.f32 %v2863, %v2867
    %v2992 = vadd.f32 %v2991, %v2871
    %v2993 = vadd.f32 %v2992, %v2875
    %v2994 = vadd.f32 %v2993, %v2879
    %v2995 = vadd.f32 %v2994, %v2883
    %v2996 = vadd.f32 %v2995, %v2887
    %v2997 = vadd.f32 %v2996, %v2891
    %v2998 = vadd.f32 %v2997, %v2895
    %v2999 = vadd.f32 %v2998, %v2899
    %v3000 = vadd.f32 %v2999, %v2903
    %v3001 = vadd.f32 %v3000, %v2907
    %v3002 = vadd.f32 %v3001, %v2911
    %v3003 = vadd.f32 %v3002, %v2915
    %v3004 = vadd.f32 %v3003, %v2919
    %v3005 = vadd.f32 %v3004, %v2923
    %v3006 = vadd.f32 %v2864, %v2868
    %v3007 = vadd.f32 %v3006, %v2872
    %v3008 = vadd.f32 %v3007, %v2876
    %v3009 = vadd.f32 %v3008, %v2880
    %v3010 = vadd.f32 %v3009, %v2884
    %v3011 = vadd.f32 %v3010, %v2888
    %v3012 = vadd.f32 %v3011, %v2892
    %v3013 = vadd.f32 %v3012, %v2896
    %v3014 = vadd.f32 %v3013, %v2900
    %v3015 = vadd.f32 %v3014, %v2904
    %v3016 = vadd.f32 %v3015, %v2908
    %v3017 = vadd.f32 %v3016, %v2912
    %v3018 = vadd.f32 %v3017, %v2916
    %v3019 = vadd.f32 %v3018, %v2920
    %v3020 = vadd.f32 %v3019, %v2924
    %v3021 = vadd.f32 %v2865, %v2869
    %v3022 = vadd.f32 %v3021, %v2873
    %v3023 = vadd.f32 %v3022, %v2877
    %v3024 = vadd.f32 %v3023, %v2881
    %v3025 = vadd.f32 %v3024, %v2885
    %v3026 = vadd.f32 %v3025, %v2889
    %v3027 = vadd.f32 %v3026, %v2893
    %v3028 = vadd.f32 %v3027, %v2897
    %v3029 = vadd.f32 %v3028, %v2901
    %v3030 = vadd.f32 %v3029, %v2905
    %v3031 = vadd.f32 %v3030, %v2909
    %v3032 = vadd.f32 %v3031, %v2913
    %v3033 = vadd.f32 %v3032, %v2917
    %v3034 = vadd.f32 %v3033, %v2921
    %v3035 = vadd.f32 %v3034, %v2925
    %v3036 = vadd.f32 %v2866, %v2870
    %v3037 = vadd.f32 %v3036, %v2874
    %v3038 = vadd.f32 %v3037, %v2878
    %v3039 = vadd.f32 %v3038, %v2882
    %v3040 = vadd.f32 %v3039, %v2886
    %v3041 = vadd.f32 %v3040, %v2890
    %v3042 = vadd.f32 %v3041, %v2894
    %v3043 = vadd.f32 %v3042, %v2898
    %v3044 = vadd.f32 %v3043, %v2902
    %v3045 = vadd.f32 %v3044, %v2906
    %v3046 = vadd.f32 %v3045, %v2910
    %v3047 = vadd.f32 %v3046, %v2914
    %v3048 = vadd.f32 %v3047, %v2918
    %v3049 = vadd.f32 %v3048, %v2922
    %v3050 = vadd.f32 %v3049, %v2926
    %v3051 = vadd.f32 %v2217, %v3005
    %v3052 = vadd.f32 %v2218, %v3020
    %v3053 = vadd.f32 %v2219, %v3035
    %v3054 = vadd.f32 %v2220, %v3050
    %v3055 = vmul.f32 %v2799, %v2799
    %v3056 = vmul.f32 %v2800, %v2800
    %v3057 = vmul.f32 %v2801, %v2801
    %v3058 = vmul.f32 %v2802, %v2802
    %v3059 = vmul.f32 %v2803, %v2803
    %v3060 = vmul.f32 %v2804, %v2804
    %v3061 = vmul.f32 %v2805, %v2805
    %v3062 = vmul.f32 %v2806, %v2806
    %v3063 = vmul.f32 %v2807, %v2807
    %v3064 = vmul.f32 %v2808, %v2808
    %v3065 = vmul.f32 %v2809, %v2809
    %v3066 = vmul.f32 %v2810, %v2810
    %v3067 = vmul.f32 %v2811, %v2811
    %v3068 = vmul.f32 %v2812, %v2812
    %v3069 = vmul.f32 %v2813, %v2813
    %v3070 = vmul.f32 %v2814, %v2814
    %v3071 = vmul.f32 %v2815, %v2815
    %v3072 = vmul.f32 %v2816, %v2816
    %v3073 = vmul.f32 %v2817, %v2817
    %v3074 = vmul.f32 %v2818, %v2818
    %v3075 = vmul.f32 %v2819, %v2819
    %v3076 = vmul.f32 %v2820, %v2820
    %v3077 = vmul.f32 %v2821, %v2821
    %v3078 = vmul.f32 %v2822, %v2822
    %v3079 = vmul.f32 %v2823, %v2823
    %v3080 = vmul.f32 %v2824, %v2824
    %v3081 = vmul.f32 %v2825, %v2825
    %v3082 = vmul.f32 %v2826, %v2826
    %v3083 = vmul.f32 %v2827, %v2827
    %v3084 = vmul.f32 %v2828, %v2828
    %v3085 = vmul.f32 %v2829, %v2829
    %v3086 = vmul.f32 %v2830, %v2830
    %v3087 = vmul.f32 %v2831, %v2831
    %v3088 = vmul.f32 %v2832, %v2832
    %v3089 = vmul.f32 %v2833, %v2833
    %v3090 = vmul.f32 %v2834, %v2834
    %v3091 = vmul.f32 %v2835, %v2835
    %v3092 = vmul.f32 %v2836, %v2836
    %v3093 = vmul.f32 %v2837, %v2837
    %v3094 = vmul.f32 %v2838, %v2838
    %v3095 = vmul.f32 %v2839, %v2839
    %v3096 = vmul.f32 %v2840, %v2840
    %v3097 = vmul.f32 %v2841, %v2841
    %v3098 = vmul.f32 %v2842, %v2842
    %v3099 = vmul.f32 %v2843, %v2843
    %v3100 = vmul.f32 %v2844, %v2844
    %v3101 = vmul.f32 %v2845, %v2845
    %v3102 = vmul.f32 %v2846, %v2846
    %v3103 = vmul.f32 %v2847, %v2847
    %v3104 = vmul.f32 %v2848, %v2848
    %v3105 = vmul.f32 %v2849, %v2849
    %v3106 = vmul.f32 %v2850, %v2850
    %v3107 = vmul.f32 %v2851, %v2851
    %v3108 = vmul.f32 %v2852, %v2852
    %v3109 = vmul.f32 %v2853, %v2853
    %v3110 = vmul.f32 %v2854, %v2854
    %v3111 = vmul.f32 %v2855, %v2855
    %v3112 = vmul.f32 %v2856, %v2856
    %v3113 = vmul.f32 %v2857, %v2857
    %v3114 = vmul.f32 %v2858, %v2858
    %v3115 = vmul.f32 %v2859, %v2859
    %v3116 = vmul.f32 %v2860, %v2860
    %v3117 = vmul.f32 %v2861, %v2861
    %v3118 = vmul.f32 %v2862, %v2862
    %v3119 = vadd.f32 %v3055, %v3059
    %v3120 = vadd.f32 %v3119, %v3063
    %v3121 = vadd.f32 %v3120, %v3067
    %v3122 = vadd.f32 %v3121, %v3071
    %v3123 = vadd.f32 %v3122, %v3075
    %v3124 = vadd.f32 %v3123, %v3079
    %v3125 = vadd.f32 %v3124, %v3083
    %v3126 = vadd.f32 %v3125, %v3087
    %v3127 = vadd.f32 %v3126, %v3091
    %v3128 = vadd.f32 %v3127, %v3095
    %v3129 = vadd.f32 %v3128, %v3099
    %v3130 = vadd.f32 %v3129, %v3103
    %v3131 = vadd.f32 %v3130, %v3107
    %v3132 = vadd.f32 %v3131, %v3111
    %v3133 = vadd.f32 %v3132, %v3115
    %v3134 = vadd.f32 %v3056, %v3060
    %v3135 = vadd.f32 %v3134, %v3064
    %v3136 = vadd.f32 %v3135, %v3068
    %v3137 = vadd.f32 %v3136, %v3072
    %v3138 = vadd.f32 %v3137, %v3076
    %v3139 = vadd.f32 %v3138, %v3080
    %v3140 = vadd.f32 %v3139, %v3084
    %v3141 = vadd.f32 %v3140, %v3088
    %v3142 = vadd.f32 %v3141, %v3092
    %v3143 = vadd.f32 %v3142, %v3096
    %v3144 = vadd.f32 %v3143, %v3100
    %v3145 = vadd.f32 %v3144, %v3104
    %v3146 = vadd.f32 %v3145, %v3108
    %v3147 = vadd.f32 %v3146, %v3112
    %v3148 = vadd.f32 %v3147, %v3116
    %v3149 = vadd.f32 %v3057, %v3061
    %v3150 = vadd.f32 %v3149, %v3065
    %v3151 = vadd.f32 %v3150, %v3069
    %v3152 = vadd.f32 %v3151, %v3073
    %v3153 = vadd.f32 %v3152, %v3077
    %v3154 = vadd.f32 %v3153, %v3081
    %v3155 = vadd.f32 %v3154, %v3085
    %v3156 = vadd.f32 %v3155, %v3089
    %v3157 = vadd.f32 %v3156, %v3093
    %v3158 = vadd.f32 %v3157, %v3097
    %v3159 = vadd.f32 %v3158, %v3101
    %v3160 = vadd.f32 %v3159, %v3105
    %v3161 = vadd.f32 %v3160, %v3109
    %v3162 = vadd.f32 %v3161, %v3113
    %v3163 = vadd.f32 %v3162, %v3117
    %v3164 = vadd.f32 %v3058, %v3062
    %v3165 = vadd.f32 %v3164, %v3066
    %v3166 = vadd.f32 %v3165, %v3070
    %v3167 = vadd.f32 %v3166, %v3074
    %v3168 = vadd.f32 %v3167, %v3078
    %v3169 = vadd.f32 %v3168, %v3082
    %v3170 = vadd.f32 %v3169, %v3086
    %v3171 = vadd.f32 %v3170, %v3090
    %v3172 = vadd.f32 %v3171, %v3094
    %v3173 = vadd.f32 %v3172, %v3098
    %v3174 = vadd.f32 %v3173, %v3102
    %v3175 = vadd.f32 %v3174, %v3106
    %v3176 = vadd.f32 %v3175, %v3110
    %v3177 = vadd.f32 %v3176, %v3114
    %v3178 = vadd.f32 %v3177, %v3118
    %v3179 = vadd.f32 %v2345, %v3133
    %v3180 = vadd.f32 %v2346, %v3148
    %v3181 = vadd.f32 %v2347, %v3163
    %v3182 = vadd.f32 %v2348, %v3178
    %v3183 = vmul.f32 %v2863, %v2863
    %v3184 = vmul.f32 %v2864, %v2864
    %v3185 = vmul.f32 %v2865, %v2865
    %v3186 = vmul.f32 %v2866, %v2866
    %v3187 = vmul.f32 %v2867, %v2867
    %v3188 = vmul.f32 %v2868, %v2868
    %v3189 = vmul.f32 %v2869, %v2869
    %v3190 = vmul.f32 %v2870, %v2870
    %v3191 = vmul.f32 %v2871, %v2871
    %v3192 = vmul.f32 %v2872, %v2872
    %v3193 = vmul.f32 %v2873, %v2873
    %v3194 = vmul.f32 %v2874, %v2874
    %v3195 = vmul.f32 %v2875, %v2875
    %v3196 = vmul.f32 %v2876, %v2876
    %v3197 = vmul.f32 %v2877, %v2877
    %v3198 = vmul.f32 %v2878, %v2878
    %v3199 = vmul.f32 %v2879, %v2879
    %v3200 = vmul.f32 %v2880, %v2880
    %v3201 = vmul.f32 %v2881, %v2881
    %v3202 = vmul.f32 %v2882, %v2882
    %v3203 = vmul.f32 %v2883, %v2883
    %v3204 = vmul.f32 %v2884, %v2884
    %v3205 = vmul.f32 %v2885, %v2885
    %v3206 = vmul.f32 %v2886, %v2886
    %v3207 = vmul.f32 %v2887, %v2887
    %v3208 = vmul.f32 %v2888, %v2888
    %v3209 = vmul.f32 %v2889, %v2889
    %v3210 = vmul.f32 %v2890, %v2890
    %v3211 = vmul.f32 %v2891, %v2891
    %v3212 = vmul.f32 %v2892, %v2892
    %v3213 = vmul.f32 %v2893, %v2893
    %v3214 = vmul.f32 %v2894, %v2894
    %v3215 = vmul.f32 %v2895, %v2895
    %v3216 = vmul.f32 %v2896, %v2896
    %v3217 = vmul.f32 %v2897, %v2897
    %v3218 = vmul.f32 %v2898, %v2898
    %v3219 = vmul.f32 %v2899, %v2899
    %v3220 = vmul.f32 %v2900, %v2900
    %v3221 = vmul.f32 %v2901, %v2901
    %v3222 = vmul.f32 %v2902, %v2902
    %v3223 = vmul.f32 %v2903, %v2903
    %v3224 = vmul.f32 %v2904, %v2904
    %v3225 = vmul.f32 %v2905, %v2905
    %v3226 = vmul.f32 %v2906, %v2906
    %v3227 = vmul.f32 %v2907, %v2907
    %v3228 = vmul.f32 %v2908, %v2908
    %v3229 = vmul.f32 %v2909, %v2909
    %v3230 = vmul.f32 %v2910, %v2910
    %v3231 = vmul.f32 %v2911, %v2911
    %v3232 = vmul.f32 %v2912, %v2912
    %v3233 = vmul.f32 %v2913, %v2913
    %v3234 = vmul.f32 %v2914, %v2914
    %v3235 = vmul.f32 %v2915, %v2915
    %v3236 = vmul.f32 %v2916, %v2916
    %v3237 = vmul.f32 %v2917, %v2917
    %v3238 = vmul.f32 %v2918, %v2918
    %v3239 = vmul.f32 %v2919, %v2919
    %v3240 = vmul.f32 %v2920, %v2920
    %v3241 = vmul.f32 %v2921, %v2921
    %v3242 = vmul.f32 %v2922, %v2922
    %v3243 = vmul.f32 %v2923, %v2923
    %v3244 = vmul.f32 %v2924, %v2924
    %v3245 = vmul.f32 %v2925, %v2925
    %v3246 = vmul.f32 %v2926, %v2926
    %v3247 = vadd.f32 %v3183, %v3187
    %v3248 = vadd.f32 %v3247, %v3191
    %v3249 = vadd.f32 %v3248, %v3195
    %v3250 = vadd.f32 %v3249, %v3199
    %v3251 = vadd.f32 %v3250, %v3203
    %v3252 = vadd.f32 %v3251, %v3207
    %v3253 = vadd.f32 %v3252, %v3211
    %v3254 = vadd.f32 %v3253, %v3215
    %v3255 = vadd.f32 %v3254, %v3219
    %v3256 = vadd.f32 %v3255, %v3223
    %v3257 = vadd.f32 %v3256, %v3227
    %v3258 = vadd.f32 %v3257, %v3231
    %v3259 = vadd.f32 %v3258, %v3235
    %v3260 = vadd.f32 %v3259, %v3239
    %v3261 = vadd.f32 %v3260, %v3243
    %v3262 = vadd.f32 %v3184, %v3188
    %v3263 = vadd.f32 %v3262, %v3192
    %v3264 = vadd.f32 %v3263, %v3196
    %v3265 = vadd.f32 %v3264, %v3200
    %v3266 = vadd.f32 %v3265, %v3204
    %v3267 = vadd.f32 %v3266, %v3208
    %v3268 = vadd.f32 %v3267, %v3212
    %v3269 = vadd.f32 %v3268, %v3216
    %v3270 = vadd.f32 %v3269, %v3220
    %v3271 = vadd.f32 %v3270, %v3224
    %v3272 = vadd.f32 %v3271, %v3228
    %v3273 = vadd.f32 %v3272, %v3232
    %v3274 = vadd.f32 %v3273, %v3236
    %v3275 = vadd.f32 %v3274, %v3240
    %v3276 = vadd.f32 %v3275, %v3244
    %v3277 = vadd.f32 %v3185, %v3189
    %v3278 = vadd.f32 %v3277, %v3193
    %v3279 = vadd.f32 %v3278, %v3197
    %v3280 = vadd.f32 %v3279, %v3201
    %v3281 = vadd.f32 %v3280, %v3205
    %v3282 = vadd.f32 %v3281, %v3209
    %v3283 = vadd.f32 %v3282, %v3213
    %v3284 = vadd.f32 %v3283, %v3217
    %v3285 = vadd.f32 %v3284, %v3221
    %v3286 = vadd.f32 %v3285, %v3225
    %v3287 = vadd.f32 %v3286, %v3229
    %v3288 = vadd.f32 %v3287, %v3233
    %v3289 = vadd.f32 %v3288, %v3237
    %v3290 = vadd.f32 %v3289, %v3241
    %v3291 = vadd.f32 %v3290, %v3245
    %v3292 = vadd.f32 %v3186, %v3190
    %v3293 = vadd.f32 %v3292, %v3194
    %v3294 = vadd.f32 %v3293, %v3198
    %v3295 = vadd.f32 %v3294, %v3202
    %v3296 = vadd.f32 %v3295, %v3206
    %v3297 = vadd.f32 %v3296, %v3210
    %v3298 = vadd.f32 %v3297, %v3214
    %v3299 = vadd.f32 %v3298, %v3218
    %v3300 = vadd.f32 %v3299, %v3222
    %v3301 = vadd.f32 %v3300, %v3226
    %v3302 = vadd.f32 %v3301, %v3230
    %v3303 = vadd.f32 %v3302, %v3234
    %v3304 = vadd.f32 %v3303, %v3238
    %v3305 = vadd.f32 %v3304, %v3242
    %v3306 = vadd.f32 %v3305, %v3246
    %v3307 = vadd.f32 %v2473, %v3261
    %v3308 = vadd.f32 %v2474, %v3276
    %v3309 = vadd.f32 %v2475, %v3291
    %v3310 = vadd.f32 %v2476, %v3306
    %v3311 = vmul.f32 %v2799, %v2863
    %v3312 = vmul.f32 %v2800, %v2864
    %v3313 = vmul.f32 %v2801, %v2865
    %v3314 = vmul.f32 %v2802, %v2866
    %v3315 = vmul.f32 %v2803, %v2867
    %v3316 = vmul.f32 %v2804, %v2868
    %v3317 = vmul.f32 %v2805, %v2869
    %v3318 = vmul.f32 %v2806, %v2870
    %v3319 = vmul.f32 %v2807, %v2871
    %v3320 = vmul.f32 %v2808, %v2872
    %v3321 = vmul.f32 %v2809, %v2873
    %v3322 = vmul.f32 %v2810, %v2874
    %v3323 = vmul.f32 %v2811, %v2875
    %v3324 = vmul.f32 %v2812, %v2876
    %v3325 = vmul.f32 %v2813, %v2877
    %v3326 = vmul.f32 %v2814, %v2878
    %v3327 = vmul.f32 %v2815, %v2879
    %v3328 = vmul.f32 %v2816, %v2880
    %v3329 = vmul.f32 %v2817, %v2881
    %v3330 = vmul.f32 %v2818, %v2882
    %v3331 = vmul.f32 %v2819, %v2883
    %v3332 = vmul.f32 %v2820, %v2884
    %v3333 = vmul.f32 %v2821, %v2885
    %v3334 = vmul.f32 %v2822, %v2886
    %v3335 = vmul.f32 %v2823, %v2887
    %v3336 = vmul.f32 %v2824, %v2888
    %v3337 = vmul.f32 %v2825, %v2889
    %v3338 = vmul.f32 %v2826, %v2890
    %v3339 = vmul.f32 %v2827, %v2891
    %v3340 = vmul.f32 %v2828, %v2892
    %v3341 = vmul.f32 %v2829, %v2893
    %v3342 = vmul.f32 %v2830, %v2894
    %v3343 = vmul.f32 %v2831, %v2895
    %v3344 = vmul.f32 %v2832, %v2896
    %v3345 = vmul.f32 %v2833, %v2897
    %v3346 = vmul.f32 %v2834, %v2898
    %v3347 = vmul.f32 %v2835, %v2899
    %v3348 = vmul.f32 %v2836, %v2900
    %v3349 = vmul.f32 %v2837, %v2901
    %v3350 = vmul.f32 %v2838, %v2902
    %v3351 = vmul.f32 %v2839, %v2903
    %v3352 = vmul.f32 %v2840, %v2904
    %v3353 = vmul.f32 %v2841, %v2905
    %v3354 = vmul.f32 %v2842, %v2906
    %v3355 = vmul.f32 %v2843, %v2907
    %v3356 = vmul.f32 %v2844, %v2908
    %v3357 = vmul.f32 %v2845, %v2909
    %v3358 = vmul.f32 %v2846, %v2910
    %v3359 = vmul.f32 %v2847, %v2911
    %v3360 = vmul.f32 %v2848, %v2912
    %v3361 = vmul.f32 %v2849, %v2913
    %v3362 = vmul.f32 %v2850, %v2914
    %v3363 = vmul.f32 %v2851, %v2915
    %v3364 = vmul.f32 %v2852, %v2916
    %v3365 = vmul.f32 %v2853, %v2917
    %v3366 = vmul.f32 %v2854, %v2918
    %v3367 = vmul.f32 %v2855, %v2919
    %v3368 = vmul.f32 %v2856, %v2920
    %v3369 = vmul.f32 %v2857, %v2921
    %v3370 = vmul.f32 %v2858, %v2922
    %v3371 = vmul.f32 %v2859, %v2923
    %v3372 = vmul.f32 %v2860, %v2924
    %v3373 = vmul.f32 %v2861, %v2925
    %v3374 = vmul.f32 %v2862, %v2926
    %v3375 = vadd.f32 %v3311, %v3315
    %v3376 = vadd.f32 %v3375, %v3319
    %v3377 = vadd.f32 %v3376, %v3323
    %v3378 = vadd.f32 %v3377, %v3327
    %v3379 = vadd.f32 %v3378, %v3331
    %v3380 = vadd.f32 %v3379, %v3335
    %v3381 = vadd.f32 %v3380, %v3339
    %v3382 = vadd.f32 %v3381, %v3343
    %v3383 = vadd.f32 %v3382, %v3347
    %v3384 = vadd.f32 %v3383, %v3351
    %v3385 = vadd.f32 %v3384, %v3355
    %v3386 = vadd.f32 %v3385, %v3359
    %v3387 = vadd.f32 %v3386, %v3363
    %v3388 = vadd.f32 %v3387, %v3367
    %v3389 = vadd.f32 %v3388, %v3371
    %v3390 = vadd.f32 %v3312, %v3316
    %v3391 = vadd.f32 %v3390, %v3320
    %v3392 = vadd.f32 %v3391, %v3324
    %v3393 = vadd.f32 %v3392, %v3328
    %v3394 = vadd.f32 %v3393, %v3332
    %v3395 = vadd.f32 %v3394, %v3336
    %v3396 = vadd.f32 %v3395, %v3340
    %v3397 = vadd.f32 %v3396, %v3344
    %v3398 = vadd.f32 %v3397, %v3348
    %v3399 = vadd.f32 %v3398, %v3352
    %v3400 = vadd.f32 %v3399, %v3356
    %v3401 = vadd.f32 %v3400, %v3360
    %v3402 = vadd.f32 %v3401, %v3364
    %v3403 = vadd.f32 %v3402, %v3368
    %v3404 = vadd.f32 %v3403, %v3372
    %v3405 = vadd.f32 %v3313, %v3317
    %v3406 = vadd.f32 %v3405, %v3321
    %v3407 = vadd.f32 %v3406, %v3325
    %v3408 = vadd.f32 %v3407, %v3329
    %v3409 = vadd.f32 %v3408, %v3333
    %v3410 = vadd.f32 %v3409, %v3337
    %v3411 = vadd.f32 %v3410, %v3341
    %v3412 = vadd.f32 %v3411, %v3345
    %v3413 = vadd.f32 %v3412, %v3349
    %v3414 = vadd.f32 %v3413, %v3353
    %v3415 = vadd.f32 %v3414, %v3357
    %v3416 = vadd.f32 %v3415, %v3361
    %v3417 = vadd.f32 %v3416, %v3365
    %v3418 = vadd.f32 %v3417, %v3369
    %v3419 = vadd.f32 %v3418, %v3373
    %v3420 = vadd.f32 %v3314, %v3318
    %v3421 = vadd.f32 %v3420, %v3322
    %v3422 = vadd.f32 %v3421, %v3326
    %v3423 = vadd.f32 %v3422, %v3330
    %v3424 = vadd.f32 %v3423, %v3334
    %v3425 = vadd.f32 %v3424, %v3338
    %v3426 = vadd.f32 %v3425, %v3342
    %v3427 = vadd.f32 %v3426, %v3346
    %v3428 = vadd.f32 %v3427, %v3350
    %v3429 = vadd.f32 %v3428, %v3354
    %v3430 = vadd.f32 %v3429, %v3358
    %v3431 = vadd.f32 %v3430, %v3362
    %v3432 = vadd.f32 %v3431, %v3366
    %v3433 = vadd.f32 %v3432, %v3370
    %v3434 = vadd.f32 %v3433, %v3374
    %v3435 = vadd.f32 %v2601, %v3389
    %v3436 = vadd.f32 %v2602, %v3404
    %v3437 = vadd.f32 %v2603, %v3419
    %v3438 = vadd.f32 %v2604, %v3434
    %v3439 = vld [vmem:[#allocation2] sm:$0xff]
    %v3440 = vld [vmem:[#allocation2 + $0x8] sm:$0xff]
    %v3441 = vld [vmem:[#allocation2 + $0x10] sm:$0xff]
    %v3442 = vld [vmem:[#allocation2 + $0x18] sm:$0xff]
    %v3443 = vadd.f32 %v3439, %v2987
    %v3444 = vadd.f32 %v3440, %v2988
    %v3445 = vadd.f32 %v3441, %v2989
    %v3446 = vadd.f32 %v3442, %v2990
    %3447 = vst [vmem:[#allocation2] sm:$0xff] %v3443
    %3448 = vst [vmem:[#allocation2 + $0x8] sm:$0xff] %v3444
    %3449 = vst [vmem:[#allocation2 + $0x10] sm:$0xff] %v3445
    %3450 = vst [vmem:[#allocation2 + $0x18] sm:$0xff] %v3446
    %s3451 = scalar_lea.vmem [#allocation2], 32
    %v3452 = vld [vmem:[%s3451] sm:$0xff]
    %v3453 = vld [vmem:[%s3451 + $0x8] sm:$0xff]
    %v3454 = vld [vmem:[%s3451 + $0x10] sm:$0xff]
    %v3455 = vld [vmem:[%s3451 + $0x18] sm:$0xff]
    %v3456 = vadd.f32 %v3452, %v3051
    %v3457 = vadd.f32 %v3453, %v3052
    %v3458 = vadd.f32 %v3454, %v3053
    %v3459 = vadd.f32 %v3455, %v3054
    %3460 = vst [vmem:[%s3451] sm:$0xff] %v3456
    %3461 = vst [vmem:[%s3451 + $0x8] sm:$0xff] %v3457
    %3462 = vst [vmem:[%s3451 + $0x10] sm:$0xff] %v3458
    %3463 = vst [vmem:[%s3451 + $0x18] sm:$0xff] %v3459
    %s3464 = scalar_lea.vmem [#allocation2], 64
    %v3465 = vld [vmem:[%s3464] sm:$0xff]
    %v3466 = vld [vmem:[%s3464 + $0x8] sm:$0xff]
    %v3467 = vld [vmem:[%s3464 + $0x10] sm:$0xff]
    %v3468 = vld [vmem:[%s3464 + $0x18] sm:$0xff]
    %v3469 = vadd.f32 %v3465, %v3179
    %v3470 = vadd.f32 %v3466, %v3180
    %v3471 = vadd.f32 %v3467, %v3181
    %v3472 = vadd.f32 %v3468, %v3182
    %3473 = vst [vmem:[%s3464] sm:$0xff] %v3469
    %3474 = vst [vmem:[%s3464 + $0x8] sm:$0xff] %v3470
    %3475 = vst [vmem:[%s3464 + $0x10] sm:$0xff] %v3471
    %3476 = vst [vmem:[%s3464 + $0x18] sm:$0xff] %v3472
    %s3477 = scalar_lea.vmem [#allocation2], 96
    %v3478 = vld [vmem:[%s3477] sm:$0xff]
    %v3479 = vld [vmem:[%s3477 + $0x8] sm:$0xff]
    %v3480 = vld [vmem:[%s3477 + $0x10] sm:$0xff]
    %v3481 = vld [vmem:[%s3477 + $0x18] sm:$0xff]
    %v3482 = vadd.f32 %v3478, %v3307
    %v3483 = vadd.f32 %v3479, %v3308
    %v3484 = vadd.f32 %v3480, %v3309
    %v3485 = vadd.f32 %v3481, %v3310
    %3486 = vst [vmem:[%s3477] sm:$0xff] %v3482
    %3487 = vst [vmem:[%s3477 + $0x8] sm:$0xff] %v3483
    %3488 = vst [vmem:[%s3477 + $0x10] sm:$0xff] %v3484
    %3489 = vst [vmem:[%s3477 + $0x18] sm:$0xff] %v3485
    %s3490 = scalar_lea.vmem [#allocation2], 128
    %v3491 = vld [vmem:[%s3490] sm:$0xff]
    %v3492 = vld [vmem:[%s3490 + $0x8] sm:$0xff]
    %v3493 = vld [vmem:[%s3490 + $0x10] sm:$0xff]
    %v3494 = vld [vmem:[%s3490 + $0x18] sm:$0xff]
    %v3495 = vadd.f32 %v3491, %v3435
    %v3496 = vadd.f32 %v3492, %v3436
    %v3497 = vadd.f32 %v3493, %v3437
    %v3498 = vadd.f32 %v3494, %v3438
    %3499 = vst [vmem:[%s3490] sm:$0xff] %v3495
    %3500 = vst [vmem:[%s3490 + $0x8] sm:$0xff] %v3496
    %3501 = vst [vmem:[%s3490 + $0x10] sm:$0xff] %v3497
    %3502 = vst [vmem:[%s3490 + $0x18] sm:$0xff] %v3498
    // Predicated region
    $region22: #{tpu_custom_call.1} parent=1 // pred_check
      %p3503 = pneg %p61
    $region23: #{tpu_custom_call.1} parent=1 // pred_check_branch
      %3505 = sbr.rel (%p3503) target = $region25
    $region24: #{tpu_custom_call.1} parent=1 // pred_region
      %v3506 = vld [vmem:[#allocation2] sm:$0xff]
      %v3507 = vld [vmem:[#allocation2 + $0x8] sm:$0xff]
      %v3508 = vld [vmem:[#allocation2 + $0x10] sm:$0xff]
      %v3509 = vld [vmem:[#allocation2 + $0x18] sm:$0xff]
      %v3510 = vld [vmem:[#allocation2 + $0x20] sm:$0xff]
      %v3511 = vld [vmem:[#allocation2 + $0x28] sm:$0xff]
      %v3512 = vld [vmem:[#allocation2 + $0x30] sm:$0xff]
      %v3513 = vld [vmem:[#allocation2 + $0x38] sm:$0xff]
      %v3514 = vld [vmem:[#allocation2 + $0x40] sm:$0xff]
      %v3515 = vld [vmem:[#allocation2 + $0x48] sm:$0xff]
      %v3516 = vld [vmem:[#allocation2 + $0x50] sm:$0xff]
      %v3517 = vld [vmem:[#allocation2 + $0x58] sm:$0xff]
      %v3518 = vld [vmem:[#allocation2 + $0x60] sm:$0xff]
      %v3519 = vld [vmem:[#allocation2 + $0x68] sm:$0xff]
      %v3520 = vld [vmem:[#allocation2 + $0x70] sm:$0xff]
      %v3521 = vld [vmem:[#allocation2 + $0x78] sm:$0xff]
      %v3522 = vld [vmem:[#allocation2 + $0x80] sm:$0xff]
      %v3523 = vld [vmem:[#allocation2 + $0x88] sm:$0xff]
      %v3524 = vld [vmem:[#allocation2 + $0x90] sm:$0xff]
      %v3525 = vld [vmem:[#allocation2 + $0x98] sm:$0xff]
      %v3526 = vrot.slane %v3506, 4
      %v3527 = vadd.f32 %v3506, %v3526
      %v3528 = vrot.slane %v3527, 2
      %v3529 = vadd.f32 %v3527, %v3528
      %v3530 = vrot.slane %v3529, 1
      %v3531 = vadd.f32 %v3529, %v3530
      %v3532 = vrot.slane %v3507, 4
      %v3533 = vadd.f32 %v3507, %v3532
      %v3534 = vrot.slane %v3533, 2
      %v3535 = vadd.f32 %v3533, %v3534
      %v3536 = vrot.slane %v3535, 1
      %v3537 = vadd.f32 %v3535, %v3536
      %v3538 = vrot.slane %v3508, 4
      %v3539 = vadd.f32 %v3508, %v3538
      %v3540 = vrot.slane %v3539, 2
      %v3541 = vadd.f32 %v3539, %v3540
      %v3542 = vrot.slane %v3541, 1
      %v3543 = vadd.f32 %v3541, %v3542
      %v3544 = vrot.slane %v3509, 4
      %v3545 = vadd.f32 %v3509, %v3544
      %v3546 = vrot.slane %v3545, 2
      %v3547 = vadd.f32 %v3545, %v3546
      %v3548 = vrot.slane %v3547, 1
      %v3549 = vadd.f32 %v3547, %v3548
      %v3550 = vrot.slane %v3510, 4
      %v3551 = vadd.f32 %v3510, %v3550
      %v3552 = vrot.slane %v3551, 2
      %v3553 = vadd.f32 %v3551, %v3552
      %v3554 = vrot.slane %v3553, 1
      %v3555 = vadd.f32 %v3553, %v3554
      %v3556 = vrot.slane %v3511, 4
      %v3557 = vadd.f32 %v3511, %v3556
      %v3558 = vrot.slane %v3557, 2
      %v3559 = vadd.f32 %v3557, %v3558
      %v3560 = vrot.slane %v3559, 1
      %v3561 = vadd.f32 %v3559, %v3560
      %v3562 = vrot.slane %v3512, 4
      %v3563 = vadd.f32 %v3512, %v3562
      %v3564 = vrot.slane %v3563, 2
      %v3565 = vadd.f32 %v3563, %v3564
      %v3566 = vrot.slane %v3565, 1
      %v3567 = vadd.f32 %v3565, %v3566
      %v3568 = vrot.slane %v3513, 4
      %v3569 = vadd.f32 %v3513, %v3568
      %v3570 = vrot.slane %v3569, 2
      %v3571 = vadd.f32 %v3569, %v3570
      %v3572 = vrot.slane %v3571, 1
      %v3573 = vadd.f32 %v3571, %v3572
      %v3574 = vrot.slane %v3514, 4
      %v3575 = vadd.f32 %v3514, %v3574
      %v3576 = vrot.slane %v3575, 2
      %v3577 = vadd.f32 %v3575, %v3576
      %v3578 = vrot.slane %v3577, 1
      %v3579 = vadd.f32 %v3577, %v3578
      %v3580 = vrot.slane %v3515, 4
      %v3581 = vadd.f32 %v3515, %v3580
      %v3582 = vrot.slane %v3581, 2
      %v3583 = vadd.f32 %v3581, %v3582
      %v3584 = vrot.slane %v3583, 1
      %v3585 = vadd.f32 %v3583, %v3584
      %v3586 = vrot.slane %v3516, 4
      %v3587 = vadd.f32 %v3516, %v3586
      %v3588 = vrot.slane %v3587, 2
      %v3589 = vadd.f32 %v3587, %v3588
      %v3590 = vrot.slane %v3589, 1
      %v3591 = vadd.f32 %v3589, %v3590
      %v3592 = vrot.slane %v3517, 4
      %v3593 = vadd.f32 %v3517, %v3592
      %v3594 = vrot.slane %v3593, 2
      %v3595 = vadd.f32 %v3593, %v3594
      %v3596 = vrot.slane %v3595, 1
      %v3597 = vadd.f32 %v3595, %v3596
      %v3598 = vrot.slane %v3518, 4
      %v3599 = vadd.f32 %v3518, %v3598
      %v3600 = vrot.slane %v3599, 2
      %v3601 = vadd.f32 %v3599, %v3600
      %v3602 = vrot.slane %v3601, 1
      %v3603 = vadd.f32 %v3601, %v3602
      %v3604 = vrot.slane %v3519, 4
      %v3605 = vadd.f32 %v3519, %v3604
      %v3606 = vrot.slane %v3605, 2
      %v3607 = vadd.f32 %v3605, %v3606
      %v3608 = vrot.slane %v3607, 1
      %v3609 = vadd.f32 %v3607, %v3608
      %v3610 = vrot.slane %v3520, 4
      %v3611 = vadd.f32 %v3520, %v3610
      %v3612 = vrot.slane %v3611, 2
      %v3613 = vadd.f32 %v3611, %v3612
      %v3614 = vrot.slane %v3613, 1
      %v3615 = vadd.f32 %v3613, %v3614
      %v3616 = vrot.slane %v3521, 4
      %v3617 = vadd.f32 %v3521, %v3616
      %v3618 = vrot.slane %v3617, 2
      %v3619 = vadd.f32 %v3617, %v3618
      %v3620 = vrot.slane %v3619, 1
      %v3621 = vadd.f32 %v3619, %v3620
      %v3622 = vrot.slane %v3522, 4
      %v3623 = vadd.f32 %v3522, %v3622
      %v3624 = vrot.slane %v3623, 2
      %v3625 = vadd.f32 %v3623, %v3624
      %v3626 = vrot.slane %v3625, 1
      %v3627 = vadd.f32 %v3625, %v3626
      %v3628 = vrot.slane %v3523, 4
      %v3629 = vadd.f32 %v3523, %v3628
      %v3630 = vrot.slane %v3629, 2
      %v3631 = vadd.f32 %v3629, %v3630
      %v3632 = vrot.slane %v3631, 1
      %v3633 = vadd.f32 %v3631, %v3632
      %v3634 = vrot.slane %v3524, 4
      %v3635 = vadd.f32 %v3524, %v3634
      %v3636 = vrot.slane %v3635, 2
      %v3637 = vadd.f32 %v3635, %v3636
      %v3638 = vrot.slane %v3637, 1
      %v3639 = vadd.f32 %v3637, %v3638
      %v3640 = vrot.slane %v3525, 4
      %v3641 = vadd.f32 %v3525, %v3640
      %v3642 = vrot.slane %v3641, 2
      %v3643 = vadd.f32 %v3641, %v3642
      %v3644 = vrot.slane %v3643, 1
      %v3645 = vadd.f32 %v3643, %v3644
      %vm3666 = vcmask 1041409
      %v3667 = vsel %vm3666, %v3555, %v3531
      %vm3668 = vcmask 1042434
      %v3669 = vsel %vm3668, %v3579, %v3667
      %vm3670 = vcmask 1043459
      %v3671 = vsel %vm3670, %v3603, %v3669
      %vm3672 = vcmask 1044484
      %v3673 = vsel %vm3672, %v3627, %v3671
      %v3674 = vsel %vm3666, %v3561, %v3537
      %v3675 = vsel %vm3668, %v3585, %v3674
      %v3676 = vsel %vm3670, %v3609, %v3675
      %v3677 = vsel %vm3672, %v3633, %v3676
      %v3678 = vsel %vm3666, %v3567, %v3543
      %v3679 = vsel %vm3668, %v3591, %v3678
      %v3680 = vsel %vm3670, %v3615, %v3679
      %v3681 = vsel %vm3672, %v3639, %v3680
      %v3682 = vsel %vm3666, %v3573, %v3549
      %v3683 = vsel %vm3668, %v3597, %v3682
      %v3684 = vsel %vm3670, %v3621, %v3683
      %v3685 = vsel %vm3672, %v3645, %v3684
      %3690 = vst [vmem:[%s2] sm:$0x1f] %v3673
      %3691 = vst [vmem:[%s2 + $0x8] sm:$0x1f] %v3677
      %3692 = vst [vmem:[%s2 + $0x10] sm:$0x1f] %v3681
      %3693 = vst [vmem:[%s2 + $0x18] sm:$0x1f] %v3685
    $region25: #{tpu_custom_call.1} parent=1 // pred_fallthru
      _
    // Predicated region
    $region26: #{tpu_custom_call.1} parent=1 // pred_check
      _
    $region27: #{tpu_custom_call.1} parent=1 // pred_check_branch
      %3695 = sbr.rel (0) target = $region29
    $region28: #{tpu_custom_call.1} parent=1 // pred_region
      _
    $region29: #{tpu_custom_call.1} parent=1 // pred_fallthru
      _
    // Predicated region
    $region30: #{tpu_custom_call.1} parent=1 // pred_check
      _
    $region31: #{tpu_custom_call.1} parent=1 // pred_check_branch
      %3697 = sbr.rel (0) target = $region33
    $region32: #{tpu_custom_call.1} parent=1 // pred_region
      _
    $region33: #{tpu_custom_call.1} parent=1 // pred_fallthru
      _
    %3698 = vsyncpa [#allocation4], 1
    %3699 = vsyncpa [#allocation6], 1

</llo_original>
